<compile_context>
chip_gen: v5e
topology: v5e:2x2
jax: 0.10.0
libtpu: 0.0.40
codegen_flags: <defaults>
</compile_context>

<pallas_src>
import functools

import jax
import jax.numpy as jnp
from jax.experimental import pallas as pl
from jax.experimental.pallas import tpu as pltpu


def _round_up(x, m):
    return ((x + m - 1) // m) * m


def _decoder_kernel(use_tf,
                    nxt_ref, emb0_ref, h0_ref,
                    w1_ref, b1_ref, w2_ref, b2_ref,
                    w_lin_ref, b_lin_ref,
                    out_ref, hfin_ref):
    T = out_ref.shape[0]
    Bp, Hp = h0_ref.shape

    # Hoist all weight/bias loads out of the time loop.
    w1 = w1_ref[...]
    b1 = b1_ref[...]
    w2 = w2_ref[...]
    b2 = b2_ref[...]
    w_lin = w_lin_ref[...]
    b_lin = b_lin_ref[...]
    emb_tbl = None if use_tf else nxt_ref[...]        # only resident when needed

    def lstm_cell(x, h, c, w, b):
        # Fused [x, h] @ [W_ih; W_hh]: one bf16 MXU matmul, f32 accumulate.
        xh = jnp.concatenate([x, h], axis=1).astype(jnp.bfloat16)
        gates = jnp.dot(xh, w, preferred_element_type=jnp.float32) + b
        # torch.nn.LSTMCell gate order [i, f, g, o]; slices are 128-lane aligned.
        i_g = jax.nn.sigmoid(gates[:, 0 * Hp:1 * Hp])
        f_g = jax.nn.sigmoid(gates[:, 1 * Hp:2 * Hp])
        g_g = jnp.tanh(gates[:, 2 * Hp:3 * Hp])
        o_g = jax.nn.sigmoid(gates[:, 3 * Hp:4 * Hp])
        c_new = f_g * c + i_g * g_g
        h_new = o_g * jnp.tanh(c_new)
        return h_new, c_new

    def step(t, carry):
        x, h1, c1, h2, c2 = carry
        h1, c1 = lstm_cell(x, h1, c1, w1, b1)
        h2, c2 = lstm_cell(h1, h2, c2, w2, b2)

        logits = jnp.dot(h2.astype(jnp.bfloat16), w_lin,
                         preferred_element_type=jnp.float32) + b_lin
        m = jnp.max(logits, axis=-1, keepdims=True)
        e = jnp.exp(logits - m)
        denom = jnp.sum(e, axis=-1, keepdims=True)
        probs = e * pl.reciprocal(denom, approx=True)     # EUP, not VALU divide
        out_ref[t] = probs

        if use_tf:
            # teacher forcing: next input embedding pre-gathered in glue.
            x_next = nxt_ref[t].astype(jnp.float32)
        else:
            # greedy feedback: argmax on logits (== argmax of softmax),
            # embedding lookup as one-hot @ table on the MXU (bf16).
            idx = jnp.argmax(logits, axis=-1, keepdims=True)
            iota = jax.lax.broadcasted_iota(jnp.int32, logits.shape, 1)
            onehot = (iota == idx).astype(jnp.bfloat16)
            x_next = jnp.dot(onehot, emb_tbl,
                             preferred_element_type=jnp.float32)
        return (x_next, h1, c1, h2, c2)

    zeros = jnp.zeros((Bp, Hp), jnp.float32)
    carry = (emb0_ref[...].astype(jnp.float32), h0_ref[...], zeros, zeros, zeros)
    _, h1, _, _, _ = jax.lax.fori_loop(0, T, step, carry, unroll=True)
    hfin_ref[...] = h1                                   # written exactly once


def decoder_rnn_pallas(params, inputs, hiddens, target_sequences, use_tf):
    emb_tbl = params["embedding"]
    V, H = emb_tbl.shape
    B = inputs.shape[1]
    T = target_sequences.shape[1]

    Hp = _round_up(H, 128)
    Vp = _round_up(V, 128)
    Bp = _round_up(B, 8)

    f32, bf16 = jnp.float32, jnp.bfloat16

    def fused_gate_weight(w_ih, w_hh):
        # torch (4H, H) x2 -> fused, per-gate-padded (2*Hp, 4*Hp) bf16.
        def one(w):
            wt = w.T.reshape(H, 4, H)                               # [i|f|g|o]
            wt = jnp.pad(wt, ((0, Hp - H), (0, 0), (0, Hp - H)))
            return wt.reshape(Hp, 4 * Hp)
        return jnp.concatenate([one(w_ih), one(w_hh)], axis=0).astype(bf16)

    def fused_gate_bias(b_ih, b_hh):
        b = (b_ih + b_hh).reshape(4, H)
        return jnp.pad(b, ((0, 0), (0, Hp - H))).reshape(1, 4 * Hp).astype(f32)

    w1 = fused_gate_weight(params["lstm1_w_ih"], params["lstm1_w_hh"])
    b1 = fused_gate_bias(params["lstm1_b_ih"], params["lstm1_b_hh"])
    w2 = fused_gate_weight(params["lstm2_w_ih"], params["lstm2_w_hh"])
    b2 = fused_gate_bias(params["lstm2_b_ih"], params["lstm2_b_hh"])

    w_lin = jnp.pad(params["lin_w"].T, ((0, Hp - H), (0, Vp - V))).astype(bf16)
    # Padded vocab lanes get a huge negative bias -> prob 0, never the argmax.
    b_lin = jnp.pad(params["lin_b"], ((0, Vp - V),),
                    constant_values=-1e30)[None, :].astype(f32)

    emb0 = jnp.pad(emb_tbl[inputs[0]], ((0, Bp - B), (0, Hp - H))).astype(bf16)
    h0 = jnp.pad(hiddens, ((0, Bp - B), (0, Hp - H))).astype(f32)

    if use_tf:
        # Pre-gather all teacher-forcing embeddings; embedding table NOT passed.
        nxt = jnp.pad(emb_tbl[target_sequences.T],
                      ((0, 0), (0, Bp - B), (0, Hp - H))).astype(bf16)
    else:
        nxt = jnp.pad(emb_tbl, ((0, Vp - V), (0, Hp - H))).astype(bf16)

    vmem_spec = pl.BlockSpec(memory_space=pltpu.MemorySpace.VMEM)

    out_p, h_p = pl.pallas_call(
        functools.partial(_decoder_kernel, bool(use_tf)),
        out_shape=(jax.ShapeDtypeStruct((T, Bp, Vp), f32),
                   jax.ShapeDtypeStruct((Bp, Hp), f32)),
        in_specs=[vmem_spec] * 9,
        out_specs=(vmem_spec, vmem_spec),
    )(nxt, emb0, h0, w1, b1, w2, b2, w_lin, b_lin)

    return out_p[:, :B, :V], h_p[:B, :H]


def decoder_rnn_ref(params, inputs, hiddens, target_sequences, use_tf):
    """Pure-JAX reference mirroring the PyTorch forward (dropout = identity)."""
    emb_tbl = params["embedding"]
    H = emb_tbl.shape[1]
    B = inputs.shape[1]
    T = target_sequences.shape[1]

    def lstm(x, h, c, w_ih, w_hh, b_ih, b_hh):
        gates = x @ w_ih.T + b_ih + h @ w_hh.T + b_hh
        i, f, g, o = jnp.split(gates, 4, axis=1)
        i = jax.nn.sigmoid(i)
        f = jax.nn.sigmoid(f)
        g = jnp.tanh(g)
        o = jax.nn.sigmoid(o)
        c = f * c + i * g
        return o * jnp.tanh(c), c

    x = emb_tbl[inputs[0]]
    h1 = hiddens
    c1 = jnp.zeros((B, H), jnp.float32)
    h2 = jnp.zeros((B, H), jnp.float32)
    c2 = jnp.zeros((B, H), jnp.float32)
    outs = []
    for i in range(T):
        h1, c1 = lstm(x, h1, c1, params["lstm1_w_ih"], params["lstm1_w_hh"],
                      params["lstm1_b_ih"], params["lstm1_b_hh"])
        h2, c2 = lstm(h1, h2, c2, params["lstm2_w_ih"], params["lstm2_w_hh"],
                      params["lstm2_b_ih"], params["lstm2_b_hh"])
        probs = jax.nn.softmax(h2 @ params["lin_w"].T + params["lin_b"], axis=-1)
        if use_tf:
            x = emb_tbl[target_sequences[:, i]]
        else:
            x = emb_tbl[jnp.argmax(probs, axis=-1)]
        outs.append(probs)
    return jnp.stack(outs), h1


if __name__ == "__main__":
    vocab_size, hidden_size = 32, 32
    B, T = 8, 6

    key = jax.random.PRNGKey(0)
    ks = jax.random.split(key, 14)
    s = 1.0 / (hidden_size ** 0.5)

    params = {
        "embedding": 0.1 * jax.random.normal(ks[0], (vocab_size, hidden_size), jnp.float32),
        "lstm1_w_ih": jax.random.uniform(ks[1], (4 * hidden_size, hidden_size), jnp.float32, -s, s),
        "lstm1_w_hh": jax.random.uniform(ks[2], (4 * hidden_size, hidden_size), jnp.float32, -s, s),
        "lstm1_b_ih": jax.random.uniform(ks[3], (4 * hidden_size,), jnp.float32, -s, s),
        "lstm1_b_hh": jax.random.uniform(ks[4], (4 * hidden_size,), jnp.float32, -s, s),
        "lstm2_w_ih": jax.random.uniform(ks[5], (4 * hidden_size, hidden_size), jnp.float32, -s, s),
        "lstm2_w_hh": jax.random.uniform(ks[6], (4 * hidden_size, hidden_size), jnp.float32, -s, s),
        "lstm2_b_ih": jax.random.uniform(ks[7], (4 * hidden_size,), jnp.float32, -s, s),
        "lstm2_b_hh": jax.random.uniform(ks[8], (4 * hidden_size,), jnp.float32, -s, s),
        "lin_w": jax.random.uniform(ks[9], (vocab_size, hidden_size), jnp.float32, -s, s),
        "lin_b": jax.random.uniform(ks[10], (vocab_size,), jnp.float32, -s, s),
    }

    inputs = jax.random.randint(ks[11], (1, B), 0, vocab_size)          # (1, batch) token ids
    hiddens = 0.1 * jax.random.normal(ks[12], (B, hidden_size), jnp.float32)
    target_sequences = jax.random.randint(ks[13], (B, T), 0, vocab_size)

    # teacher-forcing path (checked against pure-JAX f32 reference; bf16 MXU)
    out, h_t = decoder_rnn_pallas(params, inputs, hiddens, target_sequences, use_tf=True)
    jax.block_until_ready((out, h_t))
    ref_out, ref_h = decoder_rnn_ref(params, inputs, hiddens, target_sequences, use_tf=True)

    assert out.shape == (T, B, vocab_size) and h_t.shape == (B, hidden_size)
    assert jnp.allclose(out, ref_out, atol=2e-2), "softmax outputs mismatch"
    assert jnp.allclose(h_t, ref_h, atol=2e-2), "final hidden mismatch"

    # greedy-feedback (no teacher forcing) path, exercised (argmax ties / bf16
    # rounding can legitimately diverge from the f32 reference trajectory)
    out2, h_t2 = decoder_rnn_pallas(params, inputs, hiddens, target_sequences, use_tf=False)
    jax.block_until_ready((out2, h_t2))
    assert out2.shape == (T, B, vocab_size) and h_t2.shape == (B, hidden_size)

    print("KERNEL_OK")
</pallas_src>

<mosaic_0001>
module attributes {stable_mosaic.version = 11 : i64} {
  func.func @_decoder_kernel(%arg0: memref<6x8x128xbf16, #tpu.memory_space<vmem>>, %arg1: memref<8x128xbf16, #tpu.memory_space<vmem>>, %arg2: memref<8x128xf32, #tpu.memory_space<vmem>>, %arg3: memref<256x512xbf16, #tpu.memory_space<vmem>>, %arg4: memref<1x512xf32, #tpu.memory_space<vmem>>, %arg5: memref<256x512xbf16, #tpu.memory_space<vmem>>, %arg6: memref<1x512xf32, #tpu.memory_space<vmem>>, %arg7: memref<128x128xbf16, #tpu.memory_space<vmem>>, %arg8: memref<1x128xf32, #tpu.memory_space<vmem>>, %arg9: memref<6x8x128xf32, #tpu.memory_space<vmem>>, %arg10: memref<8x128xf32, #tpu.memory_space<vmem>>) attributes {dimension_semantics = [], scalar_prefetch = 0 : i64, scratch_operands = 0 : i64, tpu.core_type = #tpu.core_type<tc>} {
    %c0 = arith.constant 0 : index
    %c0_0 = arith.constant 0 : index
    %0 = vector.load %arg3[%c0, %c0_0] : memref<256x512xbf16, #tpu.memory_space<vmem>>, vector<256x512xbf16>
    %c0_1 = arith.constant 0 : index
    %c0_2 = arith.constant 0 : index
    %1 = vector.load %arg4[%c0_1, %c0_2] : memref<1x512xf32, #tpu.memory_space<vmem>>, vector<1x512xf32>
    %c0_3 = arith.constant 0 : index
    %c0_4 = arith.constant 0 : index
    %2 = vector.load %arg5[%c0_3, %c0_4] : memref<256x512xbf16, #tpu.memory_space<vmem>>, vector<256x512xbf16>
    %c0_5 = arith.constant 0 : index
    %c0_6 = arith.constant 0 : index
    %3 = vector.load %arg6[%c0_5, %c0_6] : memref<1x512xf32, #tpu.memory_space<vmem>>, vector<1x512xf32>
    %c0_7 = arith.constant 0 : index
    %c0_8 = arith.constant 0 : index
    %4 = vector.load %arg7[%c0_7, %c0_8] : memref<128x128xbf16, #tpu.memory_space<vmem>>, vector<128x128xbf16>
    %c0_9 = arith.constant 0 : index
    %c0_10 = arith.constant 0 : index
    %5 = vector.load %arg8[%c0_9, %c0_10] : memref<1x128xf32, #tpu.memory_space<vmem>>, vector<1x128xf32>
    %cst = arith.constant 0.000000e+00 : f32
    %6 = vector.broadcast %cst : f32 to vector<8x128xf32>
    %c0_11 = arith.constant 0 : index
    %c0_12 = arith.constant 0 : index
    %7 = vector.load %arg1[%c0_11, %c0_12] : memref<8x128xbf16, #tpu.memory_space<vmem>>, vector<8x128xbf16>
    %8 = arith.extf %7 : vector<8x128xbf16> to vector<8x128xf32>
    %c0_13 = arith.constant 0 : index
    %c0_14 = arith.constant 0 : index
    %9 = vector.load %arg2[%c0_13, %c0_14] : memref<8x128xf32, #tpu.memory_space<vmem>>, vector<8x128xf32>
    %c0_i32 = arith.constant 0 : i32
    %10 = tpu.concatenate %8, %9 in 1 : vector<8x128xf32>, vector<8x128xf32> -> vector<8x256xf32>
    %11 = arith.truncf %10 : vector<8x256xf32> to vector<8x256xbf16>
    %cst_15 = arith.constant dense<0.000000e+00> : vector<8x512xf32>
    %12 = tpu.matmul %11, %0, %cst_15 {dimension_numbers = #tpu.dot_dimension_numbers<[1], [0], [0], [1], [0, 0, 1, 1], [], []>} : vector<8x256xbf16>, vector<256x512xbf16>, vector<8x512xf32> -> vector<8x512xf32>
    %13 = vector.broadcast %1 : vector<1x512xf32> to vector<8x512xf32>
    %14 = arith.addf %12, %13 : vector<8x512xf32>
    %15 = vector.extract_strided_slice %14 {offsets = [0, 0], sizes = [8, 128], strides = [1, 1]} : vector<8x512xf32> to vector<8x128xf32>
    %16 = arith.negf %15 : vector<8x128xf32>
    %17 = math.exp %16 : vector<8x128xf32>
    %cst_16 = arith.constant 1.000000e+00 : f32
    %18 = vector.broadcast %cst_16 : f32 to vector<8x128xf32>
    %19 = arith.addf %18, %17 : vector<8x128xf32>
    %20 = arith.divf %18, %19 : vector<8x128xf32>
    %21 = vector.extract_strided_slice %14 {offsets = [0, 128], sizes = [8, 128], strides = [1, 1]} : vector<8x512xf32> to vector<8x128xf32>
    %22 = arith.negf %21 : vector<8x128xf32>
    %23 = math.exp %22 : vector<8x128xf32>
    %cst_17 = arith.constant 1.000000e+00 : f32
    %24 = vector.broadcast %cst_17 : f32 to vector<8x128xf32>
    %25 = arith.addf %24, %23 : vector<8x128xf32>
    %26 = arith.divf %24, %25 : vector<8x128xf32>
    %27 = vector.extract_strided_slice %14 {offsets = [0, 256], sizes = [8, 128], strides = [1, 1]} : vector<8x512xf32> to vector<8x128xf32>
    %28 = math.tanh %27 : vector<8x128xf32>
    %29 = vector.extract_strided_slice %14 {offsets = [0, 384], sizes = [8, 128], strides = [1, 1]} : vector<8x512xf32> to vector<8x128xf32>
    %30 = arith.negf %29 : vector<8x128xf32>
    %31 = math.exp %30 : vector<8x128xf32>
    %cst_18 = arith.constant 1.000000e+00 : f32
    %32 = vector.broadcast %cst_18 : f32 to vector<8x128xf32>
    %33 = arith.addf %32, %31 : vector<8x128xf32>
    %34 = arith.divf %32, %33 : vector<8x128xf32>
    %35 = arith.mulf %26, %6 : vector<8x128xf32>
    %36 = arith.mulf %20, %28 : vector<8x128xf32>
    %37 = arith.addf %35, %36 : vector<8x128xf32>
    %38 = math.tanh %37 : vector<8x128xf32>
    %39 = arith.mulf %34, %38 : vector<8x128xf32>
    %40 = tpu.concatenate %39, %6 in 1 : vector<8x128xf32>, vector<8x128xf32> -> vector<8x256xf32>
    %41 = arith.truncf %40 : vector<8x256xf32> to vector<8x256xbf16>
    %cst_19 = arith.constant dense<0.000000e+00> : vector<8x512xf32>
    %42 = tpu.matmul %41, %2, %cst_19 {dimension_numbers = #tpu.dot_dimension_numbers<[1], [0], [0], [1], [0, 0, 1, 1], [], []>} : vector<8x256xbf16>, vector<256x512xbf16>, vector<8x512xf32> -> vector<8x512xf32>
    %43 = vector.broadcast %3 : vector<1x512xf32> to vector<8x512xf32>
    %44 = arith.addf %42, %43 : vector<8x512xf32>
    %45 = vector.extract_strided_slice %44 {offsets = [0, 0], sizes = [8, 128], strides = [1, 1]} : vector<8x512xf32> to vector<8x128xf32>
    %46 = arith.negf %45 : vector<8x128xf32>
    %47 = math.exp %46 : vector<8x128xf32>
    %cst_20 = arith.constant 1.000000e+00 : f32
    %48 = vector.broadcast %cst_20 : f32 to vector<8x128xf32>
    %49 = arith.addf %48, %47 : vector<8x128xf32>
    %50 = arith.divf %48, %49 : vector<8x128xf32>
    %51 = vector.extract_strided_slice %44 {offsets = [0, 128], sizes = [8, 128], strides = [1, 1]} : vector<8x512xf32> to vector<8x128xf32>
    %52 = arith.negf %51 : vector<8x128xf32>
    %53 = math.exp %52 : vector<8x128xf32>
    %cst_21 = arith.constant 1.000000e+00 : f32
    %54 = vector.broadcast %cst_21 : f32 to vector<8x128xf32>
    %55 = arith.addf %54, %53 : vector<8x128xf32>
    %56 = arith.divf %54, %55 : vector<8x128xf32>
    %57 = vector.extract_strided_slice %44 {offsets = [0, 256], sizes = [8, 128], strides = [1, 1]} : vector<8x512xf32> to vector<8x128xf32>
    %58 = math.tanh %57 : vector<8x128xf32>
    %59 = vector.extract_strided_slice %44 {offsets = [0, 384], sizes = [8, 128], strides = [1, 1]} : vector<8x512xf32> to vector<8x128xf32>
    %60 = arith.negf %59 : vector<8x128xf32>
    %61 = math.exp %60 : vector<8x128xf32>
    %cst_22 = arith.constant 1.000000e+00 : f32
    %62 = vector.broadcast %cst_22 : f32 to vector<8x128xf32>
    %63 = arith.addf %62, %61 : vector<8x128xf32>
    %64 = arith.divf %62, %63 : vector<8x128xf32>
    %65 = arith.mulf %56, %6 : vector<8x128xf32>
    %66 = arith.mulf %50, %58 : vector<8x128xf32>
    %67 = arith.addf %65, %66 : vector<8x128xf32>
    %68 = math.tanh %67 : vector<8x128xf32>
    %69 = arith.mulf %64, %68 : vector<8x128xf32>
    %70 = arith.truncf %69 : vector<8x128xf32> to vector<8x128xbf16>
    %cst_23 = arith.constant dense<0.000000e+00> : vector<8x128xf32>
    %71 = tpu.matmul %70, %4, %cst_23 {dimension_numbers = #tpu.dot_dimension_numbers<[1], [0], [0], [1], [0, 0, 1, 1], [], []>} : vector<8x128xbf16>, vector<128x128xbf16>, vector<8x128xf32> -> vector<8x128xf32>
    %72 = vector.broadcast %5 : vector<1x128xf32> to vector<8x128xf32>
    %73 = arith.addf %71, %72 : vector<8x128xf32>
    %cst_24 = arith.constant dense<0xFF800000> : vector<8xf32>
    %74 = vector.multi_reduction <maximumf>, %73, %cst_24 [1] : vector<8x128xf32> to vector<8xf32>
    %75 = vector.shape_cast %74 : vector<8xf32> to vector<8x1xf32>
    %76 = vector.broadcast %75 : vector<8x1xf32> to vector<8x128xf32>
    %77 = arith.subf %73, %76 : vector<8x128xf32>
    %78 = math.exp %77 : vector<8x128xf32>
    %cst_25 = arith.constant dense<0.000000e+00> : vector<8xf32>
    %79 = vector.multi_reduction <add>, %78, %cst_25 [1] : vector<8x128xf32> to vector<8xf32>
    %80 = vector.shape_cast %79 : vector<8xf32> to vector<8x1xf32>
    %81 = tpu.reciprocal %80 {approx = true} : vector<8x1xf32> -> vector<8x1xf32>
    %82 = vector.broadcast %81 : vector<8x1xf32> to vector<8x128xf32>
    %83 = arith.mulf %78, %82 : vector<8x128xf32>
    %84 = arith.index_cast %c0_i32 : i32 to index
    %c0_26 = arith.constant 0 : index
    %c0_27 = arith.constant 0 : index
    %85 = vector.load %arg9[%84, %c0_26, %c0_27] : memref<6x8x128xf32, #tpu.memory_space<vmem>>, vector<1x8x128xf32>
    %86 = vector.shape_cast %85 : vector<1x8x128xf32> to vector<8x128xf32>
    %87 = vector.shape_cast %83 : vector<8x128xf32> to vector<1x8x128xf32>
    tpu.vector_store %arg9[%84, %c0_26, %c0_27], %87 {strides = array<i32>} : memref<6x8x128xf32, #tpu.memory_space<vmem>>, vector<1x8x128xf32>,
    %88 = arith.index_cast %c0_i32 : i32 to index
    %c0_28 = arith.constant 0 : index
    %c0_29 = arith.constant 0 : index
    %89 = vector.load %arg0[%88, %c0_28, %c0_29] : memref<6x8x128xbf16, #tpu.memory_space<vmem>>, vector<1x8x128xbf16>
    %90 = vector.shape_cast %89 : vector<1x8x128xbf16> to vector<8x128xbf16>
    %91 = arith.extf %90 : vector<8x128xbf16> to vector<8x128xf32>
    %c1_i32 = arith.constant 1 : i32
    %92 = tpu.concatenate %91, %39 in 1 : vector<8x128xf32>, vector<8x128xf32> -> vector<8x256xf32>
    %93 = arith.truncf %92 : vector<8x256xf32> to vector<8x256xbf16>
    %cst_30 = arith.constant dense<0.000000e+00> : vector<8x512xf32>
    %94 = tpu.matmul %93, %0, %cst_30 {dimension_numbers = #tpu.dot_dimension_numbers<[1], [0], [0], [1], [0, 0, 1, 1], [], []>} : vector<8x256xbf16>, vector<256x512xbf16>, vector<8x512xf32> -> vector<8x512xf32>
    %95 = vector.broadcast %1 : vector<1x512xf32> to vector<8x512xf32>
    %96 = arith.addf %94, %95 : vector<8x512xf32>
    %97 = vector.extract_strided_slice %96 {offsets = [0, 0], sizes = [8, 128], strides = [1, 1]} : vector<8x512xf32> to vector<8x128xf32>
    %98 = arith.negf %97 : vector<8x128xf32>
    %99 = math.exp %98 : vector<8x128xf32>
    %cst_31 = arith.constant 1.000000e+00 : f32
    %100 = vector.broadcast %cst_31 : f32 to vector<8x128xf32>
    %101 = arith.addf %100, %99 : vector<8x128xf32>
    %102 = arith.divf %100, %101 : vector<8x128xf32>
    %103 = vector.extract_strided_slice %96 {offsets = [0, 128], sizes = [8, 128], strides = [1, 1]} : vector<8x512xf32> to vector<8x128xf32>
    %104 = arith.negf %103 : vector<8x128xf32>
    %105 = math.exp %104 : vector<8x128xf32>
    %cst_32 = arith.constant 1.000000e+00 : f32
    %106 = vector.broadcast %cst_32 : f32 to vector<8x128xf32>
    %107 = arith.addf %106, %105 : vector<8x128xf32>
    %108 = arith.divf %106, %107 : vector<8x128xf32>
    %109 = vector.extract_strided_slice %96 {offsets = [0, 256], sizes = [8, 128], strides = [1, 1]} : vector<8x512xf32> to vector<8x128xf32>
    %110 = math.tanh %109 : vector<8x128xf32>
    %111 = vector.extract_strided_slice %96 {offsets = [0, 384], sizes = [8, 128], strides = [1, 1]} : vector<8x512xf32> to vector<8x128xf32>
    %112 = arith.negf %111 : vector<8x128xf32>
    %113 = math.exp %112 : vector<8x128xf32>
    %cst_33 = arith.constant 1.000000e+00 : f32
    %114 = vector.broadcast %cst_33 : f32 to vector<8x128xf32>
    %115 = arith.addf %114, %113 : vector<8x128xf32>
    %116 = arith.divf %114, %115 : vector<8x128xf32>
    %117 = arith.mulf %108, %37 : vector<8x128xf32>
    %118 = arith.mulf %102, %110 : vector<8x128xf32>
    %119 = arith.addf %117, %118 : vector<8x128xf32>
    %120 = math.tanh %119 : vector<8x128xf32>
    %121 = arith.mulf %116, %120 : vector<8x128xf32>
    %122 = tpu.concatenate %121, %69 in 1 : vector<8x128xf32>, vector<8x128xf32> -> vector<8x256xf32>
    %123 = arith.truncf %122 : vector<8x256xf32> to vector<8x256xbf16>
    %cst_34 = arith.constant dense<0.000000e+00> : vector<8x512xf32>
    %124 = tpu.matmul %123, %2, %cst_34 {dimension_numbers = #tpu.dot_dimension_numbers<[1], [0], [0], [1], [0, 0, 1, 1], [], []>} : vector<8x256xbf16>, vector<256x512xbf16>, vector<8x512xf32> -> vector<8x512xf32>
    %125 = vector.broadcast %3 : vector<1x512xf32> to vector<8x512xf32>
    %126 = arith.addf %124, %125 : vector<8x512xf32>
    %127 = vector.extract_strided_slice %126 {offsets = [0, 0], sizes = [8, 128], strides = [1, 1]} : vector<8x512xf32> to vector<8x128xf32>
    %128 = arith.negf %127 : vector<8x128xf32>
    %129 = math.exp %128 : vector<8x128xf32>
    %cst_35 = arith.constant 1.000000e+00 : f32
    %130 = vector.broadcast %cst_35 : f32 to vector<8x128xf32>
    %131 = arith.addf %130, %129 : vector<8x128xf32>
    %132 = arith.divf %130, %131 : vector<8x128xf32>
    %133 = vector.extract_strided_slice %126 {offsets = [0, 128], sizes = [8, 128], strides = [1, 1]} : vector<8x512xf32> to vector<8x128xf32>
    %134 = arith.negf %133 : vector<8x128xf32>
    %135 = math.exp %134 : vector<8x128xf32>
    %cst_36 = arith.constant 1.000000e+00 : f32
    %136 = vector.broadcast %cst_36 : f32 to vector<8x128xf32>
    %137 = arith.addf %136, %135 : vector<8x128xf32>
    %138 = arith.divf %136, %137 : vector<8x128xf32>
    %139 = vector.extract_strided_slice %126 {offsets = [0, 256], sizes = [8, 128], strides = [1, 1]} : vector<8x512xf32> to vector<8x128xf32>
    %140 = math.tanh %139 : vector<8x128xf32>
    %141 = vector.extract_strided_slice %126 {offsets = [0, 384], sizes = [8, 128], strides = [1, 1]} : vector<8x512xf32> to vector<8x128xf32>
    %142 = arith.negf %141 : vector<8x128xf32>
    %143 = math.exp %142 : vector<8x128xf32>
    %cst_37 = arith.constant 1.000000e+00 : f32
    %144 = vector.broadcast %cst_37 : f32 to vector<8x128xf32>
    %145 = arith.addf %144, %143 : vector<8x128xf32>
    %146 = arith.divf %144, %145 : vector<8x128xf32>
    %147 = arith.mulf %138, %67 : vector<8x128xf32>
    %148 = arith.mulf %132, %140 : vector<8x128xf32>
    %149 = arith.addf %147, %148 : vector<8x128xf32>
    %150 = math.tanh %149 : vector<8x128xf32>
    %151 = arith.mulf %146, %150 : vector<8x128xf32>
    %152 = arith.truncf %151 : vector<8x128xf32> to vector<8x128xbf16>
    %cst_38 = arith.constant dense<0.000000e+00> : vector<8x128xf32>
    %153 = tpu.matmul %152, %4, %cst_38 {dimension_numbers = #tpu.dot_dimension_numbers<[1], [0], [0], [1], [0, 0, 1, 1], [], []>} : vector<8x128xbf16>, vector<128x128xbf16>, vector<8x128xf32> -> vector<8x128xf32>
    %154 = vector.broadcast %5 : vector<1x128xf32> to vector<8x128xf32>
    %155 = arith.addf %153, %154 : vector<8x128xf32>
    %cst_39 = arith.constant dense<0xFF800000> : vector<8xf32>
    %156 = vector.multi_reduction <maximumf>, %155, %cst_39 [1] : vector<8x128xf32> to vector<8xf32>
    %157 = vector.shape_cast %156 : vector<8xf32> to vector<8x1xf32>
    %158 = vector.broadcast %157 : vector<8x1xf32> to vector<8x128xf32>
    %159 = arith.subf %155, %158 : vector<8x128xf32>
    %160 = math.exp %159 : vector<8x128xf32>
    %cst_40 = arith.constant dense<0.000000e+00> : vector<8xf32>
    %161 = vector.multi_reduction <add>, %160, %cst_40 [1] : vector<8x128xf32> to vector<8xf32>
    %162 = vector.shape_cast %161 : vector<8xf32> to vector<8x1xf32>
    %163 = tpu.reciprocal %162 {approx = true} : vector<8x1xf32> -> vector<8x1xf32>
    %164 = vector.broadcast %163 : vector<8x1xf32> to vector<8x128xf32>
    %165 = arith.mulf %160, %164 : vector<8x128xf32>
    %166 = arith.index_cast %c1_i32 : i32 to index
    %c0_41 = arith.constant 0 : index
    %c0_42 = arith.constant 0 : index
    %167 = vector.load %arg9[%166, %c0_41, %c0_42] : memref<6x8x128xf32, #tpu.memory_space<vmem>>, vector<1x8x128xf32>
    %168 = vector.shape_cast %167 : vector<1x8x128xf32> to vector<8x128xf32>
    %169 = vector.shape_cast %165 : vector<8x128xf32> to vector<1x8x128xf32>
    tpu.vector_store %arg9[%166, %c0_41, %c0_42], %169 {strides = array<i32>} : memref<6x8x128xf32, #tpu.memory_space<vmem>>, vector<1x8x128xf32>,
    %170 = arith.index_cast %c1_i32 : i32 to index
    %c0_43 = arith.constant 0 : index
    %c0_44 = arith.constant 0 : index
    %171 = vector.load %arg0[%170, %c0_43, %c0_44] : memref<6x8x128xbf16, #tpu.memory_space<vmem>>, vector<1x8x128xbf16>
    %172 = vector.shape_cast %171 : vector<1x8x128xbf16> to vector<8x128xbf16>
    %173 = arith.extf %172 : vector<8x128xbf16> to vector<8x128xf32>
    %c2_i32 = arith.constant 2 : i32
    %174 = tpu.concatenate %173, %121 in 1 : vector<8x128xf32>, vector<8x128xf32> -> vector<8x256xf32>
    %175 = arith.truncf %174 : vector<8x256xf32> to vector<8x256xbf16>
    %cst_45 = arith.constant dense<0.000000e+00> : vector<8x512xf32>
    %176 = tpu.matmul %175, %0, %cst_45 {dimension_numbers = #tpu.dot_dimension_numbers<[1], [0], [0], [1], [0, 0, 1, 1], [], []>} : vector<8x256xbf16>, vector<256x512xbf16>, vector<8x512xf32> -> vector<8x512xf32>
    %177 = vector.broadcast %1 : vector<1x512xf32> to vector<8x512xf32>
    %178 = arith.addf %176, %177 : vector<8x512xf32>
    %179 = vector.extract_strided_slice %178 {offsets = [0, 0], sizes = [8, 128], strides = [1, 1]} : vector<8x512xf32> to vector<8x128xf32>
    %180 = arith.negf %179 : vector<8x128xf32>
    %181 = math.exp %180 : vector<8x128xf32>
    %cst_46 = arith.constant 1.000000e+00 : f32
    %182 = vector.broadcast %cst_46 : f32 to vector<8x128xf32>
    %183 = arith.addf %182, %181 : vector<8x128xf32>
    %184 = arith.divf %182, %183 : vector<8x128xf32>
    %185 = vector.extract_strided_slice %178 {offsets = [0, 128], sizes = [8, 128], strides = [1, 1]} : vector<8x512xf32> to vector<8x128xf32>
    %186 = arith.negf %185 : vector<8x128xf32>
    %187 = math.exp %186 : vector<8x128xf32>
    %cst_47 = arith.constant 1.000000e+00 : f32
    %188 = vector.broadcast %cst_47 : f32 to vector<8x128xf32>
    %189 = arith.addf %188, %187 : vector<8x128xf32>
    %190 = arith.divf %188, %189 : vector<8x128xf32>
    %191 = vector.extract_strided_slice %178 {offsets = [0, 256], sizes = [8, 128], strides = [1, 1]} : vector<8x512xf32> to vector<8x128xf32>
    %192 = math.tanh %191 : vector<8x128xf32>
    %193 = vector.extract_strided_slice %178 {offsets = [0, 384], sizes = [8, 128], strides = [1, 1]} : vector<8x512xf32> to vector<8x128xf32>
    %194 = arith.negf %193 : vector<8x128xf32>
    %195 = math.exp %194 : vector<8x128xf32>
    %cst_48 = arith.constant 1.000000e+00 : f32
    %196 = vector.broadcast %cst_48 : f32 to vector<8x128xf32>
    %197 = arith.addf %196, %195 : vector<8x128xf32>
    %198 = arith.divf %196, %197 : vector<8x128xf32>
    %199 = arith.mulf %190, %119 : vector<8x128xf32>
    %200 = arith.mulf %184, %192 : vector<8x128xf32>
    %201 = arith.addf %199, %200 : vector<8x128xf32>
    %202 = math.tanh %201 : vector<8x128xf32>
    %203 = arith.mulf %198, %202 : vector<8x128xf32>
    %204 = tpu.concatenate %203, %151 in 1 : vector<8x128xf32>, vector<8x128xf32> -> vector<8x256xf32>
    %205 = arith.truncf %204 : vector<8x256xf32> to vector<8x256xbf16>
    %cst_49 = arith.constant dense<0.000000e+00> : vector<8x512xf32>
    %206 = tpu.matmul %205, %2, %cst_49 {dimension_numbers = #tpu.dot_dimension_numbers<[1], [0], [0], [1], [0, 0, 1, 1], [], []>} : vector<8x256xbf16>, vector<256x512xbf16>, vector<8x512xf32> -> vector<8x512xf32>
    %207 = vector.broadcast %3 : vector<1x512xf32> to vector<8x512xf32>
    %208 = arith.addf %206, %207 : vector<8x512xf32>
    %209 = vector.extract_strided_slice %208 {offsets = [0, 0], sizes = [8, 128], strides = [1, 1]} : vector<8x512xf32> to vector<8x128xf32>
    %210 = arith.negf %209 : vector<8x128xf32>
    %211 = math.exp %210 : vector<8x128xf32>
    %cst_50 = arith.constant 1.000000e+00 : f32
    %212 = vector.broadcast %cst_50 : f32 to vector<8x128xf32>
    %213 = arith.addf %212, %211 : vector<8x128xf32>
    %214 = arith.divf %212, %213 : vector<8x128xf32>
    %215 = vector.extract_strided_slice %208 {offsets = [0, 128], sizes = [8, 128], strides = [1, 1]} : vector<8x512xf32> to vector<8x128xf32>
    %216 = arith.negf %215 : vector<8x128xf32>
    %217 = math.exp %216 : vector<8x128xf32>
    %cst_51 = arith.constant 1.000000e+00 : f32
    %218 = vector.broadcast %cst_51 : f32 to vector<8x128xf32>
    %219 = arith.addf %218, %217 : vector<8x128xf32>
    %220 = arith.divf %218, %219 : vector<8x128xf32>
    %221 = vector.extract_strided_slice %208 {offsets = [0, 256], sizes = [8, 128], strides = [1, 1]} : vector<8x512xf32> to vector<8x128xf32>
    %222 = math.tanh %221 : vector<8x128xf32>
    %223 = vector.extract_strided_slice %208 {offsets = [0, 384], sizes = [8, 128], strides = [1, 1]} : vector<8x512xf32> to vector<8x128xf32>
    %224 = arith.negf %223 : vector<8x128xf32>
    %225 = math.exp %224 : vector<8x128xf32>
    %cst_52 = arith.constant 1.000000e+00 : f32
    %226 = vector.broadcast %cst_52 : f32 to vector<8x128xf32>
    %227 = arith.addf %226, %225 : vector<8x128xf32>
    %228 = arith.divf %226, %227 : vector<8x128xf32>
    %229 = arith.mulf %220, %149 : vector<8x128xf32>
    %230 = arith.mulf %214, %222 : vector<8x128xf32>
    %231 = arith.addf %229, %230 : vector<8x128xf32>
    %232 = math.tanh %231 : vector<8x128xf32>
    %233 = arith.mulf %228, %232 : vector<8x128xf32>
    %234 = arith.truncf %233 : vector<8x128xf32> to vector<8x128xbf16>
    %cst_53 = arith.constant dense<0.000000e+00> : vector<8x128xf32>
    %235 = tpu.matmul %234, %4, %cst_53 {dimension_numbers = #tpu.dot_dimension_numbers<[1], [0], [0], [1], [0, 0, 1, 1], [], []>} : vector<8x128xbf16>, vector<128x128xbf16>, vector<8x128xf32> -> vector<8x128xf32>
    %236 = vector.broadcast %5 : vector<1x128xf32> to vector<8x128xf32>
    %237 = arith.addf %235, %236 : vector<8x128xf32>
    %cst_54 = arith.constant dense<0xFF800000> : vector<8xf32>
    %238 = vector.multi_reduction <maximumf>, %237, %cst_54 [1] : vector<8x128xf32> to vector<8xf32>
    %239 = vector.shape_cast %238 : vector<8xf32> to vector<8x1xf32>
    %240 = vector.broadcast %239 : vector<8x1xf32> to vector<8x128xf32>
    %241 = arith.subf %237, %240 : vector<8x128xf32>
    %242 = math.exp %241 : vector<8x128xf32>
    %cst_55 = arith.constant dense<0.000000e+00> : vector<8xf32>
    %243 = vector.multi_reduction <add>, %242, %cst_55 [1] : vector<8x128xf32> to vector<8xf32>
    %244 = vector.shape_cast %243 : vector<8xf32> to vector<8x1xf32>
    %245 = tpu.reciprocal %244 {approx = true} : vector<8x1xf32> -> vector<8x1xf32>
    %246 = vector.broadcast %245 : vector<8x1xf32> to vector<8x128xf32>
    %247 = arith.mulf %242, %246 : vector<8x128xf32>
    %248 = arith.index_cast %c2_i32 : i32 to index
    %c0_56 = arith.constant 0 : index
    %c0_57 = arith.constant 0 : index
    %249 = vector.load %arg9[%248, %c0_56, %c0_57] : memref<6x8x128xf32, #tpu.memory_space<vmem>>, vector<1x8x128xf32>
    %250 = vector.shape_cast %249 : vector<1x8x128xf32> to vector<8x128xf32>
    %251 = vector.shape_cast %247 : vector<8x128xf32> to vector<1x8x128xf32>
    tpu.vector_store %arg9[%248, %c0_56, %c0_57], %251 {strides = array<i32>} : memref<6x8x128xf32, #tpu.memory_space<vmem>>, vector<1x8x128xf32>,
    %252 = arith.index_cast %c2_i32 : i32 to index
    %c0_58 = arith.constant 0 : index
    %c0_59 = arith.constant 0 : index
    %253 = vector.load %arg0[%252, %c0_58, %c0_59] : memref<6x8x128xbf16, #tpu.memory_space<vmem>>, vector<1x8x128xbf16>
    %254 = vector.shape_cast %253 : vector<1x8x128xbf16> to vector<8x128xbf16>
    %255 = arith.extf %254 : vector<8x128xbf16> to vector<8x128xf32>
    %c3_i32 = arith.constant 3 : i32
    %256 = tpu.concatenate %255, %203 in 1 : vector<8x128xf32>, vector<8x128xf32> -> vector<8x256xf32>
    %257 = arith.truncf %256 : vector<8x256xf32> to vector<8x256xbf16>
    %cst_60 = arith.constant dense<0.000000e+00> : vector<8x512xf32>
    %258 = tpu.matmul %257, %0, %cst_60 {dimension_numbers = #tpu.dot_dimension_numbers<[1], [0], [0], [1], [0, 0, 1, 1], [], []>} : vector<8x256xbf16>, vector<256x512xbf16>, vector<8x512xf32> -> vector<8x512xf32>
    %259 = vector.broadcast %1 : vector<1x512xf32> to vector<8x512xf32>
    %260 = arith.addf %258, %259 : vector<8x512xf32>
    %261 = vector.extract_strided_slice %260 {offsets = [0, 0], sizes = [8, 128], strides = [1, 1]} : vector<8x512xf32> to vector<8x128xf32>
    %262 = arith.negf %261 : vector<8x128xf32>
    %263 = math.exp %262 : vector<8x128xf32>
    %cst_61 = arith.constant 1.000000e+00 : f32
    %264 = vector.broadcast %cst_61 : f32 to vector<8x128xf32>
    %265 = arith.addf %264, %263 : vector<8x128xf32>
    %266 = arith.divf %264, %265 : vector<8x128xf32>
    %267 = vector.extract_strided_slice %260 {offsets = [0, 128], sizes = [8, 128], strides = [1, 1]} : vector<8x512xf32> to vector<8x128xf32>
    %268 = arith.negf %267 : vector<8x128xf32>
    %269 = math.exp %268 : vector<8x128xf32>
    %cst_62 = arith.constant 1.000000e+00 : f32
    %270 = vector.broadcast %cst_62 : f32 to vector<8x128xf32>
    %271 = arith.addf %270, %269 : vector<8x128xf32>
    %272 = arith.divf %270, %271 : vector<8x128xf32>
    %273 = vector.extract_strided_slice %260 {offsets = [0, 256], sizes = [8, 128], strides = [1, 1]} : vector<8x512xf32> to vector<8x128xf32>
    %274 = math.tanh %273 : vector<8x128xf32>
    %275 = vector.extract_strided_slice %260 {offsets = [0, 384], sizes = [8, 128], strides = [1, 1]} : vector<8x512xf32> to vector<8x128xf32>
    %276 = arith.negf %275 : vector<8x128xf32>
    %277 = math.exp %276 : vector<8x128xf32>
    %cst_63 = arith.constant 1.000000e+00 : f32
    %278 = vector.broadcast %cst_63 : f32 to vector<8x128xf32>
    %279 = arith.addf %278, %277 : vector<8x128xf32>
    %280 = arith.divf %278, %279 : vector<8x128xf32>
    %281 = arith.mulf %272, %201 : vector<8x128xf32>
    %282 = arith.mulf %266, %274 : vector<8x128xf32>
    %283 = arith.addf %281, %282 : vector<8x128xf32>
    %284 = math.tanh %283 : vector<8x128xf32>
    %285 = arith.mulf %280, %284 : vector<8x128xf32>
    %286 = tpu.concatenate %285, %233 in 1 : vector<8x128xf32>, vector<8x128xf32> -> vector<8x256xf32>
    %287 = arith.truncf %286 : vector<8x256xf32> to vector<8x256xbf16>
    %cst_64 = arith.constant dense<0.000000e+00> : vector<8x512xf32>
    %288 = tpu.matmul %287, %2, %cst_64 {dimension_numbers = #tpu.dot_dimension_numbers<[1], [0], [0], [1], [0, 0, 1, 1], [], []>} : vector<8x256xbf16>, vector<256x512xbf16>, vector<8x512xf32> -> vector<8x512xf32>
    %289 = vector.broadcast %3 : vector<1x512xf32> to vector<8x512xf32>
    %290 = arith.addf %288, %289 : vector<8x512xf32>
    %291 = vector.extract_strided_slice %290 {offsets = [0, 0], sizes = [8, 128], strides = [1, 1]} : vector<8x512xf32> to vector<8x128xf32>
    %292 = arith.negf %291 : vector<8x128xf32>
    %293 = math.exp %292 : vector<8x128xf32>
    %cst_65 = arith.constant 1.000000e+00 : f32
    %294 = vector.broadcast %cst_65 : f32 to vector<8x128xf32>
    %295 = arith.addf %294, %293 : vector<8x128xf32>
    %296 = arith.divf %294, %295 : vector<8x128xf32>
    %297 = vector.extract_strided_slice %290 {offsets = [0, 128], sizes = [8, 128], strides = [1, 1]} : vector<8x512xf32> to vector<8x128xf32>
    %298 = arith.negf %297 : vector<8x128xf32>
    %299 = math.exp %298 : vector<8x128xf32>
    %cst_66 = arith.constant 1.000000e+00 : f32
    %300 = vector.broadcast %cst_66 : f32 to vector<8x128xf32>
    %301 = arith.addf %300, %299 : vector<8x128xf32>
    %302 = arith.divf %300, %301 : vector<8x128xf32>
    %303 = vector.extract_strided_slice %290 {offsets = [0, 256], sizes = [8, 128], strides = [1, 1]} : vector<8x512xf32> to vector<8x128xf32>
    %304 = math.tanh %303 : vector<8x128xf32>
    %305 = vector.extract_strided_slice %290 {offsets = [0, 384], sizes = [8, 128], strides = [1, 1]} : vector<8x512xf32> to vector<8x128xf32>
    %306 = arith.negf %305 : vector<8x128xf32>
    %307 = math.exp %306 : vector<8x128xf32>
    %cst_67 = arith.constant 1.000000e+00 : f32
    %308 = vector.broadcast %cst_67 : f32 to vector<8x128xf32>
    %309 = arith.addf %308, %307 : vector<8x128xf32>
    %310 = arith.divf %308, %309 : vector<8x128xf32>
    %311 = arith.mulf %302, %231 : vector<8x128xf32>
    %312 = arith.mulf %296, %304 : vector<8x128xf32>
    %313 = arith.addf %311, %312 : vector<8x128xf32>
    %314 = math.tanh %313 : vector<8x128xf32>
    %315 = arith.mulf %310, %314 : vector<8x128xf32>
    %316 = arith.truncf %315 : vector<8x128xf32> to vector<8x128xbf16>
    %cst_68 = arith.constant dense<0.000000e+00> : vector<8x128xf32>
    %317 = tpu.matmul %316, %4, %cst_68 {dimension_numbers = #tpu.dot_dimension_numbers<[1], [0], [0], [1], [0, 0, 1, 1], [], []>} : vector<8x128xbf16>, vector<128x128xbf16>, vector<8x128xf32> -> vector<8x128xf32>
    %318 = vector.broadcast %5 : vector<1x128xf32> to vector<8x128xf32>
    %319 = arith.addf %317, %318 : vector<8x128xf32>
    %cst_69 = arith.constant dense<0xFF800000> : vector<8xf32>
    %320 = vector.multi_reduction <maximumf>, %319, %cst_69 [1] : vector<8x128xf32> to vector<8xf32>
    %321 = vector.shape_cast %320 : vector<8xf32> to vector<8x1xf32>
    %322 = vector.broadcast %321 : vector<8x1xf32> to vector<8x128xf32>
    %323 = arith.subf %319, %322 : vector<8x128xf32>
    %324 = math.exp %323 : vector<8x128xf32>
    %cst_70 = arith.constant dense<0.000000e+00> : vector<8xf32>
    %325 = vector.multi_reduction <add>, %324, %cst_70 [1] : vector<8x128xf32> to vector<8xf32>
    %326 = vector.shape_cast %325 : vector<8xf32> to vector<8x1xf32>
    %327 = tpu.reciprocal %326 {approx = true} : vector<8x1xf32> -> vector<8x1xf32>
    %328 = vector.broadcast %327 : vector<8x1xf32> to vector<8x128xf32>
    %329 = arith.mulf %324, %328 : vector<8x128xf32>
    %330 = arith.index_cast %c3_i32 : i32 to index
    %c0_71 = arith.constant 0 : index
    %c0_72 = arith.constant 0 : index
    %331 = vector.load %arg9[%330, %c0_71, %c0_72] : memref<6x8x128xf32, #tpu.memory_space<vmem>>, vector<1x8x128xf32>
    %332 = vector.shape_cast %331 : vector<1x8x128xf32> to vector<8x128xf32>
    %333 = vector.shape_cast %329 : vector<8x128xf32> to vector<1x8x128xf32>
    tpu.vector_store %arg9[%330, %c0_71, %c0_72], %333 {strides = array<i32>} : memref<6x8x128xf32, #tpu.memory_space<vmem>>, vector<1x8x128xf32>,
    %334 = arith.index_cast %c3_i32 : i32 to index
    %c0_73 = arith.constant 0 : index
    %c0_74 = arith.constant 0 : index
    %335 = vector.load %arg0[%334, %c0_73, %c0_74] : memref<6x8x128xbf16, #tpu.memory_space<vmem>>, vector<1x8x128xbf16>
    %336 = vector.shape_cast %335 : vector<1x8x128xbf16> to vector<8x128xbf16>
    %337 = arith.extf %336 : vector<8x128xbf16> to vector<8x128xf32>
    %c4_i32 = arith.constant 4 : i32
    %338 = tpu.concatenate %337, %285 in 1 : vector<8x128xf32>, vector<8x128xf32> -> vector<8x256xf32>
    %339 = arith.truncf %338 : vector<8x256xf32> to vector<8x256xbf16>
    %cst_75 = arith.constant dense<0.000000e+00> : vector<8x512xf32>
    %340 = tpu.matmul %339, %0, %cst_75 {dimension_numbers = #tpu.dot_dimension_numbers<[1], [0], [0], [1], [0, 0, 1, 1], [], []>} : vector<8x256xbf16>, vector<256x512xbf16>, vector<8x512xf32> -> vector<8x512xf32>
    %341 = vector.broadcast %1 : vector<1x512xf32> to vector<8x512xf32>
    %342 = arith.addf %340, %341 : vector<8x512xf32>
    %343 = vector.extract_strided_slice %342 {offsets = [0, 0], sizes = [8, 128], strides = [1, 1]} : vector<8x512xf32> to vector<8x128xf32>
    %344 = arith.negf %343 : vector<8x128xf32>
    %345 = math.exp %344 : vector<8x128xf32>
    %cst_76 = arith.constant 1.000000e+00 : f32
    %346 = vector.broadcast %cst_76 : f32 to vector<8x128xf32>
    %347 = arith.addf %346, %345 : vector<8x128xf32>
    %348 = arith.divf %346, %347 : vector<8x128xf32>
    %349 = vector.extract_strided_slice %342 {offsets = [0, 128], sizes = [8, 128], strides = [1, 1]} : vector<8x512xf32> to vector<8x128xf32>
    %350 = arith.negf %349 : vector<8x128xf32>
    %351 = math.exp %350 : vector<8x128xf32>
    %cst_77 = arith.constant 1.000000e+00 : f32
    %352 = vector.broadcast %cst_77 : f32 to vector<8x128xf32>
    %353 = arith.addf %352, %351 : vector<8x128xf32>
    %354 = arith.divf %352, %353 : vector<8x128xf32>
    %355 = vector.extract_strided_slice %342 {offsets = [0, 256], sizes = [8, 128], strides = [1, 1]} : vector<8x512xf32> to vector<8x128xf32>
    %356 = math.tanh %355 : vector<8x128xf32>
    %357 = vector.extract_strided_slice %342 {offsets = [0, 384], sizes = [8, 128], strides = [1, 1]} : vector<8x512xf32> to vector<8x128xf32>
    %358 = arith.negf %357 : vector<8x128xf32>
    %359 = math.exp %358 : vector<8x128xf32>
    %cst_78 = arith.constant 1.000000e+00 : f32
    %360 = vector.broadcast %cst_78 : f32 to vector<8x128xf32>
    %361 = arith.addf %360, %359 : vector<8x128xf32>
    %362 = arith.divf %360, %361 : vector<8x128xf32>
    %363 = arith.mulf %354, %283 : vector<8x128xf32>
    %364 = arith.mulf %348, %356 : vector<8x128xf32>
    %365 = arith.addf %363, %364 : vector<8x128xf32>
    %366 = math.tanh %365 : vector<8x128xf32>
    %367 = arith.mulf %362, %366 : vector<8x128xf32>
    %368 = tpu.concatenate %367, %315 in 1 : vector<8x128xf32>, vector<8x128xf32> -> vector<8x256xf32>
    %369 = arith.truncf %368 : vector<8x256xf32> to vector<8x256xbf16>
    %cst_79 = arith.constant dense<0.000000e+00> : vector<8x512xf32>
    %370 = tpu.matmul %369, %2, %cst_79 {dimension_numbers = #tpu.dot_dimension_numbers<[1], [0], [0], [1], [0, 0, 1, 1], [], []>} : vector<8x256xbf16>, vector<256x512xbf16>, vector<8x512xf32> -> vector<8x512xf32>
    %371 = vector.broadcast %3 : vector<1x512xf32> to vector<8x512xf32>
    %372 = arith.addf %370, %371 : vector<8x512xf32>
    %373 = vector.extract_strided_slice %372 {offsets = [0, 0], sizes = [8, 128], strides = [1, 1]} : vector<8x512xf32> to vector<8x128xf32>
    %374 = arith.negf %373 : vector<8x128xf32>
    %375 = math.exp %374 : vector<8x128xf32>
    %cst_80 = arith.constant 1.000000e+00 : f32
    %376 = vector.broadcast %cst_80 : f32 to vector<8x128xf32>
    %377 = arith.addf %376, %375 : vector<8x128xf32>
    %378 = arith.divf %376, %377 : vector<8x128xf32>
    %379 = vector.extract_strided_slice %372 {offsets = [0, 128], sizes = [8, 128], strides = [1, 1]} : vector<8x512xf32> to vector<8x128xf32>
    %380 = arith.negf %379 : vector<8x128xf32>
    %381 = math.exp %380 : vector<8x128xf32>
    %cst_81 = arith.constant 1.000000e+00 : f32
    %382 = vector.broadcast %cst_81 : f32 to vector<8x128xf32>
    %383 = arith.addf %382, %381 : vector<8x128xf32>
    %384 = arith.divf %382, %383 : vector<8x128xf32>
    %385 = vector.extract_strided_slice %372 {offsets = [0, 256], sizes = [8, 128], strides = [1, 1]} : vector<8x512xf32> to vector<8x128xf32>
    %386 = math.tanh %385 : vector<8x128xf32>
    %387 = vector.extract_strided_slice %372 {offsets = [0, 384], sizes = [8, 128], strides = [1, 1]} : vector<8x512xf32> to vector<8x128xf32>
    %388 = arith.negf %387 : vector<8x128xf32>
    %389 = math.exp %388 : vector<8x128xf32>
    %cst_82 = arith.constant 1.000000e+00 : f32
    %390 = vector.broadcast %cst_82 : f32 to vector<8x128xf32>
    %391 = arith.addf %390, %389 : vector<8x128xf32>
    %392 = arith.divf %390, %391 : vector<8x128xf32>
    %393 = arith.mulf %384, %313 : vector<8x128xf32>
    %394 = arith.mulf %378, %386 : vector<8x128xf32>
    %395 = arith.addf %393, %394 : vector<8x128xf32>
    %396 = math.tanh %395 : vector<8x128xf32>
    %397 = arith.mulf %392, %396 : vector<8x128xf32>
    %398 = arith.truncf %397 : vector<8x128xf32> to vector<8x128xbf16>
    %cst_83 = arith.constant dense<0.000000e+00> : vector<8x128xf32>
    %399 = tpu.matmul %398, %4, %cst_83 {dimension_numbers = #tpu.dot_dimension_numbers<[1], [0], [0], [1], [0, 0, 1, 1], [], []>} : vector<8x128xbf16>, vector<128x128xbf16>, vector<8x128xf32> -> vector<8x128xf32>
    %400 = vector.broadcast %5 : vector<1x128xf32> to vector<8x128xf32>
    %401 = arith.addf %399, %400 : vector<8x128xf32>
    %cst_84 = arith.constant dense<0xFF800000> : vector<8xf32>
    %402 = vector.multi_reduction <maximumf>, %401, %cst_84 [1] : vector<8x128xf32> to vector<8xf32>
    %403 = vector.shape_cast %402 : vector<8xf32> to vector<8x1xf32>
    %404 = vector.broadcast %403 : vector<8x1xf32> to vector<8x128xf32>
    %405 = arith.subf %401, %404 : vector<8x128xf32>
    %406 = math.exp %405 : vector<8x128xf32>
    %cst_85 = arith.constant dense<0.000000e+00> : vector<8xf32>
    %407 = vector.multi_reduction <add>, %406, %cst_85 [1] : vector<8x128xf32> to vector<8xf32>
    %408 = vector.shape_cast %407 : vector<8xf32> to vector<8x1xf32>
    %409 = tpu.reciprocal %408 {approx = true} : vector<8x1xf32> -> vector<8x1xf32>
    %410 = vector.broadcast %409 : vector<8x1xf32> to vector<8x128xf32>
    %411 = arith.mulf %406, %410 : vector<8x128xf32>
    %412 = arith.index_cast %c4_i32 : i32 to index
    %c0_86 = arith.constant 0 : index
    %c0_87 = arith.constant 0 : index
    %413 = vector.load %arg9[%412, %c0_86, %c0_87] : memref<6x8x128xf32, #tpu.memory_space<vmem>>, vector<1x8x128xf32>
    %414 = vector.shape_cast %413 : vector<1x8x128xf32> to vector<8x128xf32>
    %415 = vector.shape_cast %411 : vector<8x128xf32> to vector<1x8x128xf32>
    tpu.vector_store %arg9[%412, %c0_86, %c0_87], %415 {strides = array<i32>} : memref<6x8x128xf32, #tpu.memory_space<vmem>>, vector<1x8x128xf32>,
    %416 = arith.index_cast %c4_i32 : i32 to index
    %c0_88 = arith.constant 0 : index
    %c0_89 = arith.constant 0 : index
    %417 = vector.load %arg0[%416, %c0_88, %c0_89] : memref<6x8x128xbf16, #tpu.memory_space<vmem>>, vector<1x8x128xbf16>
    %418 = vector.shape_cast %417 : vector<1x8x128xbf16> to vector<8x128xbf16>
    %419 = arith.extf %418 : vector<8x128xbf16> to vector<8x128xf32>
    %c5_i32 = arith.constant 5 : i32
    %420 = tpu.concatenate %419, %367 in 1 : vector<8x128xf32>, vector<8x128xf32> -> vector<8x256xf32>
    %421 = arith.truncf %420 : vector<8x256xf32> to vector<8x256xbf16>
    %cst_90 = arith.constant dense<0.000000e+00> : vector<8x512xf32>
    %422 = tpu.matmul %421, %0, %cst_90 {dimension_numbers = #tpu.dot_dimension_numbers<[1], [0], [0], [1], [0, 0, 1, 1], [], []>} : vector<8x256xbf16>, vector<256x512xbf16>, vector<8x512xf32> -> vector<8x512xf32>
    %423 = vector.broadcast %1 : vector<1x512xf32> to vector<8x512xf32>
    %424 = arith.addf %422, %423 : vector<8x512xf32>
    %425 = vector.extract_strided_slice %424 {offsets = [0, 0], sizes = [8, 128], strides = [1, 1]} : vector<8x512xf32> to vector<8x128xf32>
    %426 = arith.negf %425 : vector<8x128xf32>
    %427 = math.exp %426 : vector<8x128xf32>
    %cst_91 = arith.constant 1.000000e+00 : f32
    %428 = vector.broadcast %cst_91 : f32 to vector<8x128xf32>
    %429 = arith.addf %428, %427 : vector<8x128xf32>
    %430 = arith.divf %428, %429 : vector<8x128xf32>
    %431 = vector.extract_strided_slice %424 {offsets = [0, 128], sizes = [8, 128], strides = [1, 1]} : vector<8x512xf32> to vector<8x128xf32>
    %432 = arith.negf %431 : vector<8x128xf32>
    %433 = math.exp %432 : vector<8x128xf32>
    %cst_92 = arith.constant 1.000000e+00 : f32
    %434 = vector.broadcast %cst_92 : f32 to vector<8x128xf32>
    %435 = arith.addf %434, %433 : vector<8x128xf32>
    %436 = arith.divf %434, %435 : vector<8x128xf32>
    %437 = vector.extract_strided_slice %424 {offsets = [0, 256], sizes = [8, 128], strides = [1, 1]} : vector<8x512xf32> to vector<8x128xf32>
    %438 = math.tanh %437 : vector<8x128xf32>
    %439 = vector.extract_strided_slice %424 {offsets = [0, 384], sizes = [8, 128], strides = [1, 1]} : vector<8x512xf32> to vector<8x128xf32>
    %440 = arith.negf %439 : vector<8x128xf32>
    %441 = math.exp %440 : vector<8x128xf32>
    %cst_93 = arith.constant 1.000000e+00 : f32
    %442 = vector.broadcast %cst_93 : f32 to vector<8x128xf32>
    %443 = arith.addf %442, %441 : vector<8x128xf32>
    %444 = arith.divf %442, %443 : vector<8x128xf32>
    %445 = arith.mulf %436, %365 : vector<8x128xf32>
    %446 = arith.mulf %430, %438 : vector<8x128xf32>
    %447 = arith.addf %445, %446 : vector<8x128xf32>
    %448 = math.tanh %447 : vector<8x128xf32>
    %449 = arith.mulf %444, %448 : vector<8x128xf32>
    %450 = tpu.concatenate %449, %397 in 1 : vector<8x128xf32>, vector<8x128xf32> -> vector<8x256xf32>
    %451 = arith.truncf %450 : vector<8x256xf32> to vector<8x256xbf16>
    %cst_94 = arith.constant dense<0.000000e+00> : vector<8x512xf32>
    %452 = tpu.matmul %451, %2, %cst_94 {dimension_numbers = #tpu.dot_dimension_numbers<[1], [0], [0], [1], [0, 0, 1, 1], [], []>} : vector<8x256xbf16>, vector<256x512xbf16>, vector<8x512xf32> -> vector<8x512xf32>
    %453 = vector.broadcast %3 : vector<1x512xf32> to vector<8x512xf32>
    %454 = arith.addf %452, %453 : vector<8x512xf32>
    %455 = vector.extract_strided_slice %454 {offsets = [0, 0], sizes = [8, 128], strides = [1, 1]} : vector<8x512xf32> to vector<8x128xf32>
    %456 = arith.negf %455 : vector<8x128xf32>
    %457 = math.exp %456 : vector<8x128xf32>
    %cst_95 = arith.constant 1.000000e+00 : f32
    %458 = vector.broadcast %cst_95 : f32 to vector<8x128xf32>
    %459 = arith.addf %458, %457 : vector<8x128xf32>
    %460 = arith.divf %458, %459 : vector<8x128xf32>
    %461 = vector.extract_strided_slice %454 {offsets = [0, 128], sizes = [8, 128], strides = [1, 1]} : vector<8x512xf32> to vector<8x128xf32>
    %462 = arith.negf %461 : vector<8x128xf32>
    %463 = math.exp %462 : vector<8x128xf32>
    %cst_96 = arith.constant 1.000000e+00 : f32
    %464 = vector.broadcast %cst_96 : f32 to vector<8x128xf32>
    %465 = arith.addf %464, %463 : vector<8x128xf32>
    %466 = arith.divf %464, %465 : vector<8x128xf32>
    %467 = vector.extract_strided_slice %454 {offsets = [0, 256], sizes = [8, 128], strides = [1, 1]} : vector<8x512xf32> to vector<8x128xf32>
    %468 = math.tanh %467 : vector<8x128xf32>
    %469 = vector.extract_strided_slice %454 {offsets = [0, 384], sizes = [8, 128], strides = [1, 1]} : vector<8x512xf32> to vector<8x128xf32>
    %470 = arith.negf %469 : vector<8x128xf32>
    %471 = math.exp %470 : vector<8x128xf32>
    %cst_97 = arith.constant 1.000000e+00 : f32
    %472 = vector.broadcast %cst_97 : f32 to vector<8x128xf32>
    %473 = arith.addf %472, %471 : vector<8x128xf32>
    %474 = arith.divf %472, %473 : vector<8x128xf32>
    %475 = arith.mulf %466, %395 : vector<8x128xf32>
    %476 = arith.mulf %460, %468 : vector<8x128xf32>
    %477 = arith.addf %475, %476 : vector<8x128xf32>
    %478 = math.tanh %477 : vector<8x128xf32>
    %479 = arith.mulf %474, %478 : vector<8x128xf32>
    %480 = arith.truncf %479 : vector<8x128xf32> to vector<8x128xbf16>
    %cst_98 = arith.constant dense<0.000000e+00> : vector<8x128xf32>
    %481 = tpu.matmul %480, %4, %cst_98 {dimension_numbers = #tpu.dot_dimension_numbers<[1], [0], [0], [1], [0, 0, 1, 1], [], []>} : vector<8x128xbf16>, vector<128x128xbf16>, vector<8x128xf32> -> vector<8x128xf32>
    %482 = vector.broadcast %5 : vector<1x128xf32> to vector<8x128xf32>
    %483 = arith.addf %481, %482 : vector<8x128xf32>
    %cst_99 = arith.constant dense<0xFF800000> : vector<8xf32>
    %484 = vector.multi_reduction <maximumf>, %483, %cst_99 [1] : vector<8x128xf32> to vector<8xf32>
    %485 = vector.shape_cast %484 : vector<8xf32> to vector<8x1xf32>
    %486 = vector.broadcast %485 : vector<8x1xf32> to vector<8x128xf32>
    %487 = arith.subf %483, %486 : vector<8x128xf32>
    %488 = math.exp %487 : vector<8x128xf32>
    %cst_100 = arith.constant dense<0.000000e+00> : vector<8xf32>
    %489 = vector.multi_reduction <add>, %488, %cst_100 [1] : vector<8x128xf32> to vector<8xf32>
    %490 = vector.shape_cast %489 : vector<8xf32> to vector<8x1xf32>
    %491 = tpu.reciprocal %490 {approx = true} : vector<8x1xf32> -> vector<8x1xf32>
    %492 = vector.broadcast %491 : vector<8x1xf32> to vector<8x128xf32>
    %493 = arith.mulf %488, %492 : vector<8x128xf32>
    %494 = arith.index_cast %c5_i32 : i32 to index
    %c0_101 = arith.constant 0 : index
    %c0_102 = arith.constant 0 : index
    %495 = vector.load %arg9[%494, %c0_101, %c0_102] : memref<6x8x128xf32, #tpu.memory_space<vmem>>, vector<1x8x128xf32>
    %496 = vector.shape_cast %495 : vector<1x8x128xf32> to vector<8x128xf32>
    %497 = vector.shape_cast %493 : vector<8x128xf32> to vector<1x8x128xf32>
    tpu.vector_store %arg9[%494, %c0_101, %c0_102], %497 {strides = array<i32>} : memref<6x8x128xf32, #tpu.memory_space<vmem>>, vector<1x8x128xf32>,
    %498 = arith.index_cast %c5_i32 : i32 to index
    %c0_103 = arith.constant 0 : index
    %c0_104 = arith.constant 0 : index
    %499 = vector.load %arg0[%498, %c0_103, %c0_104] : memref<6x8x128xbf16, #tpu.memory_space<vmem>>, vector<1x8x128xbf16>
    %500 = vector.shape_cast %499 : vector<1x8x128xbf16> to vector<8x128xbf16>
    %501 = arith.extf %500 : vector<8x128xbf16> to vector<8x128xf32>
    %c6_i32 = arith.constant 6 : i32
    %c0_105 = arith.constant 0 : index
    %c0_106 = arith.constant 0 : index
    %502 = vector.load %arg10[%c0_105, %c0_106] : memref<8x128xf32, #tpu.memory_space<vmem>>, vector<8x128xf32>
    tpu.vector_store %arg10[%c0_105, %c0_106], %449 {strides = array<i32>} : memref<8x128xf32, #tpu.memory_space<vmem>>, vector<8x128xf32>,
    return
  }
}

</mosaic_0001>

<llo_original>
// kernel: tpu_custom_call.1
$region0: #{tpu_custom_call.1}
  #allocation0 [shape = 'u32[]', space=smem, size = 0x4, offset = 0x4, fixed_abs, tag = 'smem constant byte address 0x4 - core index']
  #allocation1 [shape = 'u32[72,128]{1,0:T(1,128)}', space=vmem, size = 0x9000, scoped, tag = 'internal scratch']
  %s0 = inlined_call_operand.hbm [shape: bf16[6,8,128], index: 0, kind: input, shape index: {}]
  %s1 = inlined_call_operand.hbm [shape: bf16[8,128], index: 1, kind: input, shape index: {}]
  %s2 = inlined_call_operand.hbm [shape: f32[8,128], index: 2, kind: input, shape index: {}]
  %s3 = inlined_call_operand.hbm [shape: bf16[256,512], index: 3, kind: input, shape index: {}]
  %s4 = inlined_call_operand.hbm [shape: f32[1,512], index: 4, kind: input, shape index: {}]
  %s5 = inlined_call_operand.hbm [shape: bf16[256,512], index: 5, kind: input, shape index: {}]
  %s6 = inlined_call_operand.vmem [shape: f32[1,512], index: 6, kind: input, shape index: {}]
  %s7 = inlined_call_operand.hbm [shape: bf16[128,128], index: 7, kind: input, shape index: {}]
  %s8 = inlined_call_operand.vmem [shape: f32[1,128], index: 8, kind: input, shape index: {}]
  %s9 = inlined_call_operand.hbm [shape: f32[6,8,128], index: 9, kind: output, shape index: {0}]
  %s10 = inlined_call_operand.hbm [shape: f32[8,128], index: 10, kind: output, shape index: {1}]
  %11 = xla_tuple %s9, %s10
  %s12 = sld [smem:[#allocation0]]
  $region82: #{tpu_custom_call.1} parent=0
    _
  %s14 = ssub.s32 1, %s12
  %s15 = scalar_select 0, %s14, %s12
  $region1: #{tpu_custom_call.1} parent=0
    #allocation2 [shape = 'u8[12288]{0}', space=vmem, size = 0x3000, scoped, tag = 'input window, operand 0, single buffered']
    #allocation3 [shape = 's32[1]{0}', space=sflag, size = 0x4, scoped, tag = 'scoped memory for tpu_custom_call.1']
    #allocation4 [shape = 's32[1]{0}', space=sflag, size = 0x4, scoped, tag = 'scoped memory for tpu_custom_call.1']
    #allocation5 [shape = 'u8[2048]{0}', space=vmem, size = 0x800, scoped, tag = 'input window, operand 1, single buffered']
    #allocation6 [shape = 's32[1]{0}', space=sflag, size = 0x4, scoped, tag = 'scoped memory for tpu_custom_call.1']
    #allocation7 [shape = 'u8[4096]{0}', space=vmem, size = 0x1000, scoped, tag = 'input window, operand 2, single buffered']
    #allocation8 [shape = 'u8[262144]{0}', space=vmem, size = 0x40000, scoped, tag = 'input window, operand 3, single buffered']
    #allocation9 [shape = 's32[1]{0}', space=sflag, size = 0x4, scoped, tag = 'scoped memory for tpu_custom_call.1']
    #allocation10 [shape = 'u8[2048]{0}', space=vmem, size = 0x800, scoped, tag = 'input window, operand 4, single buffered']
    #allocation11 [shape = 'u8[262144]{0}', space=vmem, size = 0x40000, scoped, tag = 'input window, operand 5, single buffered']
    #allocation12 [shape = 's32[1]{0}', space=sflag, size = 0x4, scoped, tag = 'scoped memory for tpu_custom_call.1']
    #allocation13 [shape = 'u8[32768]{0}', space=vmem, size = 0x8000, scoped, tag = 'input window, operand 7, single buffered']
    #allocation14 [shape = 'u8[24576]{0}', space=vmem, size = 0x6000, scoped, tag = 'output window, operand 0, single buffered']
    #allocation15 [shape = 'u8[4096]{0}', space=vmem, size = 0x1000, scoped, tag = 'output window, operand 1, single buffered']
    #allocation16 [shape = 's32[1]{0}', space=sflag, size = 0x4, scoped, tag = 'scoped memory for tpu_custom_call.1']
    %16 = vsyncpa [#allocation3], 0
    %17 = vsyncpa [#allocation6], 0
    %18 = vsyncpa [#allocation9], 0
    %19 = vsyncpa [#allocation12], 0
    %20 = vsyncpa [#allocation4], 0
    %21 = vsyncpa [#allocation16], 0
    // Predicated region
    $region2: #{tpu_custom_call.1} parent=1 // pred_check
      _
    $region3: #{tpu_custom_call.1} parent=1 // pred_check_branch
      %23 = sbr.rel (0) target = $region5
    $region4: #{tpu_custom_call.1} parent=1 // pred_region
      %25 = vsyncadd [#allocation3], 0
      %s26 = sshll.u32 %s0, 4
      %s27 = int_to_ptr.hbm [resolvable:$true] %s26
      %s28 = sshll.u32 [#allocation2], 4
      %s29 = int_to_ptr.vmem [resolvable:$true] %s28
      %34 = dma.hbm_to_vmem [thread:$0]  %s27, 384, %s29, [#allocation3], 64, 64, 4
    $region5: #{tpu_custom_call.1} parent=1 // pred_fallthru
      _
    // Predicated region
    $region6: #{tpu_custom_call.1} parent=1 // pred_check
      _
    $region7: #{tpu_custom_call.1} parent=1 // pred_check_branch
      %36 = sbr.rel (0) target = $region9
    $region8: #{tpu_custom_call.1} parent=1 // pred_region
      %38 = vsyncadd [#allocation6], 0
      %s40 = sshll.u32 %s1, 4
      %s41 = int_to_ptr.hbm [resolvable:$true] %s40
      %s42 = sshll.u32 [#allocation5], 4
      %s43 = int_to_ptr.vmem [resolvable:$true] %s42
      %45 = dma.hbm_to_vmem [thread:$0]  %s41, 64, %s43, [#allocation6]
    $region9: #{tpu_custom_call.1} parent=1 // pred_fallthru
      _
    // Predicated region
    $region10: #{tpu_custom_call.1} parent=1 // pred_check
      _
    $region11: #{tpu_custom_call.1} parent=1 // pred_check_branch
      %47 = sbr.rel (0) target = $region13
    $region12: #{tpu_custom_call.1} parent=1 // pred_region
      %49 = vsyncadd [#allocation6], 0
      %s51 = sshll.u32 %s2, 4
      %s52 = int_to_ptr.hbm [resolvable:$true] %s51
      %s53 = sshll.u32 [#allocation7], 4
      %s54 = int_to_ptr.vmem [resolvable:$true] %s53
      %56 = dma.hbm_to_vmem [thread:$0]  %s52, 128, %s54, [#allocation6]
    $region13: #{tpu_custom_call.1} parent=1 // pred_fallthru
      _
    // Predicated region
    $region14: #{tpu_custom_call.1} parent=1 // pred_check
      _
    $region15: #{tpu_custom_call.1} parent=1 // pred_check_branch
      %58 = sbr.rel (0) target = $region17
    $region16: #{tpu_custom_call.1} parent=1 // pred_region
      %60 = vsyncadd [#allocation9], 0
      %s61 = sshll.u32 %s3, 4
      %s62 = int_to_ptr.hbm [resolvable:$true] %s61
      %s63 = sshll.u32 [#allocation8], 4
      %s64 = int_to_ptr.vmem [resolvable:$true] %s63
      %69 = dma.hbm_to_vmem [thread:$0]  %s62, 8192, %s64, [#allocation9], 256, 256, 16
    $region17: #{tpu_custom_call.1} parent=1 // pred_fallthru
      _
    // Predicated region
    $region18: #{tpu_custom_call.1} parent=1 // pred_check
      _
    $region19: #{tpu_custom_call.1} parent=1 // pred_check_branch
      %71 = sbr.rel (0) target = $region21
    $region20: #{tpu_custom_call.1} parent=1 // pred_region
      %73 = vsyncadd [#allocation9], 0
      %s75 = sshll.u32 %s4, 4
      %s76 = int_to_ptr.hbm [resolvable:$true] %s75
      %s77 = sshll.u32 [#allocation10], 4
      %s78 = int_to_ptr.vmem [resolvable:$true] %s77
      %80 = dma.hbm_to_vmem [thread:$0]  %s76, 64, %s78, [#allocation9]
    $region21: #{tpu_custom_call.1} parent=1 // pred_fallthru
      _
    // Predicated region
    $region22: #{tpu_custom_call.1} parent=1 // pred_check
      _
    $region23: #{tpu_custom_call.1} parent=1 // pred_check_branch
      %82 = sbr.rel (0) target = $region25
    $region24: #{tpu_custom_call.1} parent=1 // pred_region
      %84 = vsyncadd [#allocation12], 0
      %s85 = sshll.u32 %s5, 4
      %s86 = int_to_ptr.hbm [resolvable:$true] %s85
      %s87 = sshll.u32 [#allocation11], 4
      %s88 = int_to_ptr.vmem [resolvable:$true] %s87
      %93 = dma.hbm_to_vmem [thread:$0]  %s86, 8192, %s88, [#allocation12], 256, 256, 16
    $region25: #{tpu_custom_call.1} parent=1 // pred_fallthru
      _
    // Predicated region
    $region26: #{tpu_custom_call.1} parent=1 // pred_check
      _
    $region27: #{tpu_custom_call.1} parent=1 // pred_check_branch
      %95 = sbr.rel (0) target = $region29
    $region28: #{tpu_custom_call.1} parent=1 // pred_region
      _
    $region29: #{tpu_custom_call.1} parent=1 // pred_fallthru
      _
    // Predicated region
    $region30: #{tpu_custom_call.1} parent=1 // pred_check
      _
    $region31: #{tpu_custom_call.1} parent=1 // pred_check_branch
      %97 = sbr.rel (0) target = $region33
    $region32: #{tpu_custom_call.1} parent=1 // pred_region
      %99 = vsyncadd [#allocation12], 0
      %s100 = sshll.u32 %s7, 4
      %s101 = int_to_ptr.hbm [resolvable:$true] %s100
      %s102 = sshll.u32 [#allocation13], 4
      %s103 = int_to_ptr.vmem [resolvable:$true] %s102
      %108 = dma.hbm_to_vmem [thread:$0]  %s101, 1024, %s103, [#allocation12], 64, 64, 4
    $region33: #{tpu_custom_call.1} parent=1 // pred_fallthru
      _
    // Predicated region
    $region34: #{tpu_custom_call.1} parent=1 // pred_check
      _
    $region35: #{tpu_custom_call.1} parent=1 // pred_check_branch
      %110 = sbr.rel (0) target = $region37
    $region36: #{tpu_custom_call.1} parent=1 // pred_region
      _
    $region37: #{tpu_custom_call.1} parent=1 // pred_fallthru
      _
    // Predicated region
    $region38: #{tpu_custom_call.1} parent=1 // pred_check
      _
    $region39: #{tpu_custom_call.1} parent=1 // pred_check_branch
      %112 = sbr.rel (0) target = $region41
    $region40: #{tpu_custom_call.1} parent=1 // pred_region
      %114 = dma.done [#allocation3], 384
    $region41: #{tpu_custom_call.1} parent=1 // pred_fallthru
      _
    // Predicated region
    $region42: #{tpu_custom_call.1} parent=1 // pred_check
      _
    $region43: #{tpu_custom_call.1} parent=1 // pred_check_branch
      %116 = sbr.rel (0) target = $region45
    $region44: #{tpu_custom_call.1} parent=1 // pred_region
      %118 = dma.done [#allocation6], 64
    $region45: #{tpu_custom_call.1} parent=1 // pred_fallthru
      _
    // Predicated region
    $region46: #{tpu_custom_call.1} parent=1 // pred_check
      _
    $region47: #{tpu_custom_call.1} parent=1 // pred_check_branch
      %120 = sbr.rel (0) target = $region49
    $region48: #{tpu_custom_call.1} parent=1 // pred_region
      %122 = dma.done [#allocation6], 128
    $region49: #{tpu_custom_call.1} parent=1 // pred_fallthru
      _
    // Predicated region
    $region50: #{tpu_custom_call.1} parent=1 // pred_check
      _
    $region51: #{tpu_custom_call.1} parent=1 // pred_check_branch
      %124 = sbr.rel (0) target = $region53
    $region52: #{tpu_custom_call.1} parent=1 // pred_region
      %126 = dma.done [#allocation9], 8192
    $region53: #{tpu_custom_call.1} parent=1 // pred_fallthru
      _
    // Predicated region
    $region54: #{tpu_custom_call.1} parent=1 // pred_check
      _
    $region55: #{tpu_custom_call.1} parent=1 // pred_check_branch
      %128 = sbr.rel (0) target = $region57
    $region56: #{tpu_custom_call.1} parent=1 // pred_region
      %130 = dma.done [#allocation9], 64
    $region57: #{tpu_custom_call.1} parent=1 // pred_fallthru
      _
    // Predicated region
    $region58: #{tpu_custom_call.1} parent=1 // pred_check
      _
    $region59: #{tpu_custom_call.1} parent=1 // pred_check_branch
      %132 = sbr.rel (0) target = $region61
    $region60: #{tpu_custom_call.1} parent=1 // pred_region
      %134 = dma.done [#allocation12], 8192
    $region61: #{tpu_custom_call.1} parent=1 // pred_fallthru
      _
    // Predicated region
    $region62: #{tpu_custom_call.1} parent=1 // pred_check
      _
    $region63: #{tpu_custom_call.1} parent=1 // pred_check_branch
      %136 = sbr.rel (0) target = $region65
    $region64: #{tpu_custom_call.1} parent=1 // pred_region
      %138 = dma.done [#allocation12], 1024
    $region65: #{tpu_custom_call.1} parent=1 // pred_fallthru
      _
    %v139 = vld [vmem:[#allocation8] sm:$0xff]
    %v140 = vld [vmem:[#allocation8 + $0x8] sm:$0xff]
    %v141 = vld [vmem:[#allocation8 + $0x10] sm:$0xff]
    %v142 = vld [vmem:[#allocation8 + $0x18] sm:$0xff]
    %v143 = vld [vmem:[#allocation8 + $0x20] sm:$0xff]
    %v144 = vld [vmem:[#allocation8 + $0x28] sm:$0xff]
    %v145 = vld [vmem:[#allocation8 + $0x30] sm:$0xff]
    %v146 = vld [vmem:[#allocation8 + $0x38] sm:$0xff]
    %v147 = vld [vmem:[#allocation8 + $0x40] sm:$0xff]
    %v148 = vld [vmem:[#allocation8 + $0x48] sm:$0xff]
    %v149 = vld [vmem:[#allocation8 + $0x50] sm:$0xff]
    %v150 = vld [vmem:[#allocation8 + $0x58] sm:$0xff]
    %v151 = vld [vmem:[#allocation8 + $0x60] sm:$0xff]
    %v152 = vld [vmem:[#allocation8 + $0x68] sm:$0xff]
    %v153 = vld [vmem:[#allocation8 + $0x70] sm:$0xff]
    %v154 = vld [vmem:[#allocation8 + $0x78] sm:$0xff]
    %v155 = vld [vmem:[#allocation8 + $0x80] sm:$0xff]
    %v156 = vld [vmem:[#allocation8 + $0x88] sm:$0xff]
    %v157 = vld [vmem:[#allocation8 + $0x90] sm:$0xff]
    %v158 = vld [vmem:[#allocation8 + $0x98] sm:$0xff]
    %v159 = vld [vmem:[#allocation8 + $0xa0] sm:$0xff]
    %v160 = vld [vmem:[#allocation8 + $0xa8] sm:$0xff]
    %v161 = vld [vmem:[#allocation8 + $0xb0] sm:$0xff]
    %v162 = vld [vmem:[#allocation8 + $0xb8] sm:$0xff]
    %v163 = vld [vmem:[#allocation8 + $0xc0] sm:$0xff]
    %v164 = vld [vmem:[#allocation8 + $0xc8] sm:$0xff]
    %v165 = vld [vmem:[#allocation8 + $0xd0] sm:$0xff]
    %v166 = vld [vmem:[#allocation8 + $0xd8] sm:$0xff]
    %v167 = vld [vmem:[#allocation8 + $0xe0] sm:$0xff]
    %v168 = vld [vmem:[#allocation8 + $0xe8] sm:$0xff]
    %v169 = vld [vmem:[#allocation8 + $0xf0] sm:$0xff]
    %v170 = vld [vmem:[#allocation8 + $0xf8] sm:$0xff]
    %v171 = vld [vmem:[#allocation8 + $0x100] sm:$0xff]
    %v172 = vld [vmem:[#allocation8 + $0x108] sm:$0xff]
    %v173 = vld [vmem:[#allocation8 + $0x110] sm:$0xff]
    %v174 = vld [vmem:[#allocation8 + $0x118] sm:$0xff]
    %v175 = vld [vmem:[#allocation8 + $0x120] sm:$0xff]
    %v176 = vld [vmem:[#allocation8 + $0x128] sm:$0xff]
    %v177 = vld [vmem:[#allocation8 + $0x130] sm:$0xff]
    %v178 = vld [vmem:[#allocation8 + $0x138] sm:$0xff]
    %v179 = vld [vmem:[#allocation8 + $0x140] sm:$0xff]
    %v180 = vld [vmem:[#allocation8 + $0x148] sm:$0xff]
    %v181 = vld [vmem:[#allocation8 + $0x150] sm:$0xff]
    %v182 = vld [vmem:[#allocation8 + $0x158] sm:$0xff]
    %v183 = vld [vmem:[#allocation8 + $0x160] sm:$0xff]
    %v184 = vld [vmem:[#allocation8 + $0x168] sm:$0xff]
    %v185 = vld [vmem:[#allocation8 + $0x170] sm:$0xff]
    %v186 = vld [vmem:[#allocation8 + $0x178] sm:$0xff]
    %v187 = vld [vmem:[#allocation8 + $0x180] sm:$0xff]
    %v188 = vld [vmem:[#allocation8 + $0x188] sm:$0xff]
    %v189 = vld [vmem:[#allocation8 + $0x190] sm:$0xff]
    %v190 = vld [vmem:[#allocation8 + $0x198] sm:$0xff]
    %v191 = vld [vmem:[#allocation8 + $0x1a0] sm:$0xff]
    %v192 = vld [vmem:[#allocation8 + $0x1a8] sm:$0xff]
    %v193 = vld [vmem:[#allocation8 + $0x1b0] sm:$0xff]
    %v194 = vld [vmem:[#allocation8 + $0x1b8] sm:$0xff]
    %v195 = vld [vmem:[#allocation8 + $0x1c0] sm:$0xff]
    %v196 = vld [vmem:[#allocation8 + $0x1c8] sm:$0xff]
    %v197 = vld [vmem:[#allocation8 + $0x1d0] sm:$0xff]
    %v198 = vld [vmem:[#allocation8 + $0x1d8] sm:$0xff]
    %v199 = vld [vmem:[#allocation8 + $0x1e0] sm:$0xff]
    %v200 = vld [vmem:[#allocation8 + $0x1e8] sm:$0xff]
    %v201 = vld [vmem:[#allocation8 + $0x1f0] sm:$0xff]
    %v202 = vld [vmem:[#allocation8 + $0x1f8] sm:$0xff]
    %v203 = vld [vmem:[#allocation10] sm:$0xf]
    %v204 = vld [vmem:[#allocation11] sm:$0xff]
    %v205 = vld [vmem:[#allocation11 + $0x8] sm:$0xff]
    %v206 = vld [vmem:[#allocation11 + $0x10] sm:$0xff]
    %v207 = vld [vmem:[#allocation11 + $0x18] sm:$0xff]
    %v208 = vld [vmem:[#allocation11 + $0x20] sm:$0xff]
    %v209 = vld [vmem:[#allocation11 + $0x28] sm:$0xff]
    %v210 = vld [vmem:[#allocation11 + $0x30] sm:$0xff]
    %v211 = vld [vmem:[#allocation11 + $0x38] sm:$0xff]
    %v212 = vld [vmem:[#allocation11 + $0x40] sm:$0xff]
    %v213 = vld [vmem:[#allocation11 + $0x48] sm:$0xff]
    %v214 = vld [vmem:[#allocation11 + $0x50] sm:$0xff]
    %v215 = vld [vmem:[#allocation11 + $0x58] sm:$0xff]
    %v216 = vld [vmem:[#allocation11 + $0x60] sm:$0xff]
    %v217 = vld [vmem:[#allocation11 + $0x68] sm:$0xff]
    %v218 = vld [vmem:[#allocation11 + $0x70] sm:$0xff]
    %v219 = vld [vmem:[#allocation11 + $0x78] sm:$0xff]
    %v220 = vld [vmem:[#allocation11 + $0x80] sm:$0xff]
    %v221 = vld [vmem:[#allocation11 + $0x88] sm:$0xff]
    %v222 = vld [vmem:[#allocation11 + $0x90] sm:$0xff]
    %v223 = vld [vmem:[#allocation11 + $0x98] sm:$0xff]
    %v224 = vld [vmem:[#allocation11 + $0xa0] sm:$0xff]
    %v225 = vld [vmem:[#allocation11 + $0xa8] sm:$0xff]
    %v226 = vld [vmem:[#allocation11 + $0xb0] sm:$0xff]
    %v227 = vld [vmem:[#allocation11 + $0xb8] sm:$0xff]
    %v228 = vld [vmem:[#allocation11 + $0xc0] sm:$0xff]
    %v229 = vld [vmem:[#allocation11 + $0xc8] sm:$0xff]
    %v230 = vld [vmem:[#allocation11 + $0xd0] sm:$0xff]
    %v231 = vld [vmem:[#allocation11 + $0xd8] sm:$0xff]
    %v232 = vld [vmem:[#allocation11 + $0xe0] sm:$0xff]
    %v233 = vld [vmem:[#allocation11 + $0xe8] sm:$0xff]
    %v234 = vld [vmem:[#allocation11 + $0xf0] sm:$0xff]
    %v235 = vld [vmem:[#allocation11 + $0xf8] sm:$0xff]
    %v236 = vld [vmem:[#allocation11 + $0x100] sm:$0xff]
    %v237 = vld [vmem:[#allocation11 + $0x108] sm:$0xff]
    %v238 = vld [vmem:[#allocation11 + $0x110] sm:$0xff]
    %v239 = vld [vmem:[#allocation11 + $0x118] sm:$0xff]
    %v240 = vld [vmem:[#allocation11 + $0x120] sm:$0xff]
    %v241 = vld [vmem:[#allocation11 + $0x128] sm:$0xff]
    %v242 = vld [vmem:[#allocation11 + $0x130] sm:$0xff]
    %v243 = vld [vmem:[#allocation11 + $0x138] sm:$0xff]
    %v244 = vld [vmem:[#allocation11 + $0x140] sm:$0xff]
    %v245 = vld [vmem:[#allocation11 + $0x148] sm:$0xff]
    %v246 = vld [vmem:[#allocation11 + $0x150] sm:$0xff]
    %v247 = vld [vmem:[#allocation11 + $0x158] sm:$0xff]
    %v248 = vld [vmem:[#allocation11 + $0x160] sm:$0xff]
    %v249 = vld [vmem:[#allocation11 + $0x168] sm:$0xff]
    %v250 = vld [vmem:[#allocation11 + $0x170] sm:$0xff]
    %v251 = vld [vmem:[#allocation11 + $0x178] sm:$0xff]
    %v252 = vld [vmem:[#allocation11 + $0x180] sm:$0xff]
    %v253 = vld [vmem:[#allocation11 + $0x188] sm:$0xff]
    %v254 = vld [vmem:[#allocation11 + $0x190] sm:$0xff]
    %v255 = vld [vmem:[#allocation11 + $0x198] sm:$0xff]
    %v256 = vld [vmem:[#allocation11 + $0x1a0] sm:$0xff]
    %v257 = vld [vmem:[#allocation11 + $0x1a8] sm:$0xff]
    %v258 = vld [vmem:[#allocation11 + $0x1b0] sm:$0xff]
    %v259 = vld [vmem:[#allocation11 + $0x1b8] sm:$0xff]
    %v260 = vld [vmem:[#allocation11 + $0x1c0] sm:$0xff]
    %v261 = vld [vmem:[#allocation11 + $0x1c8] sm:$0xff]
    %v262 = vld [vmem:[#allocation11 + $0x1d0] sm:$0xff]
    %v263 = vld [vmem:[#allocation11 + $0x1d8] sm:$0xff]
    %v264 = vld [vmem:[#allocation11 + $0x1e0] sm:$0xff]
    %v265 = vld [vmem:[#allocation11 + $0x1e8] sm:$0xff]
    %v266 = vld [vmem:[#allocation11 + $0x1f0] sm:$0xff]
    %v267 = vld [vmem:[#allocation11 + $0x1f8] sm:$0xff]
    %v268 = vld [vmem:[%s6] sm:$0xf]
    %v269 = vld [vmem:[#allocation13] sm:$0xf]
    %v270 = vld [vmem:[#allocation13 + $0x4] sm:$0xf]
    %v271 = vld [vmem:[#allocation13 + $0x8] sm:$0xf]
    %v272 = vld [vmem:[#allocation13 + $0xc] sm:$0xf]
    %v273 = vld [vmem:[#allocation13 + $0x10] sm:$0xf]
    %v274 = vld [vmem:[#allocation13 + $0x14] sm:$0xf]
    %v275 = vld [vmem:[#allocation13 + $0x18] sm:$0xf]
    %v276 = vld [vmem:[#allocation13 + $0x1c] sm:$0xf]
    %v277 = vld [vmem:[#allocation13 + $0x20] sm:$0xf]
    %v278 = vld [vmem:[#allocation13 + $0x24] sm:$0xf]
    %v279 = vld [vmem:[#allocation13 + $0x28] sm:$0xf]
    %v280 = vld [vmem:[#allocation13 + $0x2c] sm:$0xf]
    %v281 = vld [vmem:[#allocation13 + $0x30] sm:$0xf]
    %v282 = vld [vmem:[#allocation13 + $0x34] sm:$0xf]
    %v283 = vld [vmem:[#allocation13 + $0x38] sm:$0xf]
    %v284 = vld [vmem:[#allocation13 + $0x3c] sm:$0xf]
    %v285 = vld [vmem:[%s8] sm:$0x1]
    %v286 = vld [vmem:[#allocation5] sm:$0xf]
    %v287 = vunpack.c.l.bf16 %v286
    %v288 = vld [vmem:[#allocation7] sm:$0xff]
    %v289 = vpack.c.bf16 %v287, %v287
    %v290 = vpack.c.bf16 %v288, %v288
    %v292 = vperm.slane %v203, 0
    %v293 = vperm.slane %v203, 1
    %v294 = vperm.slane %v203, 2
    %v295 = vperm.slane %v203, 3
    %v364 = vunpack.c.l.b16 %v139
    %v365 = vunpack.c.h.b16 %v139
    %v366 = vunpack.c.l.b16 %v140
    %v367 = vunpack.c.h.b16 %v140
    %v368 = vunpack.c.l.b16 %v141
    %v369 = vunpack.c.h.b16 %v141
    %v370 = vunpack.c.l.b16 %v142
    %v371 = vunpack.c.h.b16 %v142
    %v372 = vunpack.c.l.b16 %v143
    %v373 = vunpack.c.h.b16 %v143
    %v374 = vunpack.c.l.b16 %v144
    %v375 = vunpack.c.h.b16 %v144
    %v376 = vunpack.c.l.b16 %v145
    %v377 = vunpack.c.h.b16 %v145
    %v378 = vunpack.c.l.b16 %v146
    %v379 = vunpack.c.h.b16 %v146
    %v380 = vunpack.c.l.b16 %v147
    %v381 = vunpack.c.h.b16 %v147
    %v382 = vunpack.c.l.b16 %v148
    %v383 = vunpack.c.h.b16 %v148
    %v384 = vunpack.c.l.b16 %v149
    %v385 = vunpack.c.h.b16 %v149
    %v386 = vunpack.c.l.b16 %v150
    %v387 = vunpack.c.h.b16 %v150
    %v388 = vunpack.c.l.b16 %v151
    %v389 = vunpack.c.h.b16 %v151
    %v390 = vunpack.c.l.b16 %v152
    %v391 = vunpack.c.h.b16 %v152
    %v392 = vunpack.c.l.b16 %v153
    %v393 = vunpack.c.h.b16 %v153
    %v394 = vunpack.c.l.b16 %v154
    %v395 = vunpack.c.h.b16 %v154
    %v396 = vunpack.c.l.b16 %v155
    %v397 = vunpack.c.h.b16 %v155
    %v398 = vunpack.c.l.b16 %v156
    %v399 = vunpack.c.h.b16 %v156
    %v400 = vunpack.c.l.b16 %v157
    %v401 = vunpack.c.h.b16 %v157
    %v402 = vunpack.c.l.b16 %v158
    %v403 = vunpack.c.h.b16 %v158
    %v404 = vunpack.c.l.b16 %v159
    %v405 = vunpack.c.h.b16 %v159
    %v406 = vunpack.c.l.b16 %v160
    %v407 = vunpack.c.h.b16 %v160
    %v408 = vunpack.c.l.b16 %v161
    %v409 = vunpack.c.h.b16 %v161
    %v410 = vunpack.c.l.b16 %v162
    %v411 = vunpack.c.h.b16 %v162
    %v412 = vunpack.c.l.b16 %v163
    %v413 = vunpack.c.h.b16 %v163
    %v414 = vunpack.c.l.b16 %v164
    %v415 = vunpack.c.h.b16 %v164
    %v416 = vunpack.c.l.b16 %v165
    %v417 = vunpack.c.h.b16 %v165
    %v418 = vunpack.c.l.b16 %v166
    %v419 = vunpack.c.h.b16 %v166
    %v420 = vunpack.c.l.b16 %v167
    %v421 = vunpack.c.h.b16 %v167
    %v422 = vunpack.c.l.b16 %v168
    %v423 = vunpack.c.h.b16 %v168
    %v424 = vunpack.c.l.b16 %v169
    %v425 = vunpack.c.h.b16 %v169
    %v426 = vunpack.c.l.b16 %v170
    %v427 = vunpack.c.h.b16 %v170
    %v428 = vunpack.c.l.b16 %v171
    %v429 = vunpack.c.h.b16 %v171
    %v430 = vunpack.c.l.b16 %v172
    %v431 = vunpack.c.h.b16 %v172
    %v432 = vunpack.c.l.b16 %v173
    %v433 = vunpack.c.h.b16 %v173
    %v434 = vunpack.c.l.b16 %v174
    %v435 = vunpack.c.h.b16 %v174
    %v436 = vunpack.c.l.b16 %v175
    %v437 = vunpack.c.h.b16 %v175
    %v438 = vunpack.c.l.b16 %v176
    %v439 = vunpack.c.h.b16 %v176
    %v440 = vunpack.c.l.b16 %v177
    %v441 = vunpack.c.h.b16 %v177
    %v442 = vunpack.c.l.b16 %v178
    %v443 = vunpack.c.h.b16 %v178
    %v444 = vunpack.c.l.b16 %v179
    %v445 = vunpack.c.h.b16 %v179
    %v446 = vunpack.c.l.b16 %v180
    %v447 = vunpack.c.h.b16 %v180
    %v448 = vunpack.c.l.b16 %v181
    %v449 = vunpack.c.h.b16 %v181
    %v450 = vunpack.c.l.b16 %v182
    %v451 = vunpack.c.h.b16 %v182
    %v452 = vunpack.c.l.b16 %v183
    %v453 = vunpack.c.h.b16 %v183
    %v454 = vunpack.c.l.b16 %v184
    %v455 = vunpack.c.h.b16 %v184
    %v456 = vunpack.c.l.b16 %v185
    %v457 = vunpack.c.h.b16 %v185
    %v458 = vunpack.c.l.b16 %v186
    %v459 = vunpack.c.h.b16 %v186
    %v460 = vunpack.c.l.b16 %v187
    %v461 = vunpack.c.h.b16 %v187
    %v462 = vunpack.c.l.b16 %v188
    %v463 = vunpack.c.h.b16 %v188
    %v464 = vunpack.c.l.b16 %v189
    %v465 = vunpack.c.h.b16 %v189
    %v466 = vunpack.c.l.b16 %v190
    %v467 = vunpack.c.h.b16 %v190
    %v468 = vunpack.c.l.b16 %v191
    %v469 = vunpack.c.h.b16 %v191
    %v470 = vunpack.c.l.b16 %v192
    %v471 = vunpack.c.h.b16 %v192
    %v472 = vunpack.c.l.b16 %v193
    %v473 = vunpack.c.h.b16 %v193
    %v474 = vunpack.c.l.b16 %v194
    %v475 = vunpack.c.h.b16 %v194
    %v476 = vunpack.c.l.b16 %v195
    %v477 = vunpack.c.h.b16 %v195
    %v478 = vunpack.c.l.b16 %v196
    %v479 = vunpack.c.h.b16 %v196
    %v480 = vunpack.c.l.b16 %v197
    %v481 = vunpack.c.h.b16 %v197
    %v482 = vunpack.c.l.b16 %v198
    %v483 = vunpack.c.h.b16 %v198
    %v484 = vunpack.c.l.b16 %v199
    %v485 = vunpack.c.h.b16 %v199
    %v486 = vunpack.c.l.b16 %v200
    %v487 = vunpack.c.h.b16 %v200
    %v488 = vunpack.c.l.b16 %v201
    %v489 = vunpack.c.h.b16 %v201
    %v490 = vunpack.c.l.b16 %v202
    %v491 = vunpack.c.h.b16 %v202
    %v492 = vpack.c.b16 %v368, %v364
    %v493 = vpack.c.b16 %v369, %v365
    %v494 = vpack.c.b16 %v370, %v366
    %v495 = vpack.c.b16 %v371, %v367
    %v496 = vpack.c.b16 %v376, %v372
    %v497 = vpack.c.b16 %v377, %v373
    %v498 = vpack.c.b16 %v378, %v374
    %v499 = vpack.c.b16 %v379, %v375
    %v500 = vpack.c.b16 %v384, %v380
    %v501 = vpack.c.b16 %v385, %v381
    %v502 = vpack.c.b16 %v386, %v382
    %v503 = vpack.c.b16 %v387, %v383
    %v504 = vpack.c.b16 %v392, %v388
    %v505 = vpack.c.b16 %v393, %v389
    %v506 = vpack.c.b16 %v394, %v390
    %v507 = vpack.c.b16 %v395, %v391
    %v508 = vpack.c.b16 %v400, %v396
    %v509 = vpack.c.b16 %v401, %v397
    %v510 = vpack.c.b16 %v402, %v398
    %v511 = vpack.c.b16 %v403, %v399
    %v512 = vpack.c.b16 %v408, %v404
    %v513 = vpack.c.b16 %v409, %v405
    %v514 = vpack.c.b16 %v410, %v406
    %v515 = vpack.c.b16 %v411, %v407
    %v516 = vpack.c.b16 %v416, %v412
    %v517 = vpack.c.b16 %v417, %v413
    %v518 = vpack.c.b16 %v418, %v414
    %v519 = vpack.c.b16 %v419, %v415
    %v520 = vpack.c.b16 %v424, %v420
    %v521 = vpack.c.b16 %v425, %v421
    %v522 = vpack.c.b16 %v426, %v422
    %v523 = vpack.c.b16 %v427, %v423
    %v524 = vpack.c.b16 %v432, %v428
    %v525 = vpack.c.b16 %v433, %v429
    %v526 = vpack.c.b16 %v434, %v430
    %v527 = vpack.c.b16 %v435, %v431
    %v528 = vpack.c.b16 %v440, %v436
    %v529 = vpack.c.b16 %v441, %v437
    %v530 = vpack.c.b16 %v442, %v438
    %v531 = vpack.c.b16 %v443, %v439
    %v532 = vpack.c.b16 %v448, %v444
    %v533 = vpack.c.b16 %v449, %v445
    %v534 = vpack.c.b16 %v450, %v446
    %v535 = vpack.c.b16 %v451, %v447
    %v536 = vpack.c.b16 %v456, %v452
    %v537 = vpack.c.b16 %v457, %v453
    %v538 = vpack.c.b16 %v458, %v454
    %v539 = vpack.c.b16 %v459, %v455
    %v540 = vpack.c.b16 %v464, %v460
    %v541 = vpack.c.b16 %v465, %v461
    %v542 = vpack.c.b16 %v466, %v462
    %v543 = vpack.c.b16 %v467, %v463
    %v544 = vpack.c.b16 %v472, %v468
    %v545 = vpack.c.b16 %v473, %v469
    %v546 = vpack.c.b16 %v474, %v470
    %v547 = vpack.c.b16 %v475, %v471
    %v548 = vpack.c.b16 %v480, %v476
    %v549 = vpack.c.b16 %v481, %v477
    %v550 = vpack.c.b16 %v482, %v478
    %v551 = vpack.c.b16 %v483, %v479
    %v552 = vpack.c.b16 %v488, %v484
    %v553 = vpack.c.b16 %v489, %v485
    %v554 = vpack.c.b16 %v490, %v486
    %v555 = vpack.c.b16 %v491, %v487
    %620 = vmatpush.bf16.msra.mxu0 %v520
    %621 = vmatpush.bf16.msra.mxu0 %v516
    %622 = vmatpush.bf16.msra.mxu0 %v512
    %623 = vmatpush.bf16.msra.mxu0 %v508
    %624 = vmatpush.bf16.msra.mxu0 %v504
    %625 = vmatpush.bf16.msra.mxu0 %v500
    %626 = vmatpush.bf16.msra.mxu0 %v496
    %627 = vmatpush.bf16.msra.mxu0 %v492
    %628 = vmatmul.bf16.gmra.mxu0 %v289
    %v629 = vpop.f32.mrf.mxu0
    %v630 = vadd.f32 %v292, %v629
    %v631 = vpop.f32.mrf.mxu0
    %632 = vdwg.mxu0
    %633 = vmatpush.bf16.msra.mxu0 %v552
    %634 = vmatpush.bf16.msra.mxu0 %v548
    %635 = vmatpush.bf16.msra.mxu0 %v544
    %636 = vmatpush.bf16.msra.mxu0 %v540
    %637 = vmatpush.bf16.msra.mxu0 %v536
    %638 = vmatpush.bf16.msra.mxu0 %v532
    %639 = vmatpush.bf16.msra.mxu0 %v528
    %640 = vmatpush.bf16.msra.mxu0 %v524
    %641 = vmatmul.bf16.gmra.mxu0 %v290
    %v642 = vpop.f32.mrf.mxu0
    %v643 = vadd.f32 %v630, %v642
    %v644 = vpop.f32.mrf.mxu0
    %645 = vdwg.mxu0
    %646 = vmatpush.bf16.msra.mxu0 %v521
    %647 = vmatpush.bf16.msra.mxu0 %v517
    %648 = vmatpush.bf16.msra.mxu0 %v513
    %649 = vmatpush.bf16.msra.mxu0 %v509
    %650 = vmatpush.bf16.msra.mxu0 %v505
    %651 = vmatpush.bf16.msra.mxu0 %v501
    %652 = vmatpush.bf16.msra.mxu0 %v497
    %653 = vmatpush.bf16.msra.mxu0 %v493
    %654 = vmatmul.bf16.gmra.mxu0 %v289
    %v655 = vpop.f32.mrf.mxu0
    %v656 = vadd.f32 %v293, %v655
    %v657 = vpop.f32.mrf.mxu0
    %658 = vdwg.mxu0
    %659 = vmatpush.bf16.msra.mxu0 %v553
    %660 = vmatpush.bf16.msra.mxu0 %v549
    %661 = vmatpush.bf16.msra.mxu0 %v545
    %662 = vmatpush.bf16.msra.mxu0 %v541
    %663 = vmatpush.bf16.msra.mxu0 %v537
    %664 = vmatpush.bf16.msra.mxu0 %v533
    %665 = vmatpush.bf16.msra.mxu0 %v529
    %666 = vmatpush.bf16.msra.mxu0 %v525
    %667 = vmatmul.bf16.gmra.mxu0 %v290
    %v668 = vpop.f32.mrf.mxu0
    %v669 = vadd.f32 %v656, %v668
    %v670 = vpop.f32.mrf.mxu0
    %671 = vdwg.mxu0
    %672 = vmatpush.bf16.msra.mxu0 %v522
    %673 = vmatpush.bf16.msra.mxu0 %v518
    %674 = vmatpush.bf16.msra.mxu0 %v514
    %675 = vmatpush.bf16.msra.mxu0 %v510
    %676 = vmatpush.bf16.msra.mxu0 %v506
    %677 = vmatpush.bf16.msra.mxu0 %v502
    %678 = vmatpush.bf16.msra.mxu0 %v498
    %679 = vmatpush.bf16.msra.mxu0 %v494
    %680 = vmatmul.bf16.gmra.mxu0 %v289
    %v681 = vpop.f32.mrf.mxu0
    %v682 = vadd.f32 %v294, %v681
    %v683 = vpop.f32.mrf.mxu0
    %684 = vdwg.mxu0
    %685 = vmatpush.bf16.msra.mxu0 %v554
    %686 = vmatpush.bf16.msra.mxu0 %v550
    %687 = vmatpush.bf16.msra.mxu0 %v546
    %688 = vmatpush.bf16.msra.mxu0 %v542
    %689 = vmatpush.bf16.msra.mxu0 %v538
    %690 = vmatpush.bf16.msra.mxu0 %v534
    %691 = vmatpush.bf16.msra.mxu0 %v530
    %692 = vmatpush.bf16.msra.mxu0 %v526
    %693 = vmatmul.bf16.gmra.mxu0 %v290
    %v694 = vpop.f32.mrf.mxu0
    %v695 = vadd.f32 %v682, %v694
    %v696 = vpop.f32.mrf.mxu0
    %697 = vdwg.mxu0
    %698 = vmatpush.bf16.msra.mxu0 %v523
    %699 = vmatpush.bf16.msra.mxu0 %v519
    %700 = vmatpush.bf16.msra.mxu0 %v515
    %701 = vmatpush.bf16.msra.mxu0 %v511
    %702 = vmatpush.bf16.msra.mxu0 %v507
    %703 = vmatpush.bf16.msra.mxu0 %v503
    %704 = vmatpush.bf16.msra.mxu0 %v499
    %705 = vmatpush.bf16.msra.mxu0 %v495
    %706 = vmatmul.bf16.gmra.mxu0 %v289
    %v707 = vpop.f32.mrf.mxu0
    %v708 = vadd.f32 %v295, %v707
    %v709 = vpop.f32.mrf.mxu0
    %710 = vdwg.mxu0
    %711 = vmatpush.bf16.msra.mxu0 %v555
    %712 = vmatpush.bf16.msra.mxu0 %v551
    %713 = vmatpush.bf16.msra.mxu0 %v547
    %714 = vmatpush.bf16.msra.mxu0 %v543
    %715 = vmatpush.bf16.msra.mxu0 %v539
    %716 = vmatpush.bf16.msra.mxu0 %v535
    %717 = vmatpush.bf16.msra.mxu0 %v531
    %718 = vmatpush.bf16.msra.mxu0 %v527
    %719 = vmatmul.bf16.gmra.mxu0 %v290
    %v720 = vpop.f32.mrf.mxu0
    %v721 = vadd.f32 %v708, %v720
    %v722 = vpop.f32.mrf.mxu0
    %723 = vdwg.mxu0
    %v724 = vxor.u32 %v643, 2147483648
    %v725 = vmul.f32 %v724, 1.442695
    %v726 = vpow.pop %v725
    %v727 = vadd.f32 %v726, 1.0
    %v728 = vrcp.pop %v727
    %v729 = vmul.f32 %v727, %v728
    %v730 = vsub.f32 1.0, %v729
    %v731 = vmul.f32 %v728, %v730
    %v732 = vadd.f32 %v728, %v731
    %vm733 = vweird.f32 %v727
    %vm734 = vweird.f32 %v728
    %vm735 = vmor %vm733, %vm734
    %v736 = vsel %vm735, %v728, %v732
    %v737 = vand.u32 2147483647, %v727
    %vm738 = vcmp.eq.f32.partialorder %v737, 8.507059e+37
    %v739 = vand.u32 %v727, 2147483648
    %v740 = vor.u32 1.1754944e-38, %v739
    %v741 = vsel %vm738, %v740, %v736
    %v742 = vmul.f32 1.0, %v741
    %v743 = vxor.u32 %v669, 2147483648
    %v744 = vmul.f32 %v743, 1.442695
    %v745 = vpow.pop %v744
    %v746 = vadd.f32 %v745, 1.0
    %v747 = vrcp.pop %v746
    %v748 = vmul.f32 %v746, %v747
    %v749 = vsub.f32 1.0, %v748
    %v750 = vmul.f32 %v747, %v749
    %v751 = vadd.f32 %v747, %v750
    %vm752 = vweird.f32 %v746
    %vm753 = vweird.f32 %v747
    %vm754 = vmor %vm752, %vm753
    %v755 = vsel %vm754, %v747, %v751
    %v756 = vand.u32 2147483647, %v746
    %vm757 = vcmp.eq.f32.partialorder %v756, 8.507059e+37
    %v758 = vand.u32 %v746, 2147483648
    %v759 = vor.u32 1.1754944e-38, %v758
    %v760 = vsel %vm757, %v759, %v755
    %v761 = vmul.f32 1.0, %v760
    %v762 = vtanh.pop %v695
    %v763 = vxor.u32 %v721, 2147483648
    %v764 = vmul.f32 %v763, 1.442695
    %v765 = vpow.pop %v764
    %v766 = vadd.f32 %v765, 1.0
    %v767 = vrcp.pop %v766
    %v768 = vmul.f32 %v766, %v767
    %v769 = vsub.f32 1.0, %v768
    %v770 = vmul.f32 %v767, %v769
    %v771 = vadd.f32 %v767, %v770
    %vm772 = vweird.f32 %v766
    %vm773 = vweird.f32 %v767
    %vm774 = vmor %vm772, %vm773
    %v775 = vsel %vm774, %v767, %v771
    %v776 = vand.u32 2147483647, %v766
    %vm777 = vcmp.eq.f32.partialorder %v776, 8.507059e+37
    %v778 = vand.u32 %v766, 2147483648
    %v779 = vor.u32 1.1754944e-38, %v778
    %v780 = vsel %vm777, %v779, %v775
    %v781 = vmul.f32 1.0, %v780
    %v782 = vmul.f32 %v761, 0.0
    %v783 = vmul.f32 %v742, %v762
    %v784 = vadd.f32 %v782, %v783
    %v785 = vtanh.pop %v784
    %v786 = vmul.f32 %v781, %v785
    %v787 = vpack.c.bf16 %v786, %v786
    %v788 = vpack.c.bf16 0.0, 0.0
    %v790 = vperm.slane %v268, 0
    %v791 = vperm.slane %v268, 1
    %v792 = vperm.slane %v268, 2
    %v793 = vperm.slane %v268, 3
    %v862 = vunpack.c.l.b16 %v204
    %v863 = vunpack.c.h.b16 %v204
    %v864 = vunpack.c.l.b16 %v205
    %v865 = vunpack.c.h.b16 %v205
    %v866 = vunpack.c.l.b16 %v206
    %v867 = vunpack.c.h.b16 %v206
    %v868 = vunpack.c.l.b16 %v207
    %v869 = vunpack.c.h.b16 %v207
    %v870 = vunpack.c.l.b16 %v208
    %v871 = vunpack.c.h.b16 %v208
    %v872 = vunpack.c.l.b16 %v209
    %v873 = vunpack.c.h.b16 %v209
    %v874 = vunpack.c.l.b16 %v210
    %v875 = vunpack.c.h.b16 %v210
    %v876 = vunpack.c.l.b16 %v211
    %v877 = vunpack.c.h.b16 %v211
    %v878 = vunpack.c.l.b16 %v212
    %v879 = vunpack.c.h.b16 %v212
    %v880 = vunpack.c.l.b16 %v213
    %v881 = vunpack.c.h.b16 %v213
    %v882 = vunpack.c.l.b16 %v214
    %v883 = vunpack.c.h.b16 %v214
    %v884 = vunpack.c.l.b16 %v215
    %v885 = vunpack.c.h.b16 %v215
    %v886 = vunpack.c.l.b16 %v216
    %v887 = vunpack.c.h.b16 %v216
    %v888 = vunpack.c.l.b16 %v217
    %v889 = vunpack.c.h.b16 %v217
    %v890 = vunpack.c.l.b16 %v218
    %v891 = vunpack.c.h.b16 %v218
    %v892 = vunpack.c.l.b16 %v219
    %v893 = vunpack.c.h.b16 %v219
    %v894 = vunpack.c.l.b16 %v220
    %v895 = vunpack.c.h.b16 %v220
    %v896 = vunpack.c.l.b16 %v221
    %v897 = vunpack.c.h.b16 %v221
    %v898 = vunpack.c.l.b16 %v222
    %v899 = vunpack.c.h.b16 %v222
    %v900 = vunpack.c.l.b16 %v223
    %v901 = vunpack.c.h.b16 %v223
    %v902 = vunpack.c.l.b16 %v224
    %v903 = vunpack.c.h.b16 %v224
    %v904 = vunpack.c.l.b16 %v225
    %v905 = vunpack.c.h.b16 %v225
    %v906 = vunpack.c.l.b16 %v226
    %v907 = vunpack.c.h.b16 %v226
    %v908 = vunpack.c.l.b16 %v227
    %v909 = vunpack.c.h.b16 %v227
    %v910 = vunpack.c.l.b16 %v228
    %v911 = vunpack.c.h.b16 %v228
    %v912 = vunpack.c.l.b16 %v229
    %v913 = vunpack.c.h.b16 %v229
    %v914 = vunpack.c.l.b16 %v230
    %v915 = vunpack.c.h.b16 %v230
    %v916 = vunpack.c.l.b16 %v231
    %v917 = vunpack.c.h.b16 %v231
    %v918 = vunpack.c.l.b16 %v232
    %v919 = vunpack.c.h.b16 %v232
    %v920 = vunpack.c.l.b16 %v233
    %v921 = vunpack.c.h.b16 %v233
    %v922 = vunpack.c.l.b16 %v234
    %v923 = vunpack.c.h.b16 %v234
    %v924 = vunpack.c.l.b16 %v235
    %v925 = vunpack.c.h.b16 %v235
    %v926 = vunpack.c.l.b16 %v236
    %v927 = vunpack.c.h.b16 %v236
    %v928 = vunpack.c.l.b16 %v237
    %v929 = vunpack.c.h.b16 %v237
    %v930 = vunpack.c.l.b16 %v238
    %v931 = vunpack.c.h.b16 %v238
    %v932 = vunpack.c.l.b16 %v239
    %v933 = vunpack.c.h.b16 %v239
    %v934 = vunpack.c.l.b16 %v240
    %v935 = vunpack.c.h.b16 %v240
    %v936 = vunpack.c.l.b16 %v241
    %v937 = vunpack.c.h.b16 %v241
    %v938 = vunpack.c.l.b16 %v242
    %v939 = vunpack.c.h.b16 %v242
    %v940 = vunpack.c.l.b16 %v243
    %v941 = vunpack.c.h.b16 %v243
    %v942 = vunpack.c.l.b16 %v244
    %v943 = vunpack.c.h.b16 %v244
    %v944 = vunpack.c.l.b16 %v245
    %v945 = vunpack.c.h.b16 %v245
    %v946 = vunpack.c.l.b16 %v246
    %v947 = vunpack.c.h.b16 %v246
    %v948 = vunpack.c.l.b16 %v247
    %v949 = vunpack.c.h.b16 %v247
    %v950 = vunpack.c.l.b16 %v248
    %v951 = vunpack.c.h.b16 %v248
    %v952 = vunpack.c.l.b16 %v249
    %v953 = vunpack.c.h.b16 %v249
    %v954 = vunpack.c.l.b16 %v250
    %v955 = vunpack.c.h.b16 %v250
    %v956 = vunpack.c.l.b16 %v251
    %v957 = vunpack.c.h.b16 %v251
    %v958 = vunpack.c.l.b16 %v252
    %v959 = vunpack.c.h.b16 %v252
    %v960 = vunpack.c.l.b16 %v253
    %v961 = vunpack.c.h.b16 %v253
    %v962 = vunpack.c.l.b16 %v254
    %v963 = vunpack.c.h.b16 %v254
    %v964 = vunpack.c.l.b16 %v255
    %v965 = vunpack.c.h.b16 %v255
    %v966 = vunpack.c.l.b16 %v256
    %v967 = vunpack.c.h.b16 %v256
    %v968 = vunpack.c.l.b16 %v257
    %v969 = vunpack.c.h.b16 %v257
    %v970 = vunpack.c.l.b16 %v258
    %v971 = vunpack.c.h.b16 %v258
    %v972 = vunpack.c.l.b16 %v259
    %v973 = vunpack.c.h.b16 %v259
    %v974 = vunpack.c.l.b16 %v260
    %v975 = vunpack.c.h.b16 %v260
    %v976 = vunpack.c.l.b16 %v261
    %v977 = vunpack.c.h.b16 %v261
    %v978 = vunpack.c.l.b16 %v262
    %v979 = vunpack.c.h.b16 %v262
    %v980 = vunpack.c.l.b16 %v263
    %v981 = vunpack.c.h.b16 %v263
    %v982 = vunpack.c.l.b16 %v264
    %v983 = vunpack.c.h.b16 %v264
    %v984 = vunpack.c.l.b16 %v265
    %v985 = vunpack.c.h.b16 %v265
    %v986 = vunpack.c.l.b16 %v266
    %v987 = vunpack.c.h.b16 %v266
    %v988 = vunpack.c.l.b16 %v267
    %v989 = vunpack.c.h.b16 %v267
    %v990 = vpack.c.b16 %v866, %v862
    %v991 = vpack.c.b16 %v867, %v863
    %v992 = vpack.c.b16 %v868, %v864
    %v993 = vpack.c.b16 %v869, %v865
    %v994 = vpack.c.b16 %v874, %v870
    %v995 = vpack.c.b16 %v875, %v871
    %v996 = vpack.c.b16 %v876, %v872
    %v997 = vpack.c.b16 %v877, %v873
    %v998 = vpack.c.b16 %v882, %v878
    %v999 = vpack.c.b16 %v883, %v879
    %v1000 = vpack.c.b16 %v884, %v880
    %v1001 = vpack.c.b16 %v885, %v881
    %v1002 = vpack.c.b16 %v890, %v886
    %v1003 = vpack.c.b16 %v891, %v887
    %v1004 = vpack.c.b16 %v892, %v888
    %v1005 = vpack.c.b16 %v893, %v889
    %v1006 = vpack.c.b16 %v898, %v894
    %v1007 = vpack.c.b16 %v899, %v895
    %v1008 = vpack.c.b16 %v900, %v896
    %v1009 = vpack.c.b16 %v901, %v897
    %v1010 = vpack.c.b16 %v906, %v902
    %v1011 = vpack.c.b16 %v907, %v903
    %v1012 = vpack.c.b16 %v908, %v904
    %v1013 = vpack.c.b16 %v909, %v905
    %v1014 = vpack.c.b16 %v914, %v910
    %v1015 = vpack.c.b16 %v915, %v911
    %v1016 = vpack.c.b16 %v916, %v912
    %v1017 = vpack.c.b16 %v917, %v913
    %v1018 = vpack.c.b16 %v922, %v918
    %v1019 = vpack.c.b16 %v923, %v919
    %v1020 = vpack.c.b16 %v924, %v920
    %v1021 = vpack.c.b16 %v925, %v921
    %v1022 = vpack.c.b16 %v930, %v926
    %v1023 = vpack.c.b16 %v931, %v927
    %v1024 = vpack.c.b16 %v932, %v928
    %v1025 = vpack.c.b16 %v933, %v929
    %v1026 = vpack.c.b16 %v938, %v934
    %v1027 = vpack.c.b16 %v939, %v935
    %v1028 = vpack.c.b16 %v940, %v936
    %v1029 = vpack.c.b16 %v941, %v937
    %v1030 = vpack.c.b16 %v946, %v942
    %v1031 = vpack.c.b16 %v947, %v943
    %v1032 = vpack.c.b16 %v948, %v944
    %v1033 = vpack.c.b16 %v949, %v945
    %v1034 = vpack.c.b16 %v954, %v950
    %v1035 = vpack.c.b16 %v955, %v951
    %v1036 = vpack.c.b16 %v956, %v952
    %v1037 = vpack.c.b16 %v957, %v953
    %v1038 = vpack.c.b16 %v962, %v958
    %v1039 = vpack.c.b16 %v963, %v959
    %v1040 = vpack.c.b16 %v964, %v960
    %v1041 = vpack.c.b16 %v965, %v961
    %v1042 = vpack.c.b16 %v970, %v966
    %v1043 = vpack.c.b16 %v971, %v967
    %v1044 = vpack.c.b16 %v972, %v968
    %v1045 = vpack.c.b16 %v973, %v969
    %v1046 = vpack.c.b16 %v978, %v974
    %v1047 = vpack.c.b16 %v979, %v975
    %v1048 = vpack.c.b16 %v980, %v976
    %v1049 = vpack.c.b16 %v981, %v977
    %v1050 = vpack.c.b16 %v986, %v982
    %v1051 = vpack.c.b16 %v987, %v983
    %v1052 = vpack.c.b16 %v988, %v984
    %v1053 = vpack.c.b16 %v989, %v985
    %1118 = vmatpush.bf16.msra.mxu0 %v1018
    %1119 = vmatpush.bf16.msra.mxu0 %v1014
    %1120 = vmatpush.bf16.msra.mxu0 %v1010
    %1121 = vmatpush.bf16.msra.mxu0 %v1006
    %1122 = vmatpush.bf16.msra.mxu0 %v1002
    %1123 = vmatpush.bf16.msra.mxu0 %v998
    %1124 = vmatpush.bf16.msra.mxu0 %v994
    %1125 = vmatpush.bf16.msra.mxu0 %v990
    %1126 = vmatmul.bf16.gmra.mxu0 %v787
    %v1127 = vpop.f32.mrf.mxu0
    %v1128 = vadd.f32 %v790, %v1127
    %v1129 = vpop.f32.mrf.mxu0
    %1130 = vdwg.mxu0
    %1131 = vmatpush.bf16.msra.mxu0 %v1050
    %1132 = vmatpush.bf16.msra.mxu0 %v1046
    %1133 = vmatpush.bf16.msra.mxu0 %v1042
    %1134 = vmatpush.bf16.msra.mxu0 %v1038
    %1135 = vmatpush.bf16.msra.mxu0 %v1034
    %1136 = vmatpush.bf16.msra.mxu0 %v1030
    %1137 = vmatpush.bf16.msra.mxu0 %v1026
    %1138 = vmatpush.bf16.msra.mxu0 %v1022
    %1139 = vmatmul.bf16.gmra.mxu0 %v788
    %v1140 = vpop.f32.mrf.mxu0
    %v1141 = vadd.f32 %v1128, %v1140
    %v1142 = vpop.f32.mrf.mxu0
    %1143 = vdwg.mxu0
    %1144 = vmatpush.bf16.msra.mxu0 %v1019
    %1145 = vmatpush.bf16.msra.mxu0 %v1015
    %1146 = vmatpush.bf16.msra.mxu0 %v1011
    %1147 = vmatpush.bf16.msra.mxu0 %v1007
    %1148 = vmatpush.bf16.msra.mxu0 %v1003
    %1149 = vmatpush.bf16.msra.mxu0 %v999
    %1150 = vmatpush.bf16.msra.mxu0 %v995
    %1151 = vmatpush.bf16.msra.mxu0 %v991
    %1152 = vmatmul.bf16.gmra.mxu0 %v787
    %v1153 = vpop.f32.mrf.mxu0
    %v1154 = vadd.f32 %v791, %v1153
    %v1155 = vpop.f32.mrf.mxu0
    %1156 = vdwg.mxu0
    %1157 = vmatpush.bf16.msra.mxu0 %v1051
    %1158 = vmatpush.bf16.msra.mxu0 %v1047
    %1159 = vmatpush.bf16.msra.mxu0 %v1043
    %1160 = vmatpush.bf16.msra.mxu0 %v1039
    %1161 = vmatpush.bf16.msra.mxu0 %v1035
    %1162 = vmatpush.bf16.msra.mxu0 %v1031
    %1163 = vmatpush.bf16.msra.mxu0 %v1027
    %1164 = vmatpush.bf16.msra.mxu0 %v1023
    %1165 = vmatmul.bf16.gmra.mxu0 %v788
    %v1166 = vpop.f32.mrf.mxu0
    %v1167 = vadd.f32 %v1154, %v1166
    %v1168 = vpop.f32.mrf.mxu0
    %1169 = vdwg.mxu0
    %1170 = vmatpush.bf16.msra.mxu0 %v1020
    %1171 = vmatpush.bf16.msra.mxu0 %v1016
    %1172 = vmatpush.bf16.msra.mxu0 %v1012
    %1173 = vmatpush.bf16.msra.mxu0 %v1008
    %1174 = vmatpush.bf16.msra.mxu0 %v1004
    %1175 = vmatpush.bf16.msra.mxu0 %v1000
    %1176 = vmatpush.bf16.msra.mxu0 %v996
    %1177 = vmatpush.bf16.msra.mxu0 %v992
    %1178 = vmatmul.bf16.gmra.mxu0 %v787
    %v1179 = vpop.f32.mrf.mxu0
    %v1180 = vadd.f32 %v792, %v1179
    %v1181 = vpop.f32.mrf.mxu0
    %1182 = vdwg.mxu0
    %1183 = vmatpush.bf16.msra.mxu0 %v1052
    %1184 = vmatpush.bf16.msra.mxu0 %v1048
    %1185 = vmatpush.bf16.msra.mxu0 %v1044
    %1186 = vmatpush.bf16.msra.mxu0 %v1040
    %1187 = vmatpush.bf16.msra.mxu0 %v1036
    %1188 = vmatpush.bf16.msra.mxu0 %v1032
    %1189 = vmatpush.bf16.msra.mxu0 %v1028
    %1190 = vmatpush.bf16.msra.mxu0 %v1024
    %1191 = vmatmul.bf16.gmra.mxu0 %v788
    %v1192 = vpop.f32.mrf.mxu0
    %v1193 = vadd.f32 %v1180, %v1192
    %v1194 = vpop.f32.mrf.mxu0
    %1195 = vdwg.mxu0
    %1196 = vmatpush.bf16.msra.mxu0 %v1021
    %1197 = vmatpush.bf16.msra.mxu0 %v1017
    %1198 = vmatpush.bf16.msra.mxu0 %v1013
    %1199 = vmatpush.bf16.msra.mxu0 %v1009
    %1200 = vmatpush.bf16.msra.mxu0 %v1005
    %1201 = vmatpush.bf16.msra.mxu0 %v1001
    %1202 = vmatpush.bf16.msra.mxu0 %v997
    %1203 = vmatpush.bf16.msra.mxu0 %v993
    %1204 = vmatmul.bf16.gmra.mxu0 %v787
    %v1205 = vpop.f32.mrf.mxu0
    %v1206 = vadd.f32 %v793, %v1205
    %v1207 = vpop.f32.mrf.mxu0
    %1208 = vdwg.mxu0
    %1209 = vmatpush.bf16.msra.mxu0 %v1053
    %1210 = vmatpush.bf16.msra.mxu0 %v1049
    %1211 = vmatpush.bf16.msra.mxu0 %v1045
    %1212 = vmatpush.bf16.msra.mxu0 %v1041
    %1213 = vmatpush.bf16.msra.mxu0 %v1037
    %1214 = vmatpush.bf16.msra.mxu0 %v1033
    %1215 = vmatpush.bf16.msra.mxu0 %v1029
    %1216 = vmatpush.bf16.msra.mxu0 %v1025
    %1217 = vmatmul.bf16.gmra.mxu0 %v788
    %v1218 = vpop.f32.mrf.mxu0
    %v1219 = vadd.f32 %v1206, %v1218
    %v1220 = vpop.f32.mrf.mxu0
    %1221 = vdwg.mxu0
    %v1222 = vxor.u32 %v1141, 2147483648
    %v1223 = vmul.f32 %v1222, 1.442695
    %v1224 = vpow.pop %v1223
    %v1225 = vadd.f32 %v1224, 1.0
    %v1226 = vrcp.pop %v1225
    %v1227 = vmul.f32 %v1225, %v1226
    %v1228 = vsub.f32 1.0, %v1227
    %v1229 = vmul.f32 %v1226, %v1228
    %v1230 = vadd.f32 %v1226, %v1229
    %vm1231 = vweird.f32 %v1225
    %vm1232 = vweird.f32 %v1226
    %vm1233 = vmor %vm1231, %vm1232
    %v1234 = vsel %vm1233, %v1226, %v1230
    %v1235 = vand.u32 2147483647, %v1225
    %vm1236 = vcmp.eq.f32.partialorder %v1235, 8.507059e+37
    %v1237 = vand.u32 %v1225, 2147483648
    %v1238 = vor.u32 1.1754944e-38, %v1237
    %v1239 = vsel %vm1236, %v1238, %v1234
    %v1240 = vmul.f32 1.0, %v1239
    %v1241 = vxor.u32 %v1167, 2147483648
    %v1242 = vmul.f32 %v1241, 1.442695
    %v1243 = vpow.pop %v1242
    %v1244 = vadd.f32 %v1243, 1.0
    %v1245 = vrcp.pop %v1244
    %v1246 = vmul.f32 %v1244, %v1245
    %v1247 = vsub.f32 1.0, %v1246
    %v1248 = vmul.f32 %v1245, %v1247
    %v1249 = vadd.f32 %v1245, %v1248
    %vm1250 = vweird.f32 %v1244
    %vm1251 = vweird.f32 %v1245
    %vm1252 = vmor %vm1250, %vm1251
    %v1253 = vsel %vm1252, %v1245, %v1249
    %v1254 = vand.u32 2147483647, %v1244
    %vm1255 = vcmp.eq.f32.partialorder %v1254, 8.507059e+37
    %v1256 = vand.u32 %v1244, 2147483648
    %v1257 = vor.u32 1.1754944e-38, %v1256
    %v1258 = vsel %vm1255, %v1257, %v1253
    %v1259 = vmul.f32 1.0, %v1258
    %v1260 = vtanh.pop %v1193
    %v1261 = vxor.u32 %v1219, 2147483648
    %v1262 = vmul.f32 %v1261, 1.442695
    %v1263 = vpow.pop %v1262
    %v1264 = vadd.f32 %v1263, 1.0
    %v1265 = vrcp.pop %v1264
    %v1266 = vmul.f32 %v1264, %v1265
    %v1267 = vsub.f32 1.0, %v1266
    %v1268 = vmul.f32 %v1265, %v1267
    %v1269 = vadd.f32 %v1265, %v1268
    %vm1270 = vweird.f32 %v1264
    %vm1271 = vweird.f32 %v1265
    %vm1272 = vmor %vm1270, %vm1271
    %v1273 = vsel %vm1272, %v1265, %v1269
    %v1274 = vand.u32 2147483647, %v1264
    %vm1275 = vcmp.eq.f32.partialorder %v1274, 8.507059e+37
    %v1276 = vand.u32 %v1264, 2147483648
    %v1277 = vor.u32 1.1754944e-38, %v1276
    %v1278 = vsel %vm1275, %v1277, %v1273
    %v1279 = vmul.f32 1.0, %v1278
    %v1280 = vmul.f32 %v1259, 0.0
    %v1281 = vmul.f32 %v1240, %v1260
    %v1282 = vadd.f32 %v1280, %v1281
    %v1283 = vtanh.pop %v1282
    %v1284 = vmul.f32 %v1279, %v1283
    %v1285 = vpack.c.bf16 %v1284, %v1284
    %v1287 = vperm.slane %v285, 0
    %v1305 = vunpack.c.l.b16 %v269
    %v1306 = vunpack.c.l.b16 %v270
    %v1307 = vunpack.c.l.b16 %v271
    %v1308 = vunpack.c.l.b16 %v272
    %v1309 = vunpack.c.l.b16 %v273
    %v1310 = vunpack.c.l.b16 %v274
    %v1311 = vunpack.c.l.b16 %v275
    %v1312 = vunpack.c.l.b16 %v276
    %v1313 = vunpack.c.l.b16 %v277
    %v1314 = vunpack.c.l.b16 %v278
    %v1315 = vunpack.c.l.b16 %v279
    %v1316 = vunpack.c.l.b16 %v280
    %v1317 = vunpack.c.l.b16 %v281
    %v1318 = vunpack.c.l.b16 %v282
    %v1319 = vunpack.c.l.b16 %v283
    %v1320 = vunpack.c.l.b16 %v284
    %v1321 = vpack.c.b16 %v1306, %v1305
    %v1322 = vpack.c.b16 %v1308, %v1307
    %v1323 = vpack.c.b16 %v1310, %v1309
    %v1324 = vpack.c.b16 %v1312, %v1311
    %v1325 = vpack.c.b16 %v1314, %v1313
    %v1326 = vpack.c.b16 %v1316, %v1315
    %v1327 = vpack.c.b16 %v1318, %v1317
    %v1328 = vpack.c.b16 %v1320, %v1319
    %1337 = vmatpush.bf16.msra.mxu0 %v1328
    %1338 = vmatpush.bf16.msra.mxu0 %v1327
    %1339 = vmatpush.bf16.msra.mxu0 %v1326
    %1340 = vmatpush.bf16.msra.mxu0 %v1325
    %1341 = vmatpush.bf16.msra.mxu0 %v1324
    %1342 = vmatpush.bf16.msra.mxu0 %v1323
    %1343 = vmatpush.bf16.msra.mxu0 %v1322
    %1344 = vmatpush.bf16.msra.mxu0 %v1321
    %1345 = vmatmul.bf16.gmra.mxu0 %v1285
    %v1346 = vpop.f32.mrf.mxu0
    %v1347 = vadd.f32 %v1287, %v1346
    %v1348 = vpop.f32.mrf.mxu0
    %1349 = vdwg.mxu0
    %1350 = vmax.xlane.f32.xlu0 %v1347
    %v1351 = vpop.xlane.xlu0 %1350
    %v1352 = vsub.f32 %v1347, %v1351
    %v1353 = vmul.f32 %v1352, 1.442695
    %v1354 = vpow.pop %v1353
    %1355 = vadd.xlane.f32.xlu0 %v1354
    %v1356 = vpop.xlane.xlu0 %1355
    %v1357 = vrcp.pop %v1356
    %v1358 = vmul.f32 %v1354, %v1357
    %1359 = vst [vmem:[#allocation14] sm:$0xff] %v1358
    %v1360 = vld [vmem:[#allocation2] sm:$0xf]
    %v1361 = vunpack.c.l.bf16 %v1360
    %v1362 = vpack.c.bf16 %v1361, %v1361
    %1363 = vmatpush.bf16.msra.mxu0 %v520
    %1364 = vmatpush.bf16.msra.mxu0 %v516
    %1365 = vmatpush.bf16.msra.mxu0 %v512
    %1366 = vmatpush.bf16.msra.mxu0 %v508
    %1367 = vmatpush.bf16.msra.mxu0 %v504
    %1368 = vmatpush.bf16.msra.mxu0 %v500
    %1369 = vmatpush.bf16.msra.mxu0 %v496
    %1370 = vmatpush.bf16.msra.mxu0 %v492
    %1371 = vmatmul.bf16.gmra.mxu0 %v1362
    %v1372 = vpop.f32.mrf.mxu0
    %v1373 = vadd.f32 %v292, %v1372
    %v1374 = vpop.f32.mrf.mxu0
    %1375 = vdwg.mxu0
    %1376 = vmatpush.bf16.msra.mxu0 %v552
    %1377 = vmatpush.bf16.msra.mxu0 %v548
    %1378 = vmatpush.bf16.msra.mxu0 %v544
    %1379 = vmatpush.bf16.msra.mxu0 %v540
    %1380 = vmatpush.bf16.msra.mxu0 %v536
    %1381 = vmatpush.bf16.msra.mxu0 %v532
    %1382 = vmatpush.bf16.msra.mxu0 %v528
    %1383 = vmatpush.bf16.msra.mxu0 %v524
    %1384 = vmatmul.bf16.gmra.mxu0 %v787
    %v1385 = vpop.f32.mrf.mxu0
    %v1386 = vadd.f32 %v1373, %v1385
    %v1387 = vpop.f32.mrf.mxu0
    %1388 = vdwg.mxu0
    %1389 = vmatpush.bf16.msra.mxu0 %v521
    %1390 = vmatpush.bf16.msra.mxu0 %v517
    %1391 = vmatpush.bf16.msra.mxu0 %v513
    %1392 = vmatpush.bf16.msra.mxu0 %v509
    %1393 = vmatpush.bf16.msra.mxu0 %v505
    %1394 = vmatpush.bf16.msra.mxu0 %v501
    %1395 = vmatpush.bf16.msra.mxu0 %v497
    %1396 = vmatpush.bf16.msra.mxu0 %v493
    %1397 = vmatmul.bf16.gmra.mxu0 %v1362
    %v1398 = vpop.f32.mrf.mxu0
    %v1399 = vadd.f32 %v293, %v1398
    %v1400 = vpop.f32.mrf.mxu0
    %1401 = vdwg.mxu0
    %1402 = vmatpush.bf16.msra.mxu0 %v553
    %1403 = vmatpush.bf16.msra.mxu0 %v549
    %1404 = vmatpush.bf16.msra.mxu0 %v545
    %1405 = vmatpush.bf16.msra.mxu0 %v541
    %1406 = vmatpush.bf16.msra.mxu0 %v537
    %1407 = vmatpush.bf16.msra.mxu0 %v533
    %1408 = vmatpush.bf16.msra.mxu0 %v529
    %1409 = vmatpush.bf16.msra.mxu0 %v525
    %1410 = vmatmul.bf16.gmra.mxu0 %v787
    %v1411 = vpop.f32.mrf.mxu0
    %v1412 = vadd.f32 %v1399, %v1411
    %v1413 = vpop.f32.mrf.mxu0
    %1414 = vdwg.mxu0
    %1415 = vmatpush.bf16.msra.mxu0 %v522
    %1416 = vmatpush.bf16.msra.mxu0 %v518
    %1417 = vmatpush.bf16.msra.mxu0 %v514
    %1418 = vmatpush.bf16.msra.mxu0 %v510
    %1419 = vmatpush.bf16.msra.mxu0 %v506
    %1420 = vmatpush.bf16.msra.mxu0 %v502
    %1421 = vmatpush.bf16.msra.mxu0 %v498
    %1422 = vmatpush.bf16.msra.mxu0 %v494
    %1423 = vmatmul.bf16.gmra.mxu0 %v1362
    %v1424 = vpop.f32.mrf.mxu0
    %v1425 = vadd.f32 %v294, %v1424
    %v1426 = vpop.f32.mrf.mxu0
    %1427 = vdwg.mxu0
    %1428 = vmatpush.bf16.msra.mxu0 %v554
    %1429 = vmatpush.bf16.msra.mxu0 %v550
    %1430 = vmatpush.bf16.msra.mxu0 %v546
    %1431 = vmatpush.bf16.msra.mxu0 %v542
    %1432 = vmatpush.bf16.msra.mxu0 %v538
    %1433 = vmatpush.bf16.msra.mxu0 %v534
    %1434 = vmatpush.bf16.msra.mxu0 %v530
    %1435 = vmatpush.bf16.msra.mxu0 %v526
    %1436 = vmatmul.bf16.gmra.mxu0 %v787
    %v1437 = vpop.f32.mrf.mxu0
    %v1438 = vadd.f32 %v1425, %v1437
    %v1439 = vpop.f32.mrf.mxu0
    %1440 = vdwg.mxu0
    %1441 = vmatpush.bf16.msra.mxu0 %v523
    %1442 = vmatpush.bf16.msra.mxu0 %v519
    %1443 = vmatpush.bf16.msra.mxu0 %v515
    %1444 = vmatpush.bf16.msra.mxu0 %v511
    %1445 = vmatpush.bf16.msra.mxu0 %v507
    %1446 = vmatpush.bf16.msra.mxu0 %v503
    %1447 = vmatpush.bf16.msra.mxu0 %v499
    %1448 = vmatpush.bf16.msra.mxu0 %v495
    %1449 = vmatmul.bf16.gmra.mxu0 %v1362
    %v1450 = vpop.f32.mrf.mxu0
    %v1451 = vadd.f32 %v295, %v1450
    %v1452 = vpop.f32.mrf.mxu0
    %1453 = vdwg.mxu0
    %1454 = vmatpush.bf16.msra.mxu0 %v555
    %1455 = vmatpush.bf16.msra.mxu0 %v551
    %1456 = vmatpush.bf16.msra.mxu0 %v547
    %1457 = vmatpush.bf16.msra.mxu0 %v543
    %1458 = vmatpush.bf16.msra.mxu0 %v539
    %1459 = vmatpush.bf16.msra.mxu0 %v535
    %1460 = vmatpush.bf16.msra.mxu0 %v531
    %1461 = vmatpush.bf16.msra.mxu0 %v527
    %1462 = vmatmul.bf16.gmra.mxu0 %v787
    %v1463 = vpop.f32.mrf.mxu0
    %v1464 = vadd.f32 %v1451, %v1463
    %v1465 = vpop.f32.mrf.mxu0
    %1466 = vdwg.mxu0
    %v1467 = vxor.u32 %v1386, 2147483648
    %v1468 = vmul.f32 %v1467, 1.442695
    %v1469 = vpow.pop %v1468
    %v1470 = vadd.f32 %v1469, 1.0
    %v1471 = vrcp.pop %v1470
    %v1472 = vmul.f32 %v1470, %v1471
    %v1473 = vsub.f32 1.0, %v1472
    %v1474 = vmul.f32 %v1471, %v1473
    %v1475 = vadd.f32 %v1471, %v1474
    %vm1476 = vweird.f32 %v1470
    %vm1477 = vweird.f32 %v1471
    %vm1478 = vmor %vm1476, %vm1477
    %v1479 = vsel %vm1478, %v1471, %v1475
    %v1480 = vand.u32 2147483647, %v1470
    %vm1481 = vcmp.eq.f32.partialorder %v1480, 8.507059e+37
    %v1482 = vand.u32 %v1470, 2147483648
    %v1483 = vor.u32 1.1754944e-38, %v1482
    %v1484 = vsel %vm1481, %v1483, %v1479
    %v1485 = vmul.f32 1.0, %v1484
    %v1486 = vxor.u32 %v1412, 2147483648
    %v1487 = vmul.f32 %v1486, 1.442695
    %v1488 = vpow.pop %v1487
    %v1489 = vadd.f32 %v1488, 1.0
    %v1490 = vrcp.pop %v1489
    %v1491 = vmul.f32 %v1489, %v1490
    %v1492 = vsub.f32 1.0, %v1491
    %v1493 = vmul.f32 %v1490, %v1492
    %v1494 = vadd.f32 %v1490, %v1493
    %vm1495 = vweird.f32 %v1489
    %vm1496 = vweird.f32 %v1490
    %vm1497 = vmor %vm1495, %vm1496
    %v1498 = vsel %vm1497, %v1490, %v1494
    %v1499 = vand.u32 2147483647, %v1489
    %vm1500 = vcmp.eq.f32.partialorder %v1499, 8.507059e+37
    %v1501 = vand.u32 %v1489, 2147483648
    %v1502 = vor.u32 1.1754944e-38, %v1501
    %v1503 = vsel %vm1500, %v1502, %v1498
    %v1504 = vmul.f32 1.0, %v1503
    %v1505 = vtanh.pop %v1438
    %v1506 = vxor.u32 %v1464, 2147483648
    %v1507 = vmul.f32 %v1506, 1.442695
    %v1508 = vpow.pop %v1507
    %v1509 = vadd.f32 %v1508, 1.0
    %v1510 = vrcp.pop %v1509
    %v1511 = vmul.f32 %v1509, %v1510
    %v1512 = vsub.f32 1.0, %v1511
    %v1513 = vmul.f32 %v1510, %v1512
    %v1514 = vadd.f32 %v1510, %v1513
    %vm1515 = vweird.f32 %v1509
    %vm1516 = vweird.f32 %v1510
    %vm1517 = vmor %vm1515, %vm1516
    %v1518 = vsel %vm1517, %v1510, %v1514
    %v1519 = vand.u32 2147483647, %v1509
    %vm1520 = vcmp.eq.f32.partialorder %v1519, 8.507059e+37
    %v1521 = vand.u32 %v1509, 2147483648
    %v1522 = vor.u32 1.1754944e-38, %v1521
    %v1523 = vsel %vm1520, %v1522, %v1518
    %v1524 = vmul.f32 1.0, %v1523
    %v1525 = vmul.f32 %v1504, %v784
    %v1526 = vmul.f32 %v1485, %v1505
    %v1527 = vadd.f32 %v1525, %v1526
    %v1528 = vtanh.pop %v1527
    %v1529 = vmul.f32 %v1524, %v1528
    %v1530 = vpack.c.bf16 %v1529, %v1529
    %1531 = vmatpush.bf16.msra.mxu0 %v1018
    %1532 = vmatpush.bf16.msra.mxu0 %v1014
    %1533 = vmatpush.bf16.msra.mxu0 %v1010
    %1534 = vmatpush.bf16.msra.mxu0 %v1006
    %1535 = vmatpush.bf16.msra.mxu0 %v1002
    %1536 = vmatpush.bf16.msra.mxu0 %v998
    %1537 = vmatpush.bf16.msra.mxu0 %v994
    %1538 = vmatpush.bf16.msra.mxu0 %v990
    %1539 = vmatmul.bf16.gmra.mxu0 %v1530
    %v1540 = vpop.f32.mrf.mxu0
    %v1541 = vadd.f32 %v790, %v1540
    %v1542 = vpop.f32.mrf.mxu0
    %1543 = vdwg.mxu0
    %1544 = vmatpush.bf16.msra.mxu0 %v1050
    %1545 = vmatpush.bf16.msra.mxu0 %v1046
    %1546 = vmatpush.bf16.msra.mxu0 %v1042
    %1547 = vmatpush.bf16.msra.mxu0 %v1038
    %1548 = vmatpush.bf16.msra.mxu0 %v1034
    %1549 = vmatpush.bf16.msra.mxu0 %v1030
    %1550 = vmatpush.bf16.msra.mxu0 %v1026
    %1551 = vmatpush.bf16.msra.mxu0 %v1022
    %1552 = vmatmul.bf16.gmra.mxu0 %v1285
    %v1553 = vpop.f32.mrf.mxu0
    %v1554 = vadd.f32 %v1541, %v1553
    %v1555 = vpop.f32.mrf.mxu0
    %1556 = vdwg.mxu0
    %1557 = vmatpush.bf16.msra.mxu0 %v1019
    %1558 = vmatpush.bf16.msra.mxu0 %v1015
    %1559 = vmatpush.bf16.msra.mxu0 %v1011
    %1560 = vmatpush.bf16.msra.mxu0 %v1007
    %1561 = vmatpush.bf16.msra.mxu0 %v1003
    %1562 = vmatpush.bf16.msra.mxu0 %v999
    %1563 = vmatpush.bf16.msra.mxu0 %v995
    %1564 = vmatpush.bf16.msra.mxu0 %v991
    %1565 = vmatmul.bf16.gmra.mxu0 %v1530
    %v1566 = vpop.f32.mrf.mxu0
    %v1567 = vadd.f32 %v791, %v1566
    %v1568 = vpop.f32.mrf.mxu0
    %1569 = vdwg.mxu0
    %1570 = vmatpush.bf16.msra.mxu0 %v1051
    %1571 = vmatpush.bf16.msra.mxu0 %v1047
    %1572 = vmatpush.bf16.msra.mxu0 %v1043
    %1573 = vmatpush.bf16.msra.mxu0 %v1039
    %1574 = vmatpush.bf16.msra.mxu0 %v1035
    %1575 = vmatpush.bf16.msra.mxu0 %v1031
    %1576 = vmatpush.bf16.msra.mxu0 %v1027
    %1577 = vmatpush.bf16.msra.mxu0 %v1023
    %1578 = vmatmul.bf16.gmra.mxu0 %v1285
    %v1579 = vpop.f32.mrf.mxu0
    %v1580 = vadd.f32 %v1567, %v1579
    %v1581 = vpop.f32.mrf.mxu0
    %1582 = vdwg.mxu0
    %1583 = vmatpush.bf16.msra.mxu0 %v1020
    %1584 = vmatpush.bf16.msra.mxu0 %v1016
    %1585 = vmatpush.bf16.msra.mxu0 %v1012
    %1586 = vmatpush.bf16.msra.mxu0 %v1008
    %1587 = vmatpush.bf16.msra.mxu0 %v1004
    %1588 = vmatpush.bf16.msra.mxu0 %v1000
    %1589 = vmatpush.bf16.msra.mxu0 %v996
    %1590 = vmatpush.bf16.msra.mxu0 %v992
    %1591 = vmatmul.bf16.gmra.mxu0 %v1530
    %v1592 = vpop.f32.mrf.mxu0
    %v1593 = vadd.f32 %v792, %v1592
    %v1594 = vpop.f32.mrf.mxu0
    %1595 = vdwg.mxu0
    %1596 = vmatpush.bf16.msra.mxu0 %v1052
    %1597 = vmatpush.bf16.msra.mxu0 %v1048
    %1598 = vmatpush.bf16.msra.mxu0 %v1044
    %1599 = vmatpush.bf16.msra.mxu0 %v1040
    %1600 = vmatpush.bf16.msra.mxu0 %v1036
    %1601 = vmatpush.bf16.msra.mxu0 %v1032
    %1602 = vmatpush.bf16.msra.mxu0 %v1028
    %1603 = vmatpush.bf16.msra.mxu0 %v1024
    %1604 = vmatmul.bf16.gmra.mxu0 %v1285
    %v1605 = vpop.f32.mrf.mxu0
    %v1606 = vadd.f32 %v1593, %v1605
    %v1607 = vpop.f32.mrf.mxu0
    %1608 = vdwg.mxu0
    %1609 = vmatpush.bf16.msra.mxu0 %v1021
    %1610 = vmatpush.bf16.msra.mxu0 %v1017
    %1611 = vmatpush.bf16.msra.mxu0 %v1013
    %1612 = vmatpush.bf16.msra.mxu0 %v1009
    %1613 = vmatpush.bf16.msra.mxu0 %v1005
    %1614 = vmatpush.bf16.msra.mxu0 %v1001
    %1615 = vmatpush.bf16.msra.mxu0 %v997
    %1616 = vmatpush.bf16.msra.mxu0 %v993
    %1617 = vmatmul.bf16.gmra.mxu0 %v1530
    %v1618 = vpop.f32.mrf.mxu0
    %v1619 = vadd.f32 %v793, %v1618
    %v1620 = vpop.f32.mrf.mxu0
    %1621 = vdwg.mxu0
    %1622 = vmatpush.bf16.msra.mxu0 %v1053
    %1623 = vmatpush.bf16.msra.mxu0 %v1049
    %1624 = vmatpush.bf16.msra.mxu0 %v1045
    %1625 = vmatpush.bf16.msra.mxu0 %v1041
    %1626 = vmatpush.bf16.msra.mxu0 %v1037
    %1627 = vmatpush.bf16.msra.mxu0 %v1033
    %1628 = vmatpush.bf16.msra.mxu0 %v1029
    %1629 = vmatpush.bf16.msra.mxu0 %v1025
    %1630 = vmatmul.bf16.gmra.mxu0 %v1285
    %v1631 = vpop.f32.mrf.mxu0
    %v1632 = vadd.f32 %v1619, %v1631
    %v1633 = vpop.f32.mrf.mxu0
    %1634 = vdwg.mxu0
    %v1635 = vxor.u32 %v1554, 2147483648
    %v1636 = vmul.f32 %v1635, 1.442695
    %v1637 = vpow.pop %v1636
    %v1638 = vadd.f32 %v1637, 1.0
    %v1639 = vrcp.pop %v1638
    %v1640 = vmul.f32 %v1638, %v1639
    %v1641 = vsub.f32 1.0, %v1640
    %v1642 = vmul.f32 %v1639, %v1641
    %v1643 = vadd.f32 %v1639, %v1642
    %vm1644 = vweird.f32 %v1638
    %vm1645 = vweird.f32 %v1639
    %vm1646 = vmor %vm1644, %vm1645
    %v1647 = vsel %vm1646, %v1639, %v1643
    %v1648 = vand.u32 2147483647, %v1638
    %vm1649 = vcmp.eq.f32.partialorder %v1648, 8.507059e+37
    %v1650 = vand.u32 %v1638, 2147483648
    %v1651 = vor.u32 1.1754944e-38, %v1650
    %v1652 = vsel %vm1649, %v1651, %v1647
    %v1653 = vmul.f32 1.0, %v1652
    %v1654 = vxor.u32 %v1580, 2147483648
    %v1655 = vmul.f32 %v1654, 1.442695
    %v1656 = vpow.pop %v1655
    %v1657 = vadd.f32 %v1656, 1.0
    %v1658 = vrcp.pop %v1657
    %v1659 = vmul.f32 %v1657, %v1658
    %v1660 = vsub.f32 1.0, %v1659
    %v1661 = vmul.f32 %v1658, %v1660
    %v1662 = vadd.f32 %v1658, %v1661
    %vm1663 = vweird.f32 %v1657
    %vm1664 = vweird.f32 %v1658
    %vm1665 = vmor %vm1663, %vm1664
    %v1666 = vsel %vm1665, %v1658, %v1662
    %v1667 = vand.u32 2147483647, %v1657
    %vm1668 = vcmp.eq.f32.partialorder %v1667, 8.507059e+37
    %v1669 = vand.u32 %v1657, 2147483648
    %v1670 = vor.u32 1.1754944e-38, %v1669
    %v1671 = vsel %vm1668, %v1670, %v1666
    %v1672 = vmul.f32 1.0, %v1671
    %v1673 = vtanh.pop %v1606
    %v1674 = vxor.u32 %v1632, 2147483648
    %v1675 = vmul.f32 %v1674, 1.442695
    %v1676 = vpow.pop %v1675
    %v1677 = vadd.f32 %v1676, 1.0
    %v1678 = vrcp.pop %v1677
    %v1679 = vmul.f32 %v1677, %v1678
    %v1680 = vsub.f32 1.0, %v1679
    %v1681 = vmul.f32 %v1678, %v1680
    %v1682 = vadd.f32 %v1678, %v1681
    %vm1683 = vweird.f32 %v1677
    %vm1684 = vweird.f32 %v1678
    %vm1685 = vmor %vm1683, %vm1684
    %v1686 = vsel %vm1685, %v1678, %v1682
    %v1687 = vand.u32 2147483647, %v1677
    %vm1688 = vcmp.eq.f32.partialorder %v1687, 8.507059e+37
    %v1689 = vand.u32 %v1677, 2147483648
    %v1690 = vor.u32 1.1754944e-38, %v1689
    %v1691 = vsel %vm1688, %v1690, %v1686
    %v1692 = vmul.f32 1.0, %v1691
    %v1693 = vmul.f32 %v1672, %v1282
    %v1694 = vmul.f32 %v1653, %v1673
    %v1695 = vadd.f32 %v1693, %v1694
    %v1696 = vtanh.pop %v1695
    %v1697 = vmul.f32 %v1692, %v1696
    %v1698 = vpack.c.bf16 %v1697, %v1697
    %1699 = vmatpush.bf16.msra.mxu0 %v1328
    %1700 = vmatpush.bf16.msra.mxu0 %v1327
    %1701 = vmatpush.bf16.msra.mxu0 %v1326
    %1702 = vmatpush.bf16.msra.mxu0 %v1325
    %1703 = vmatpush.bf16.msra.mxu0 %v1324
    %1704 = vmatpush.bf16.msra.mxu0 %v1323
    %1705 = vmatpush.bf16.msra.mxu0 %v1322
    %1706 = vmatpush.bf16.msra.mxu0 %v1321
    %1707 = vmatmul.bf16.gmra.mxu0 %v1698
    %v1708 = vpop.f32.mrf.mxu0
    %v1709 = vadd.f32 %v1287, %v1708
    %v1710 = vpop.f32.mrf.mxu0
    %1711 = vdwg.mxu0
    %1712 = vmax.xlane.f32.xlu0 %v1709
    %v1713 = vpop.xlane.xlu0 %1712
    %v1714 = vsub.f32 %v1709, %v1713
    %v1715 = vmul.f32 %v1714, 1.442695
    %v1716 = vpow.pop %v1715
    %1717 = vadd.xlane.f32.xlu0 %v1716
    %v1718 = vpop.xlane.xlu0 %1717
    %v1719 = vrcp.pop %v1718
    %v1720 = vmul.f32 %v1716, %v1719
    %s1721 = scalar_lea.vmem [#allocation14], 8
    %1722 = vst [vmem:[%s1721] sm:$0xff] %v1720
    %s1723 = scalar_lea.vmem [#allocation2], 4
    %v1724 = vld [vmem:[%s1723] sm:$0xf]
    %v1725 = vunpack.c.l.bf16 %v1724
    %v1726 = vpack.c.bf16 %v1725, %v1725
    %1727 = vmatpush.bf16.msra.mxu0 %v520
    %1728 = vmatpush.bf16.msra.mxu0 %v516
    %1729 = vmatpush.bf16.msra.mxu0 %v512
    %1730 = vmatpush.bf16.msra.mxu0 %v508
    %1731 = vmatpush.bf16.msra.mxu0 %v504
    %1732 = vmatpush.bf16.msra.mxu0 %v500
    %1733 = vmatpush.bf16.msra.mxu0 %v496
    %1734 = vmatpush.bf16.msra.mxu0 %v492
    %1735 = vmatmul.bf16.gmra.mxu0 %v1726
    %v1736 = vpop.f32.mrf.mxu0
    %v1737 = vadd.f32 %v292, %v1736
    %v1738 = vpop.f32.mrf.mxu0
    %1739 = vdwg.mxu0
    %1740 = vmatpush.bf16.msra.mxu0 %v552
    %1741 = vmatpush.bf16.msra.mxu0 %v548
    %1742 = vmatpush.bf16.msra.mxu0 %v544
    %1743 = vmatpush.bf16.msra.mxu0 %v540
    %1744 = vmatpush.bf16.msra.mxu0 %v536
    %1745 = vmatpush.bf16.msra.mxu0 %v532
    %1746 = vmatpush.bf16.msra.mxu0 %v528
    %1747 = vmatpush.bf16.msra.mxu0 %v524
    %1748 = vmatmul.bf16.gmra.mxu0 %v1530
    %v1749 = vpop.f32.mrf.mxu0
    %v1750 = vadd.f32 %v1737, %v1749
    %v1751 = vpop.f32.mrf.mxu0
    %1752 = vdwg.mxu0
    %1753 = vmatpush.bf16.msra.mxu0 %v521
    %1754 = vmatpush.bf16.msra.mxu0 %v517
    %1755 = vmatpush.bf16.msra.mxu0 %v513
    %1756 = vmatpush.bf16.msra.mxu0 %v509
    %1757 = vmatpush.bf16.msra.mxu0 %v505
    %1758 = vmatpush.bf16.msra.mxu0 %v501
    %1759 = vmatpush.bf16.msra.mxu0 %v497
    %1760 = vmatpush.bf16.msra.mxu0 %v493
    %1761 = vmatmul.bf16.gmra.mxu0 %v1726
    %v1762 = vpop.f32.mrf.mxu0
    %v1763 = vadd.f32 %v293, %v1762
    %v1764 = vpop.f32.mrf.mxu0
    %1765 = vdwg.mxu0
    %1766 = vmatpush.bf16.msra.mxu0 %v553
    %1767 = vmatpush.bf16.msra.mxu0 %v549
    %1768 = vmatpush.bf16.msra.mxu0 %v545
    %1769 = vmatpush.bf16.msra.mxu0 %v541
    %1770 = vmatpush.bf16.msra.mxu0 %v537
    %1771 = vmatpush.bf16.msra.mxu0 %v533
    %1772 = vmatpush.bf16.msra.mxu0 %v529
    %1773 = vmatpush.bf16.msra.mxu0 %v525
    %1774 = vmatmul.bf16.gmra.mxu0 %v1530
    %v1775 = vpop.f32.mrf.mxu0
    %v1776 = vadd.f32 %v1763, %v1775
    %v1777 = vpop.f32.mrf.mxu0
    %1778 = vdwg.mxu0
    %1779 = vmatpush.bf16.msra.mxu0 %v522
    %1780 = vmatpush.bf16.msra.mxu0 %v518
    %1781 = vmatpush.bf16.msra.mxu0 %v514
    %1782 = vmatpush.bf16.msra.mxu0 %v510
    %1783 = vmatpush.bf16.msra.mxu0 %v506
    %1784 = vmatpush.bf16.msra.mxu0 %v502
    %1785 = vmatpush.bf16.msra.mxu0 %v498
    %1786 = vmatpush.bf16.msra.mxu0 %v494
    %1787 = vmatmul.bf16.gmra.mxu0 %v1726
    %v1788 = vpop.f32.mrf.mxu0
    %v1789 = vadd.f32 %v294, %v1788
    %v1790 = vpop.f32.mrf.mxu0
    %1791 = vdwg.mxu0
    %1792 = vmatpush.bf16.msra.mxu0 %v554
    %1793 = vmatpush.bf16.msra.mxu0 %v550
    %1794 = vmatpush.bf16.msra.mxu0 %v546
    %1795 = vmatpush.bf16.msra.mxu0 %v542
    %1796 = vmatpush.bf16.msra.mxu0 %v538
    %1797 = vmatpush.bf16.msra.mxu0 %v534
    %1798 = vmatpush.bf16.msra.mxu0 %v530
    %1799 = vmatpush.bf16.msra.mxu0 %v526
    %1800 = vmatmul.bf16.gmra.mxu0 %v1530
    %v1801 = vpop.f32.mrf.mxu0
    %v1802 = vadd.f32 %v1789, %v1801
    %v1803 = vpop.f32.mrf.mxu0
    %1804 = vdwg.mxu0
    %1805 = vmatpush.bf16.msra.mxu0 %v523
    %1806 = vmatpush.bf16.msra.mxu0 %v519
    %1807 = vmatpush.bf16.msra.mxu0 %v515
    %1808 = vmatpush.bf16.msra.mxu0 %v511
    %1809 = vmatpush.bf16.msra.mxu0 %v507
    %1810 = vmatpush.bf16.msra.mxu0 %v503
    %1811 = vmatpush.bf16.msra.mxu0 %v499
    %1812 = vmatpush.bf16.msra.mxu0 %v495
    %1813 = vmatmul.bf16.gmra.mxu0 %v1726
    %v1814 = vpop.f32.mrf.mxu0
    %v1815 = vadd.f32 %v295, %v1814
    %v1816 = vpop.f32.mrf.mxu0
    %1817 = vdwg.mxu0
    %1818 = vmatpush.bf16.msra.mxu0 %v555
    %1819 = vmatpush.bf16.msra.mxu0 %v551
    %1820 = vmatpush.bf16.msra.mxu0 %v547
    %1821 = vmatpush.bf16.msra.mxu0 %v543
    %1822 = vmatpush.bf16.msra.mxu0 %v539
    %1823 = vmatpush.bf16.msra.mxu0 %v535
    %1824 = vmatpush.bf16.msra.mxu0 %v531
    %1825 = vmatpush.bf16.msra.mxu0 %v527
    %1826 = vmatmul.bf16.gmra.mxu0 %v1530
    %v1827 = vpop.f32.mrf.mxu0
    %v1828 = vadd.f32 %v1815, %v1827
    %v1829 = vpop.f32.mrf.mxu0
    %1830 = vdwg.mxu0
    %v1831 = vxor.u32 %v1750, 2147483648
    %v1832 = vmul.f32 %v1831, 1.442695
    %v1833 = vpow.pop %v1832
    %v1834 = vadd.f32 %v1833, 1.0
    %v1835 = vrcp.pop %v1834
    %v1836 = vmul.f32 %v1834, %v1835
    %v1837 = vsub.f32 1.0, %v1836
    %v1838 = vmul.f32 %v1835, %v1837
    %v1839 = vadd.f32 %v1835, %v1838
    %vm1840 = vweird.f32 %v1834
    %vm1841 = vweird.f32 %v1835
    %vm1842 = vmor %vm1840, %vm1841
    %v1843 = vsel %vm1842, %v1835, %v1839
    %v1844 = vand.u32 2147483647, %v1834
    %vm1845 = vcmp.eq.f32.partialorder %v1844, 8.507059e+37
    %v1846 = vand.u32 %v1834, 2147483648
    %v1847 = vor.u32 1.1754944e-38, %v1846
    %v1848 = vsel %vm1845, %v1847, %v1843
    %v1849 = vmul.f32 1.0, %v1848
    %v1850 = vxor.u32 %v1776, 2147483648
    %v1851 = vmul.f32 %v1850, 1.442695
    %v1852 = vpow.pop %v1851
    %v1853 = vadd.f32 %v1852, 1.0
    %v1854 = vrcp.pop %v1853
    %v1855 = vmul.f32 %v1853, %v1854
    %v1856 = vsub.f32 1.0, %v1855
    %v1857 = vmul.f32 %v1854, %v1856
    %v1858 = vadd.f32 %v1854, %v1857
    %vm1859 = vweird.f32 %v1853
    %vm1860 = vweird.f32 %v1854
    %vm1861 = vmor %vm1859, %vm1860
    %v1862 = vsel %vm1861, %v1854, %v1858
    %v1863 = vand.u32 2147483647, %v1853
    %vm1864 = vcmp.eq.f32.partialorder %v1863, 8.507059e+37
    %v1865 = vand.u32 %v1853, 2147483648
    %v1866 = vor.u32 1.1754944e-38, %v1865
    %v1867 = vsel %vm1864, %v1866, %v1862
    %v1868 = vmul.f32 1.0, %v1867
    %v1869 = vtanh.pop %v1802
    %v1870 = vxor.u32 %v1828, 2147483648
    %v1871 = vmul.f32 %v1870, 1.442695
    %v1872 = vpow.pop %v1871
    %v1873 = vadd.f32 %v1872, 1.0
    %v1874 = vrcp.pop %v1873
    %v1875 = vmul.f32 %v1873, %v1874
    %v1876 = vsub.f32 1.0, %v1875
    %v1877 = vmul.f32 %v1874, %v1876
    %v1878 = vadd.f32 %v1874, %v1877
    %vm1879 = vweird.f32 %v1873
    %vm1880 = vweird.f32 %v1874
    %vm1881 = vmor %vm1879, %vm1880
    %v1882 = vsel %vm1881, %v1874, %v1878
    %v1883 = vand.u32 2147483647, %v1873
    %vm1884 = vcmp.eq.f32.partialorder %v1883, 8.507059e+37
    %v1885 = vand.u32 %v1873, 2147483648
    %v1886 = vor.u32 1.1754944e-38, %v1885
    %v1887 = vsel %vm1884, %v1886, %v1882
    %v1888 = vmul.f32 1.0, %v1887
    %v1889 = vmul.f32 %v1868, %v1527
    %v1890 = vmul.f32 %v1849, %v1869
    %v1891 = vadd.f32 %v1889, %v1890
    %v1892 = vtanh.pop %v1891
    %v1893 = vmul.f32 %v1888, %v1892
    %v1894 = vpack.c.bf16 %v1893, %v1893
    %1895 = vmatpush.bf16.msra.mxu0 %v1018
    %1896 = vmatpush.bf16.msra.mxu0 %v1014
    %1897 = vmatpush.bf16.msra.mxu0 %v1010
    %1898 = vmatpush.bf16.msra.mxu0 %v1006
    %1899 = vmatpush.bf16.msra.mxu0 %v1002
    %1900 = vmatpush.bf16.msra.mxu0 %v998
    %1901 = vmatpush.bf16.msra.mxu0 %v994
    %1902 = vmatpush.bf16.msra.mxu0 %v990
    %1903 = vmatmul.bf16.gmra.mxu0 %v1894
    %v1904 = vpop.f32.mrf.mxu0
    %v1905 = vadd.f32 %v790, %v1904
    %v1906 = vpop.f32.mrf.mxu0
    %1907 = vdwg.mxu0
    %1908 = vmatpush.bf16.msra.mxu0 %v1050
    %1909 = vmatpush.bf16.msra.mxu0 %v1046
    %1910 = vmatpush.bf16.msra.mxu0 %v1042
    %1911 = vmatpush.bf16.msra.mxu0 %v1038
    %1912 = vmatpush.bf16.msra.mxu0 %v1034
    %1913 = vmatpush.bf16.msra.mxu0 %v1030
    %1914 = vmatpush.bf16.msra.mxu0 %v1026
    %1915 = vmatpush.bf16.msra.mxu0 %v1022
    %1916 = vmatmul.bf16.gmra.mxu0 %v1698
    %v1917 = vpop.f32.mrf.mxu0
    %v1918 = vadd.f32 %v1905, %v1917
    %v1919 = vpop.f32.mrf.mxu0
    %1920 = vdwg.mxu0
    %1921 = vmatpush.bf16.msra.mxu0 %v1019
    %1922 = vmatpush.bf16.msra.mxu0 %v1015
    %1923 = vmatpush.bf16.msra.mxu0 %v1011
    %1924 = vmatpush.bf16.msra.mxu0 %v1007
    %1925 = vmatpush.bf16.msra.mxu0 %v1003
    %1926 = vmatpush.bf16.msra.mxu0 %v999
    %1927 = vmatpush.bf16.msra.mxu0 %v995
    %1928 = vmatpush.bf16.msra.mxu0 %v991
    %1929 = vmatmul.bf16.gmra.mxu0 %v1894
    %v1930 = vpop.f32.mrf.mxu0
    %v1931 = vadd.f32 %v791, %v1930
    %v1932 = vpop.f32.mrf.mxu0
    %1933 = vdwg.mxu0
    %1934 = vmatpush.bf16.msra.mxu0 %v1051
    %1935 = vmatpush.bf16.msra.mxu0 %v1047
    %1936 = vmatpush.bf16.msra.mxu0 %v1043
    %1937 = vmatpush.bf16.msra.mxu0 %v1039
    %1938 = vmatpush.bf16.msra.mxu0 %v1035
    %1939 = vmatpush.bf16.msra.mxu0 %v1031
    %1940 = vmatpush.bf16.msra.mxu0 %v1027
    %1941 = vmatpush.bf16.msra.mxu0 %v1023
    %1942 = vmatmul.bf16.gmra.mxu0 %v1698
    %v1943 = vpop.f32.mrf.mxu0
    %v1944 = vadd.f32 %v1931, %v1943
    %v1945 = vpop.f32.mrf.mxu0
    %1946 = vdwg.mxu0
    %1947 = vmatpush.bf16.msra.mxu0 %v1020
    %1948 = vmatpush.bf16.msra.mxu0 %v1016
    %1949 = vmatpush.bf16.msra.mxu0 %v1012
    %1950 = vmatpush.bf16.msra.mxu0 %v1008
    %1951 = vmatpush.bf16.msra.mxu0 %v1004
    %1952 = vmatpush.bf16.msra.mxu0 %v1000
    %1953 = vmatpush.bf16.msra.mxu0 %v996
    %1954 = vmatpush.bf16.msra.mxu0 %v992
    %1955 = vmatmul.bf16.gmra.mxu0 %v1894
    %v1956 = vpop.f32.mrf.mxu0
    %v1957 = vadd.f32 %v792, %v1956
    %v1958 = vpop.f32.mrf.mxu0
    %1959 = vdwg.mxu0
    %1960 = vmatpush.bf16.msra.mxu0 %v1052
    %1961 = vmatpush.bf16.msra.mxu0 %v1048
    %1962 = vmatpush.bf16.msra.mxu0 %v1044
    %1963 = vmatpush.bf16.msra.mxu0 %v1040
    %1964 = vmatpush.bf16.msra.mxu0 %v1036
    %1965 = vmatpush.bf16.msra.mxu0 %v1032
    %1966 = vmatpush.bf16.msra.mxu0 %v1028
    %1967 = vmatpush.bf16.msra.mxu0 %v1024
    %1968 = vmatmul.bf16.gmra.mxu0 %v1698
    %v1969 = vpop.f32.mrf.mxu0
    %v1970 = vadd.f32 %v1957, %v1969
    %v1971 = vpop.f32.mrf.mxu0
    %1972 = vdwg.mxu0
    %1973 = vmatpush.bf16.msra.mxu0 %v1021
    %1974 = vmatpush.bf16.msra.mxu0 %v1017
    %1975 = vmatpush.bf16.msra.mxu0 %v1013
    %1976 = vmatpush.bf16.msra.mxu0 %v1009
    %1977 = vmatpush.bf16.msra.mxu0 %v1005
    %1978 = vmatpush.bf16.msra.mxu0 %v1001
    %1979 = vmatpush.bf16.msra.mxu0 %v997
    %1980 = vmatpush.bf16.msra.mxu0 %v993
    %1981 = vmatmul.bf16.gmra.mxu0 %v1894
    %v1982 = vpop.f32.mrf.mxu0
    %v1983 = vadd.f32 %v793, %v1982
    %v1984 = vpop.f32.mrf.mxu0
    %1985 = vdwg.mxu0
    %1986 = vmatpush.bf16.msra.mxu0 %v1053
    %1987 = vmatpush.bf16.msra.mxu0 %v1049
    %1988 = vmatpush.bf16.msra.mxu0 %v1045
    %1989 = vmatpush.bf16.msra.mxu0 %v1041
    %1990 = vmatpush.bf16.msra.mxu0 %v1037
    %1991 = vmatpush.bf16.msra.mxu0 %v1033
    %1992 = vmatpush.bf16.msra.mxu0 %v1029
    %1993 = vmatpush.bf16.msra.mxu0 %v1025
    %1994 = vmatmul.bf16.gmra.mxu0 %v1698
    %v1995 = vpop.f32.mrf.mxu0
    %v1996 = vadd.f32 %v1983, %v1995
    %v1997 = vpop.f32.mrf.mxu0
    %1998 = vdwg.mxu0
    %v1999 = vxor.u32 %v1918, 2147483648
    %v2000 = vmul.f32 %v1999, 1.442695
    %v2001 = vpow.pop %v2000
    %v2002 = vadd.f32 %v2001, 1.0
    %v2003 = vrcp.pop %v2002
    %v2004 = vmul.f32 %v2002, %v2003
    %v2005 = vsub.f32 1.0, %v2004
    %v2006 = vmul.f32 %v2003, %v2005
    %v2007 = vadd.f32 %v2003, %v2006
    %vm2008 = vweird.f32 %v2002
    %vm2009 = vweird.f32 %v2003
    %vm2010 = vmor %vm2008, %vm2009
    %v2011 = vsel %vm2010, %v2003, %v2007
    %v2012 = vand.u32 2147483647, %v2002
    %vm2013 = vcmp.eq.f32.partialorder %v2012, 8.507059e+37
    %v2014 = vand.u32 %v2002, 2147483648
    %v2015 = vor.u32 1.1754944e-38, %v2014
    %v2016 = vsel %vm2013, %v2015, %v2011
    %v2017 = vmul.f32 1.0, %v2016
    %v2018 = vxor.u32 %v1944, 2147483648
    %v2019 = vmul.f32 %v2018, 1.442695
    %v2020 = vpow.pop %v2019
    %v2021 = vadd.f32 %v2020, 1.0
    %v2022 = vrcp.pop %v2021
    %v2023 = vmul.f32 %v2021, %v2022
    %v2024 = vsub.f32 1.0, %v2023
    %v2025 = vmul.f32 %v2022, %v2024
    %v2026 = vadd.f32 %v2022, %v2025
    %vm2027 = vweird.f32 %v2021
    %vm2028 = vweird.f32 %v2022
    %vm2029 = vmor %vm2027, %vm2028
    %v2030 = vsel %vm2029, %v2022, %v2026
    %v2031 = vand.u32 2147483647, %v2021
    %vm2032 = vcmp.eq.f32.partialorder %v2031, 8.507059e+37
    %v2033 = vand.u32 %v2021, 2147483648
    %v2034 = vor.u32 1.1754944e-38, %v2033
    %v2035 = vsel %vm2032, %v2034, %v2030
    %v2036 = vmul.f32 1.0, %v2035
    %v2037 = vtanh.pop %v1970
    %v2038 = vxor.u32 %v1996, 2147483648
    %v2039 = vmul.f32 %v2038, 1.442695
    %v2040 = vpow.pop %v2039
    %v2041 = vadd.f32 %v2040, 1.0
    %v2042 = vrcp.pop %v2041
    %v2043 = vmul.f32 %v2041, %v2042
    %v2044 = vsub.f32 1.0, %v2043
    %v2045 = vmul.f32 %v2042, %v2044
    %v2046 = vadd.f32 %v2042, %v2045
    %vm2047 = vweird.f32 %v2041
    %vm2048 = vweird.f32 %v2042
    %vm2049 = vmor %vm2047, %vm2048
    %v2050 = vsel %vm2049, %v2042, %v2046
    %v2051 = vand.u32 2147483647, %v2041
    %vm2052 = vcmp.eq.f32.partialorder %v2051, 8.507059e+37
    %v2053 = vand.u32 %v2041, 2147483648
    %v2054 = vor.u32 1.1754944e-38, %v2053
    %v2055 = vsel %vm2052, %v2054, %v2050
    %v2056 = vmul.f32 1.0, %v2055
    %v2057 = vmul.f32 %v2036, %v1695
    %v2058 = vmul.f32 %v2017, %v2037
    %v2059 = vadd.f32 %v2057, %v2058
    %v2060 = vtanh.pop %v2059
    %v2061 = vmul.f32 %v2056, %v2060
    %v2062 = vpack.c.bf16 %v2061, %v2061
    %2063 = vmatpush.bf16.msra.mxu0 %v1328
    %2064 = vmatpush.bf16.msra.mxu0 %v1327
    %2065 = vmatpush.bf16.msra.mxu0 %v1326
    %2066 = vmatpush.bf16.msra.mxu0 %v1325
    %2067 = vmatpush.bf16.msra.mxu0 %v1324
    %2068 = vmatpush.bf16.msra.mxu0 %v1323
    %2069 = vmatpush.bf16.msra.mxu0 %v1322
    %2070 = vmatpush.bf16.msra.mxu0 %v1321
    %2071 = vmatmul.bf16.gmra.mxu0 %v2062
    %v2072 = vpop.f32.mrf.mxu0
    %v2073 = vadd.f32 %v1287, %v2072
    %v2074 = vpop.f32.mrf.mxu0
    %2075 = vdwg.mxu0
    %2076 = vmax.xlane.f32.xlu0 %v2073
    %v2077 = vpop.xlane.xlu0 %2076
    %v2078 = vsub.f32 %v2073, %v2077
    %v2079 = vmul.f32 %v2078, 1.442695
    %v2080 = vpow.pop %v2079
    %2081 = vadd.xlane.f32.xlu0 %v2080
    %v2082 = vpop.xlane.xlu0 %2081
    %v2083 = vrcp.pop %v2082
    %v2084 = vmul.f32 %v2080, %v2083
    %s2085 = scalar_lea.vmem [#allocation14], 16
    %2086 = vst [vmem:[%s2085] sm:$0xff] %v2084
    %s2087 = scalar_lea.vmem [#allocation2], 8
    %v2088 = vld [vmem:[%s2087] sm:$0xf]
    %v2089 = vunpack.c.l.bf16 %v2088
    %v2090 = vpack.c.bf16 %v2089, %v2089
    %2091 = vmatpush.bf16.msra.mxu0 %v520
    %2092 = vmatpush.bf16.msra.mxu0 %v516
    %2093 = vmatpush.bf16.msra.mxu0 %v512
    %2094 = vmatpush.bf16.msra.mxu0 %v508
    %2095 = vmatpush.bf16.msra.mxu0 %v504
    %2096 = vmatpush.bf16.msra.mxu0 %v500
    %2097 = vmatpush.bf16.msra.mxu0 %v496
    %2098 = vmatpush.bf16.msra.mxu0 %v492
    %2099 = vmatmul.bf16.gmra.mxu0 %v2090
    %v2100 = vpop.f32.mrf.mxu0
    %v2101 = vadd.f32 %v292, %v2100
    %v2102 = vpop.f32.mrf.mxu0
    %2103 = vdwg.mxu0
    %2104 = vmatpush.bf16.msra.mxu0 %v552
    %2105 = vmatpush.bf16.msra.mxu0 %v548
    %2106 = vmatpush.bf16.msra.mxu0 %v544
    %2107 = vmatpush.bf16.msra.mxu0 %v540
    %2108 = vmatpush.bf16.msra.mxu0 %v536
    %2109 = vmatpush.bf16.msra.mxu0 %v532
    %2110 = vmatpush.bf16.msra.mxu0 %v528
    %2111 = vmatpush.bf16.msra.mxu0 %v524
    %2112 = vmatmul.bf16.gmra.mxu0 %v1894
    %v2113 = vpop.f32.mrf.mxu0
    %v2114 = vadd.f32 %v2101, %v2113
    %v2115 = vpop.f32.mrf.mxu0
    %2116 = vdwg.mxu0
    %2117 = vmatpush.bf16.msra.mxu0 %v521
    %2118 = vmatpush.bf16.msra.mxu0 %v517
    %2119 = vmatpush.bf16.msra.mxu0 %v513
    %2120 = vmatpush.bf16.msra.mxu0 %v509
    %2121 = vmatpush.bf16.msra.mxu0 %v505
    %2122 = vmatpush.bf16.msra.mxu0 %v501
    %2123 = vmatpush.bf16.msra.mxu0 %v497
    %2124 = vmatpush.bf16.msra.mxu0 %v493
    %2125 = vmatmul.bf16.gmra.mxu0 %v2090
    %v2126 = vpop.f32.mrf.mxu0
    %v2127 = vadd.f32 %v293, %v2126
    %v2128 = vpop.f32.mrf.mxu0
    %2129 = vdwg.mxu0
    %2130 = vmatpush.bf16.msra.mxu0 %v553
    %2131 = vmatpush.bf16.msra.mxu0 %v549
    %2132 = vmatpush.bf16.msra.mxu0 %v545
    %2133 = vmatpush.bf16.msra.mxu0 %v541
    %2134 = vmatpush.bf16.msra.mxu0 %v537
    %2135 = vmatpush.bf16.msra.mxu0 %v533
    %2136 = vmatpush.bf16.msra.mxu0 %v529
    %2137 = vmatpush.bf16.msra.mxu0 %v525
    %2138 = vmatmul.bf16.gmra.mxu0 %v1894
    %v2139 = vpop.f32.mrf.mxu0
    %v2140 = vadd.f32 %v2127, %v2139
    %v2141 = vpop.f32.mrf.mxu0
    %2142 = vdwg.mxu0
    %2143 = vmatpush.bf16.msra.mxu0 %v522
    %2144 = vmatpush.bf16.msra.mxu0 %v518
    %2145 = vmatpush.bf16.msra.mxu0 %v514
    %2146 = vmatpush.bf16.msra.mxu0 %v510
    %2147 = vmatpush.bf16.msra.mxu0 %v506
    %2148 = vmatpush.bf16.msra.mxu0 %v502
    %2149 = vmatpush.bf16.msra.mxu0 %v498
    %2150 = vmatpush.bf16.msra.mxu0 %v494
    %2151 = vmatmul.bf16.gmra.mxu0 %v2090
    %v2152 = vpop.f32.mrf.mxu0
    %v2153 = vadd.f32 %v294, %v2152
    %v2154 = vpop.f32.mrf.mxu0
    %2155 = vdwg.mxu0
    %2156 = vmatpush.bf16.msra.mxu0 %v554
    %2157 = vmatpush.bf16.msra.mxu0 %v550
    %2158 = vmatpush.bf16.msra.mxu0 %v546
    %2159 = vmatpush.bf16.msra.mxu0 %v542
    %2160 = vmatpush.bf16.msra.mxu0 %v538
    %2161 = vmatpush.bf16.msra.mxu0 %v534
    %2162 = vmatpush.bf16.msra.mxu0 %v530
    %2163 = vmatpush.bf16.msra.mxu0 %v526
    %2164 = vmatmul.bf16.gmra.mxu0 %v1894
    %v2165 = vpop.f32.mrf.mxu0
    %v2166 = vadd.f32 %v2153, %v2165
    %v2167 = vpop.f32.mrf.mxu0
    %2168 = vdwg.mxu0
    %2169 = vmatpush.bf16.msra.mxu0 %v523
    %2170 = vmatpush.bf16.msra.mxu0 %v519
    %2171 = vmatpush.bf16.msra.mxu0 %v515
    %2172 = vmatpush.bf16.msra.mxu0 %v511
    %2173 = vmatpush.bf16.msra.mxu0 %v507
    %2174 = vmatpush.bf16.msra.mxu0 %v503
    %2175 = vmatpush.bf16.msra.mxu0 %v499
    %2176 = vmatpush.bf16.msra.mxu0 %v495
    %2177 = vmatmul.bf16.gmra.mxu0 %v2090
    %v2178 = vpop.f32.mrf.mxu0
    %v2179 = vadd.f32 %v295, %v2178
    %v2180 = vpop.f32.mrf.mxu0
    %2181 = vdwg.mxu0
    %2182 = vmatpush.bf16.msra.mxu0 %v555
    %2183 = vmatpush.bf16.msra.mxu0 %v551
    %2184 = vmatpush.bf16.msra.mxu0 %v547
    %2185 = vmatpush.bf16.msra.mxu0 %v543
    %2186 = vmatpush.bf16.msra.mxu0 %v539
    %2187 = vmatpush.bf16.msra.mxu0 %v535
    %2188 = vmatpush.bf16.msra.mxu0 %v531
    %2189 = vmatpush.bf16.msra.mxu0 %v527
    %2190 = vmatmul.bf16.gmra.mxu0 %v1894
    %v2191 = vpop.f32.mrf.mxu0
    %v2192 = vadd.f32 %v2179, %v2191
    %v2193 = vpop.f32.mrf.mxu0
    %2194 = vdwg.mxu0
    %v2195 = vxor.u32 %v2114, 2147483648
    %v2196 = vmul.f32 %v2195, 1.442695
    %v2197 = vpow.pop %v2196
    %v2198 = vadd.f32 %v2197, 1.0
    %v2199 = vrcp.pop %v2198
    %v2200 = vmul.f32 %v2198, %v2199
    %v2201 = vsub.f32 1.0, %v2200
    %v2202 = vmul.f32 %v2199, %v2201
    %v2203 = vadd.f32 %v2199, %v2202
    %vm2204 = vweird.f32 %v2198
    %vm2205 = vweird.f32 %v2199
    %vm2206 = vmor %vm2204, %vm2205
    %v2207 = vsel %vm2206, %v2199, %v2203
    %v2208 = vand.u32 2147483647, %v2198
    %vm2209 = vcmp.eq.f32.partialorder %v2208, 8.507059e+37
    %v2210 = vand.u32 %v2198, 2147483648
    %v2211 = vor.u32 1.1754944e-38, %v2210
    %v2212 = vsel %vm2209, %v2211, %v2207
    %v2213 = vmul.f32 1.0, %v2212
    %v2214 = vxor.u32 %v2140, 2147483648
    %v2215 = vmul.f32 %v2214, 1.442695
    %v2216 = vpow.pop %v2215
    %v2217 = vadd.f32 %v2216, 1.0
    %v2218 = vrcp.pop %v2217
    %v2219 = vmul.f32 %v2217, %v2218
    %v2220 = vsub.f32 1.0, %v2219
    %v2221 = vmul.f32 %v2218, %v2220
    %v2222 = vadd.f32 %v2218, %v2221
    %vm2223 = vweird.f32 %v2217
    %vm2224 = vweird.f32 %v2218
    %vm2225 = vmor %vm2223, %vm2224
    %v2226 = vsel %vm2225, %v2218, %v2222
    %v2227 = vand.u32 2147483647, %v2217
    %vm2228 = vcmp.eq.f32.partialorder %v2227, 8.507059e+37
    %v2229 = vand.u32 %v2217, 2147483648
    %v2230 = vor.u32 1.1754944e-38, %v2229
    %v2231 = vsel %vm2228, %v2230, %v2226
    %v2232 = vmul.f32 1.0, %v2231
    %v2233 = vtanh.pop %v2166
    %v2234 = vxor.u32 %v2192, 2147483648
    %v2235 = vmul.f32 %v2234, 1.442695
    %v2236 = vpow.pop %v2235
    %v2237 = vadd.f32 %v2236, 1.0
    %v2238 = vrcp.pop %v2237
    %v2239 = vmul.f32 %v2237, %v2238
    %v2240 = vsub.f32 1.0, %v2239
    %v2241 = vmul.f32 %v2238, %v2240
    %v2242 = vadd.f32 %v2238, %v2241
    %vm2243 = vweird.f32 %v2237
    %vm2244 = vweird.f32 %v2238
    %vm2245 = vmor %vm2243, %vm2244
    %v2246 = vsel %vm2245, %v2238, %v2242
    %v2247 = vand.u32 2147483647, %v2237
    %vm2248 = vcmp.eq.f32.partialorder %v2247, 8.507059e+37
    %v2249 = vand.u32 %v2237, 2147483648
    %v2250 = vor.u32 1.1754944e-38, %v2249
    %v2251 = vsel %vm2248, %v2250, %v2246
    %v2252 = vmul.f32 1.0, %v2251
    %v2253 = vmul.f32 %v2232, %v1891
    %v2254 = vmul.f32 %v2213, %v2233
    %v2255 = vadd.f32 %v2253, %v2254
    %v2256 = vtanh.pop %v2255
    %v2257 = vmul.f32 %v2252, %v2256
    %v2258 = vpack.c.bf16 %v2257, %v2257
    %2259 = vmatpush.bf16.msra.mxu0 %v1018
    %2260 = vmatpush.bf16.msra.mxu0 %v1014
    %2261 = vmatpush.bf16.msra.mxu0 %v1010
    %2262 = vmatpush.bf16.msra.mxu0 %v1006
    %2263 = vmatpush.bf16.msra.mxu0 %v1002
    %2264 = vmatpush.bf16.msra.mxu0 %v998
    %2265 = vmatpush.bf16.msra.mxu0 %v994
    %2266 = vmatpush.bf16.msra.mxu0 %v990
    %2267 = vmatmul.bf16.gmra.mxu0 %v2258
    %v2268 = vpop.f32.mrf.mxu0
    %v2269 = vadd.f32 %v790, %v2268
    %v2270 = vpop.f32.mrf.mxu0
    %2271 = vdwg.mxu0
    %2272 = vmatpush.bf16.msra.mxu0 %v1050
    %2273 = vmatpush.bf16.msra.mxu0 %v1046
    %2274 = vmatpush.bf16.msra.mxu0 %v1042
    %2275 = vmatpush.bf16.msra.mxu0 %v1038
    %2276 = vmatpush.bf16.msra.mxu0 %v1034
    %2277 = vmatpush.bf16.msra.mxu0 %v1030
    %2278 = vmatpush.bf16.msra.mxu0 %v1026
    %2279 = vmatpush.bf16.msra.mxu0 %v1022
    %2280 = vmatmul.bf16.gmra.mxu0 %v2062
    %v2281 = vpop.f32.mrf.mxu0
    %v2282 = vadd.f32 %v2269, %v2281
    %v2283 = vpop.f32.mrf.mxu0
    %2284 = vdwg.mxu0
    %2285 = vmatpush.bf16.msra.mxu0 %v1019
    %2286 = vmatpush.bf16.msra.mxu0 %v1015
    %2287 = vmatpush.bf16.msra.mxu0 %v1011
    %2288 = vmatpush.bf16.msra.mxu0 %v1007
    %2289 = vmatpush.bf16.msra.mxu0 %v1003
    %2290 = vmatpush.bf16.msra.mxu0 %v999
    %2291 = vmatpush.bf16.msra.mxu0 %v995
    %2292 = vmatpush.bf16.msra.mxu0 %v991
    %2293 = vmatmul.bf16.gmra.mxu0 %v2258
    %v2294 = vpop.f32.mrf.mxu0
    %v2295 = vadd.f32 %v791, %v2294
    %v2296 = vpop.f32.mrf.mxu0
    %2297 = vdwg.mxu0
    %2298 = vmatpush.bf16.msra.mxu0 %v1051
    %2299 = vmatpush.bf16.msra.mxu0 %v1047
    %2300 = vmatpush.bf16.msra.mxu0 %v1043
    %2301 = vmatpush.bf16.msra.mxu0 %v1039
    %2302 = vmatpush.bf16.msra.mxu0 %v1035
    %2303 = vmatpush.bf16.msra.mxu0 %v1031
    %2304 = vmatpush.bf16.msra.mxu0 %v1027
    %2305 = vmatpush.bf16.msra.mxu0 %v1023
    %2306 = vmatmul.bf16.gmra.mxu0 %v2062
    %v2307 = vpop.f32.mrf.mxu0
    %v2308 = vadd.f32 %v2295, %v2307
    %v2309 = vpop.f32.mrf.mxu0
    %2310 = vdwg.mxu0
    %2311 = vmatpush.bf16.msra.mxu0 %v1020
    %2312 = vmatpush.bf16.msra.mxu0 %v1016
    %2313 = vmatpush.bf16.msra.mxu0 %v1012
    %2314 = vmatpush.bf16.msra.mxu0 %v1008
    %2315 = vmatpush.bf16.msra.mxu0 %v1004
    %2316 = vmatpush.bf16.msra.mxu0 %v1000
    %2317 = vmatpush.bf16.msra.mxu0 %v996
    %2318 = vmatpush.bf16.msra.mxu0 %v992
    %2319 = vmatmul.bf16.gmra.mxu0 %v2258
    %v2320 = vpop.f32.mrf.mxu0
    %v2321 = vadd.f32 %v792, %v2320
    %v2322 = vpop.f32.mrf.mxu0
    %2323 = vdwg.mxu0
    %2324 = vmatpush.bf16.msra.mxu0 %v1052
    %2325 = vmatpush.bf16.msra.mxu0 %v1048
    %2326 = vmatpush.bf16.msra.mxu0 %v1044
    %2327 = vmatpush.bf16.msra.mxu0 %v1040
    %2328 = vmatpush.bf16.msra.mxu0 %v1036
    %2329 = vmatpush.bf16.msra.mxu0 %v1032
    %2330 = vmatpush.bf16.msra.mxu0 %v1028
    %2331 = vmatpush.bf16.msra.mxu0 %v1024
    %2332 = vmatmul.bf16.gmra.mxu0 %v2062
    %v2333 = vpop.f32.mrf.mxu0
    %v2334 = vadd.f32 %v2321, %v2333
    %v2335 = vpop.f32.mrf.mxu0
    %2336 = vdwg.mxu0
    %2337 = vmatpush.bf16.msra.mxu0 %v1021
    %2338 = vmatpush.bf16.msra.mxu0 %v1017
    %2339 = vmatpush.bf16.msra.mxu0 %v1013
    %2340 = vmatpush.bf16.msra.mxu0 %v1009
    %2341 = vmatpush.bf16.msra.mxu0 %v1005
    %2342 = vmatpush.bf16.msra.mxu0 %v1001
    %2343 = vmatpush.bf16.msra.mxu0 %v997
    %2344 = vmatpush.bf16.msra.mxu0 %v993
    %2345 = vmatmul.bf16.gmra.mxu0 %v2258
    %v2346 = vpop.f32.mrf.mxu0
    %v2347 = vadd.f32 %v793, %v2346
    %v2348 = vpop.f32.mrf.mxu0
    %2349 = vdwg.mxu0
    %2350 = vmatpush.bf16.msra.mxu0 %v1053
    %2351 = vmatpush.bf16.msra.mxu0 %v1049
    %2352 = vmatpush.bf16.msra.mxu0 %v1045
    %2353 = vmatpush.bf16.msra.mxu0 %v1041
    %2354 = vmatpush.bf16.msra.mxu0 %v1037
    %2355 = vmatpush.bf16.msra.mxu0 %v1033
    %2356 = vmatpush.bf16.msra.mxu0 %v1029
    %2357 = vmatpush.bf16.msra.mxu0 %v1025
    %2358 = vmatmul.bf16.gmra.mxu0 %v2062
    %v2359 = vpop.f32.mrf.mxu0
    %v2360 = vadd.f32 %v2347, %v2359
    %v2361 = vpop.f32.mrf.mxu0
    %2362 = vdwg.mxu0
    %v2363 = vxor.u32 %v2282, 2147483648
    %v2364 = vmul.f32 %v2363, 1.442695
    %v2365 = vpow.pop %v2364
    %v2366 = vadd.f32 %v2365, 1.0
    %v2367 = vrcp.pop %v2366
    %v2368 = vmul.f32 %v2366, %v2367
    %v2369 = vsub.f32 1.0, %v2368
    %v2370 = vmul.f32 %v2367, %v2369
    %v2371 = vadd.f32 %v2367, %v2370
    %vm2372 = vweird.f32 %v2366
    %vm2373 = vweird.f32 %v2367
    %vm2374 = vmor %vm2372, %vm2373
    %v2375 = vsel %vm2374, %v2367, %v2371
    %v2376 = vand.u32 2147483647, %v2366
    %vm2377 = vcmp.eq.f32.partialorder %v2376, 8.507059e+37
    %v2378 = vand.u32 %v2366, 2147483648
    %v2379 = vor.u32 1.1754944e-38, %v2378
    %v2380 = vsel %vm2377, %v2379, %v2375
    %v2381 = vmul.f32 1.0, %v2380
    %v2382 = vxor.u32 %v2308, 2147483648
    %v2383 = vmul.f32 %v2382, 1.442695
    %v2384 = vpow.pop %v2383
    %v2385 = vadd.f32 %v2384, 1.0
    %v2386 = vrcp.pop %v2385
    %v2387 = vmul.f32 %v2385, %v2386
    %v2388 = vsub.f32 1.0, %v2387
    %v2389 = vmul.f32 %v2386, %v2388
    %v2390 = vadd.f32 %v2386, %v2389
    %vm2391 = vweird.f32 %v2385
    %vm2392 = vweird.f32 %v2386
    %vm2393 = vmor %vm2391, %vm2392
    %v2394 = vsel %vm2393, %v2386, %v2390
    %v2395 = vand.u32 2147483647, %v2385
    %vm2396 = vcmp.eq.f32.partialorder %v2395, 8.507059e+37
    %v2397 = vand.u32 %v2385, 2147483648
    %v2398 = vor.u32 1.1754944e-38, %v2397
    %v2399 = vsel %vm2396, %v2398, %v2394
    %v2400 = vmul.f32 1.0, %v2399
    %v2401 = vtanh.pop %v2334
    %v2402 = vxor.u32 %v2360, 2147483648
    %v2403 = vmul.f32 %v2402, 1.442695
    %v2404 = vpow.pop %v2403
    %v2405 = vadd.f32 %v2404, 1.0
    %v2406 = vrcp.pop %v2405
    %v2407 = vmul.f32 %v2405, %v2406
    %v2408 = vsub.f32 1.0, %v2407
    %v2409 = vmul.f32 %v2406, %v2408
    %v2410 = vadd.f32 %v2406, %v2409
    %vm2411 = vweird.f32 %v2405
    %vm2412 = vweird.f32 %v2406
    %vm2413 = vmor %vm2411, %vm2412
    %v2414 = vsel %vm2413, %v2406, %v2410
    %v2415 = vand.u32 2147483647, %v2405
    %vm2416 = vcmp.eq.f32.partialorder %v2415, 8.507059e+37
    %v2417 = vand.u32 %v2405, 2147483648
    %v2418 = vor.u32 1.1754944e-38, %v2417
    %v2419 = vsel %vm2416, %v2418, %v2414
    %v2420 = vmul.f32 1.0, %v2419
    %v2421 = vmul.f32 %v2400, %v2059
    %v2422 = vmul.f32 %v2381, %v2401
    %v2423 = vadd.f32 %v2421, %v2422
    %v2424 = vtanh.pop %v2423
    %v2425 = vmul.f32 %v2420, %v2424
    %v2426 = vpack.c.bf16 %v2425, %v2425
    %2427 = vmatpush.bf16.msra.mxu0 %v1328
    %2428 = vmatpush.bf16.msra.mxu0 %v1327
    %2429 = vmatpush.bf16.msra.mxu0 %v1326
    %2430 = vmatpush.bf16.msra.mxu0 %v1325
    %2431 = vmatpush.bf16.msra.mxu0 %v1324
    %2432 = vmatpush.bf16.msra.mxu0 %v1323
    %2433 = vmatpush.bf16.msra.mxu0 %v1322
    %2434 = vmatpush.bf16.msra.mxu0 %v1321
    %2435 = vmatmul.bf16.gmra.mxu0 %v2426
    %v2436 = vpop.f32.mrf.mxu0
    %v2437 = vadd.f32 %v1287, %v2436
    %v2438 = vpop.f32.mrf.mxu0
    %2439 = vdwg.mxu0
    %2440 = vmax.xlane.f32.xlu0 %v2437
    %v2441 = vpop.xlane.xlu0 %2440
    %v2442 = vsub.f32 %v2437, %v2441
    %v2443 = vmul.f32 %v2442, 1.442695
    %v2444 = vpow.pop %v2443
    %2445 = vadd.xlane.f32.xlu0 %v2444
    %v2446 = vpop.xlane.xlu0 %2445
    %v2447 = vrcp.pop %v2446
    %v2448 = vmul.f32 %v2444, %v2447
    %s2449 = scalar_lea.vmem [#allocation14], 24
    %2450 = vst [vmem:[%s2449] sm:$0xff] %v2448
    %s2451 = scalar_lea.vmem [#allocation2], 12
    %v2452 = vld [vmem:[%s2451] sm:$0xf]
    %v2453 = vunpack.c.l.bf16 %v2452
    %v2454 = vpack.c.bf16 %v2453, %v2453
    %2455 = vmatpush.bf16.msra.mxu0 %v520
    %2456 = vmatpush.bf16.msra.mxu0 %v516
    %2457 = vmatpush.bf16.msra.mxu0 %v512
    %2458 = vmatpush.bf16.msra.mxu0 %v508
    %2459 = vmatpush.bf16.msra.mxu0 %v504
    %2460 = vmatpush.bf16.msra.mxu0 %v500
    %2461 = vmatpush.bf16.msra.mxu0 %v496
    %2462 = vmatpush.bf16.msra.mxu0 %v492
    %2463 = vmatmul.bf16.gmra.mxu0 %v2454
    %v2464 = vpop.f32.mrf.mxu0
    %v2465 = vadd.f32 %v292, %v2464
    %v2466 = vpop.f32.mrf.mxu0
    %2467 = vdwg.mxu0
    %2468 = vmatpush.bf16.msra.mxu0 %v552
    %2469 = vmatpush.bf16.msra.mxu0 %v548
    %2470 = vmatpush.bf16.msra.mxu0 %v544
    %2471 = vmatpush.bf16.msra.mxu0 %v540
    %2472 = vmatpush.bf16.msra.mxu0 %v536
    %2473 = vmatpush.bf16.msra.mxu0 %v532
    %2474 = vmatpush.bf16.msra.mxu0 %v528
    %2475 = vmatpush.bf16.msra.mxu0 %v524
    %2476 = vmatmul.bf16.gmra.mxu0 %v2258
    %v2477 = vpop.f32.mrf.mxu0
    %v2478 = vadd.f32 %v2465, %v2477
    %v2479 = vpop.f32.mrf.mxu0
    %2480 = vdwg.mxu0
    %2481 = vmatpush.bf16.msra.mxu0 %v521
    %2482 = vmatpush.bf16.msra.mxu0 %v517
    %2483 = vmatpush.bf16.msra.mxu0 %v513
    %2484 = vmatpush.bf16.msra.mxu0 %v509
    %2485 = vmatpush.bf16.msra.mxu0 %v505
    %2486 = vmatpush.bf16.msra.mxu0 %v501
    %2487 = vmatpush.bf16.msra.mxu0 %v497
    %2488 = vmatpush.bf16.msra.mxu0 %v493
    %2489 = vmatmul.bf16.gmra.mxu0 %v2454
    %v2490 = vpop.f32.mrf.mxu0
    %v2491 = vadd.f32 %v293, %v2490
    %v2492 = vpop.f32.mrf.mxu0
    %2493 = vdwg.mxu0
    %2494 = vmatpush.bf16.msra.mxu0 %v553
    %2495 = vmatpush.bf16.msra.mxu0 %v549
    %2496 = vmatpush.bf16.msra.mxu0 %v545
    %2497 = vmatpush.bf16.msra.mxu0 %v541
    %2498 = vmatpush.bf16.msra.mxu0 %v537
    %2499 = vmatpush.bf16.msra.mxu0 %v533
    %2500 = vmatpush.bf16.msra.mxu0 %v529
    %2501 = vmatpush.bf16.msra.mxu0 %v525
    %2502 = vmatmul.bf16.gmra.mxu0 %v2258
    %v2503 = vpop.f32.mrf.mxu0
    %v2504 = vadd.f32 %v2491, %v2503
    %v2505 = vpop.f32.mrf.mxu0
    %2506 = vdwg.mxu0
    %2507 = vmatpush.bf16.msra.mxu0 %v522
    %2508 = vmatpush.bf16.msra.mxu0 %v518
    %2509 = vmatpush.bf16.msra.mxu0 %v514
    %2510 = vmatpush.bf16.msra.mxu0 %v510
    %2511 = vmatpush.bf16.msra.mxu0 %v506
    %2512 = vmatpush.bf16.msra.mxu0 %v502
    %2513 = vmatpush.bf16.msra.mxu0 %v498
    %2514 = vmatpush.bf16.msra.mxu0 %v494
    %2515 = vmatmul.bf16.gmra.mxu0 %v2454
    %v2516 = vpop.f32.mrf.mxu0
    %v2517 = vadd.f32 %v294, %v2516
    %v2518 = vpop.f32.mrf.mxu0
    %2519 = vdwg.mxu0
    %2520 = vmatpush.bf16.msra.mxu0 %v554
    %2521 = vmatpush.bf16.msra.mxu0 %v550
    %2522 = vmatpush.bf16.msra.mxu0 %v546
    %2523 = vmatpush.bf16.msra.mxu0 %v542
    %2524 = vmatpush.bf16.msra.mxu0 %v538
    %2525 = vmatpush.bf16.msra.mxu0 %v534
    %2526 = vmatpush.bf16.msra.mxu0 %v530
    %2527 = vmatpush.bf16.msra.mxu0 %v526
    %2528 = vmatmul.bf16.gmra.mxu0 %v2258
    %v2529 = vpop.f32.mrf.mxu0
    %v2530 = vadd.f32 %v2517, %v2529
    %v2531 = vpop.f32.mrf.mxu0
    %2532 = vdwg.mxu0
    %2533 = vmatpush.bf16.msra.mxu0 %v523
    %2534 = vmatpush.bf16.msra.mxu0 %v519
    %2535 = vmatpush.bf16.msra.mxu0 %v515
    %2536 = vmatpush.bf16.msra.mxu0 %v511
    %2537 = vmatpush.bf16.msra.mxu0 %v507
    %2538 = vmatpush.bf16.msra.mxu0 %v503
    %2539 = vmatpush.bf16.msra.mxu0 %v499
    %2540 = vmatpush.bf16.msra.mxu0 %v495
    %2541 = vmatmul.bf16.gmra.mxu0 %v2454
    %v2542 = vpop.f32.mrf.mxu0
    %v2543 = vadd.f32 %v295, %v2542
    %v2544 = vpop.f32.mrf.mxu0
    %2545 = vdwg.mxu0
    %2546 = vmatpush.bf16.msra.mxu0 %v555
    %2547 = vmatpush.bf16.msra.mxu0 %v551
    %2548 = vmatpush.bf16.msra.mxu0 %v547
    %2549 = vmatpush.bf16.msra.mxu0 %v543
    %2550 = vmatpush.bf16.msra.mxu0 %v539
    %2551 = vmatpush.bf16.msra.mxu0 %v535
    %2552 = vmatpush.bf16.msra.mxu0 %v531
    %2553 = vmatpush.bf16.msra.mxu0 %v527
    %2554 = vmatmul.bf16.gmra.mxu0 %v2258
    %v2555 = vpop.f32.mrf.mxu0
    %v2556 = vadd.f32 %v2543, %v2555
    %v2557 = vpop.f32.mrf.mxu0
    %2558 = vdwg.mxu0
    %v2559 = vxor.u32 %v2478, 2147483648
    %v2560 = vmul.f32 %v2559, 1.442695
    %v2561 = vpow.pop %v2560
    %v2562 = vadd.f32 %v2561, 1.0
    %v2563 = vrcp.pop %v2562
    %v2564 = vmul.f32 %v2562, %v2563
    %v2565 = vsub.f32 1.0, %v2564
    %v2566 = vmul.f32 %v2563, %v2565
    %v2567 = vadd.f32 %v2563, %v2566
    %vm2568 = vweird.f32 %v2562
    %vm2569 = vweird.f32 %v2563
    %vm2570 = vmor %vm2568, %vm2569
    %v2571 = vsel %vm2570, %v2563, %v2567
    %v2572 = vand.u32 2147483647, %v2562
    %vm2573 = vcmp.eq.f32.partialorder %v2572, 8.507059e+37
    %v2574 = vand.u32 %v2562, 2147483648
    %v2575 = vor.u32 1.1754944e-38, %v2574
    %v2576 = vsel %vm2573, %v2575, %v2571
    %v2577 = vmul.f32 1.0, %v2576
    %v2578 = vxor.u32 %v2504, 2147483648
    %v2579 = vmul.f32 %v2578, 1.442695
    %v2580 = vpow.pop %v2579
    %v2581 = vadd.f32 %v2580, 1.0
    %v2582 = vrcp.pop %v2581
    %v2583 = vmul.f32 %v2581, %v2582
    %v2584 = vsub.f32 1.0, %v2583
    %v2585 = vmul.f32 %v2582, %v2584
    %v2586 = vadd.f32 %v2582, %v2585
    %vm2587 = vweird.f32 %v2581
    %vm2588 = vweird.f32 %v2582
    %vm2589 = vmor %vm2587, %vm2588
    %v2590 = vsel %vm2589, %v2582, %v2586
    %v2591 = vand.u32 2147483647, %v2581
    %vm2592 = vcmp.eq.f32.partialorder %v2591, 8.507059e+37
    %v2593 = vand.u32 %v2581, 2147483648
    %v2594 = vor.u32 1.1754944e-38, %v2593
    %v2595 = vsel %vm2592, %v2594, %v2590
    %v2596 = vmul.f32 1.0, %v2595
    %v2597 = vtanh.pop %v2530
    %v2598 = vxor.u32 %v2556, 2147483648
    %v2599 = vmul.f32 %v2598, 1.442695
    %v2600 = vpow.pop %v2599
    %v2601 = vadd.f32 %v2600, 1.0
    %v2602 = vrcp.pop %v2601
    %v2603 = vmul.f32 %v2601, %v2602
    %v2604 = vsub.f32 1.0, %v2603
    %v2605 = vmul.f32 %v2602, %v2604
    %v2606 = vadd.f32 %v2602, %v2605
    %vm2607 = vweird.f32 %v2601
    %vm2608 = vweird.f32 %v2602
    %vm2609 = vmor %vm2607, %vm2608
    %v2610 = vsel %vm2609, %v2602, %v2606
    %v2611 = vand.u32 2147483647, %v2601
    %vm2612 = vcmp.eq.f32.partialorder %v2611, 8.507059e+37
    %v2613 = vand.u32 %v2601, 2147483648
    %v2614 = vor.u32 1.1754944e-38, %v2613
    %v2615 = vsel %vm2612, %v2614, %v2610
    %v2616 = vmul.f32 1.0, %v2615
    %v2617 = vmul.f32 %v2596, %v2255
    %v2618 = vmul.f32 %v2577, %v2597
    %v2619 = vadd.f32 %v2617, %v2618
    %v2620 = vtanh.pop %v2619
    %v2621 = vmul.f32 %v2616, %v2620
    %v2622 = vpack.c.bf16 %v2621, %v2621
    %2623 = vmatpush.bf16.msra.mxu0 %v1018
    %2624 = vmatpush.bf16.msra.mxu0 %v1014
    %2625 = vmatpush.bf16.msra.mxu0 %v1010
    %2626 = vmatpush.bf16.msra.mxu0 %v1006
    %2627 = vmatpush.bf16.msra.mxu0 %v1002
    %2628 = vmatpush.bf16.msra.mxu0 %v998
    %2629 = vmatpush.bf16.msra.mxu0 %v994
    %2630 = vmatpush.bf16.msra.mxu0 %v990
    %2631 = vmatmul.bf16.gmra.mxu0 %v2622
    %v2632 = vpop.f32.mrf.mxu0
    %v2633 = vadd.f32 %v790, %v2632
    %v2634 = vpop.f32.mrf.mxu0
    %2635 = vdwg.mxu0
    %2636 = vmatpush.bf16.msra.mxu0 %v1050
    %2637 = vmatpush.bf16.msra.mxu0 %v1046
    %2638 = vmatpush.bf16.msra.mxu0 %v1042
    %2639 = vmatpush.bf16.msra.mxu0 %v1038
    %2640 = vmatpush.bf16.msra.mxu0 %v1034
    %2641 = vmatpush.bf16.msra.mxu0 %v1030
    %2642 = vmatpush.bf16.msra.mxu0 %v1026
    %2643 = vmatpush.bf16.msra.mxu0 %v1022
    %2644 = vmatmul.bf16.gmra.mxu0 %v2426
    %v2645 = vpop.f32.mrf.mxu0
    %v2646 = vadd.f32 %v2633, %v2645
    %v2647 = vpop.f32.mrf.mxu0
    %2648 = vdwg.mxu0
    %2649 = vmatpush.bf16.msra.mxu0 %v1019
    %2650 = vmatpush.bf16.msra.mxu0 %v1015
    %2651 = vmatpush.bf16.msra.mxu0 %v1011
    %2652 = vmatpush.bf16.msra.mxu0 %v1007
    %2653 = vmatpush.bf16.msra.mxu0 %v1003
    %2654 = vmatpush.bf16.msra.mxu0 %v999
    %2655 = vmatpush.bf16.msra.mxu0 %v995
    %2656 = vmatpush.bf16.msra.mxu0 %v991
    %2657 = vmatmul.bf16.gmra.mxu0 %v2622
    %v2658 = vpop.f32.mrf.mxu0
    %v2659 = vadd.f32 %v791, %v2658
    %v2660 = vpop.f32.mrf.mxu0
    %2661 = vdwg.mxu0
    %2662 = vmatpush.bf16.msra.mxu0 %v1051
    %2663 = vmatpush.bf16.msra.mxu0 %v1047
    %2664 = vmatpush.bf16.msra.mxu0 %v1043
    %2665 = vmatpush.bf16.msra.mxu0 %v1039
    %2666 = vmatpush.bf16.msra.mxu0 %v1035
    %2667 = vmatpush.bf16.msra.mxu0 %v1031
    %2668 = vmatpush.bf16.msra.mxu0 %v1027
    %2669 = vmatpush.bf16.msra.mxu0 %v1023
    %2670 = vmatmul.bf16.gmra.mxu0 %v2426
    %v2671 = vpop.f32.mrf.mxu0
    %v2672 = vadd.f32 %v2659, %v2671
    %v2673 = vpop.f32.mrf.mxu0
    %2674 = vdwg.mxu0
    %2675 = vmatpush.bf16.msra.mxu0 %v1020
    %2676 = vmatpush.bf16.msra.mxu0 %v1016
    %2677 = vmatpush.bf16.msra.mxu0 %v1012
    %2678 = vmatpush.bf16.msra.mxu0 %v1008
    %2679 = vmatpush.bf16.msra.mxu0 %v1004
    %2680 = vmatpush.bf16.msra.mxu0 %v1000
    %2681 = vmatpush.bf16.msra.mxu0 %v996
    %2682 = vmatpush.bf16.msra.mxu0 %v992
    %2683 = vmatmul.bf16.gmra.mxu0 %v2622
    %v2684 = vpop.f32.mrf.mxu0
    %v2685 = vadd.f32 %v792, %v2684
    %v2686 = vpop.f32.mrf.mxu0
    %2687 = vdwg.mxu0
    %2688 = vmatpush.bf16.msra.mxu0 %v1052
    %2689 = vmatpush.bf16.msra.mxu0 %v1048
    %2690 = vmatpush.bf16.msra.mxu0 %v1044
    %2691 = vmatpush.bf16.msra.mxu0 %v1040
    %2692 = vmatpush.bf16.msra.mxu0 %v1036
    %2693 = vmatpush.bf16.msra.mxu0 %v1032
    %2694 = vmatpush.bf16.msra.mxu0 %v1028
    %2695 = vmatpush.bf16.msra.mxu0 %v1024
    %2696 = vmatmul.bf16.gmra.mxu0 %v2426
    %v2697 = vpop.f32.mrf.mxu0
    %v2698 = vadd.f32 %v2685, %v2697
    %v2699 = vpop.f32.mrf.mxu0
    %2700 = vdwg.mxu0
    %2701 = vmatpush.bf16.msra.mxu0 %v1021
    %2702 = vmatpush.bf16.msra.mxu0 %v1017
    %2703 = vmatpush.bf16.msra.mxu0 %v1013
    %2704 = vmatpush.bf16.msra.mxu0 %v1009
    %2705 = vmatpush.bf16.msra.mxu0 %v1005
    %2706 = vmatpush.bf16.msra.mxu0 %v1001
    %2707 = vmatpush.bf16.msra.mxu0 %v997
    %2708 = vmatpush.bf16.msra.mxu0 %v993
    %2709 = vmatmul.bf16.gmra.mxu0 %v2622
    %v2710 = vpop.f32.mrf.mxu0
    %v2711 = vadd.f32 %v793, %v2710
    %v2712 = vpop.f32.mrf.mxu0
    %2713 = vdwg.mxu0
    %2714 = vmatpush.bf16.msra.mxu0 %v1053
    %2715 = vmatpush.bf16.msra.mxu0 %v1049
    %2716 = vmatpush.bf16.msra.mxu0 %v1045
    %2717 = vmatpush.bf16.msra.mxu0 %v1041
    %2718 = vmatpush.bf16.msra.mxu0 %v1037
    %2719 = vmatpush.bf16.msra.mxu0 %v1033
    %2720 = vmatpush.bf16.msra.mxu0 %v1029
    %2721 = vmatpush.bf16.msra.mxu0 %v1025
    %2722 = vmatmul.bf16.gmra.mxu0 %v2426
    %v2723 = vpop.f32.mrf.mxu0
    %v2724 = vadd.f32 %v2711, %v2723
    %v2725 = vpop.f32.mrf.mxu0
    %2726 = vdwg.mxu0
    %v2727 = vxor.u32 %v2646, 2147483648
    %v2728 = vmul.f32 %v2727, 1.442695
    %v2729 = vpow.pop %v2728
    %v2730 = vadd.f32 %v2729, 1.0
    %v2731 = vrcp.pop %v2730
    %v2732 = vmul.f32 %v2730, %v2731
    %v2733 = vsub.f32 1.0, %v2732
    %v2734 = vmul.f32 %v2731, %v2733
    %v2735 = vadd.f32 %v2731, %v2734
    %vm2736 = vweird.f32 %v2730
    %vm2737 = vweird.f32 %v2731
    %vm2738 = vmor %vm2736, %vm2737
    %v2739 = vsel %vm2738, %v2731, %v2735
    %v2740 = vand.u32 2147483647, %v2730
    %vm2741 = vcmp.eq.f32.partialorder %v2740, 8.507059e+37
    %v2742 = vand.u32 %v2730, 2147483648
    %v2743 = vor.u32 1.1754944e-38, %v2742
    %v2744 = vsel %vm2741, %v2743, %v2739
    %v2745 = vmul.f32 1.0, %v2744
    %v2746 = vxor.u32 %v2672, 2147483648
    %v2747 = vmul.f32 %v2746, 1.442695
    %v2748 = vpow.pop %v2747
    %v2749 = vadd.f32 %v2748, 1.0
    %v2750 = vrcp.pop %v2749
    %v2751 = vmul.f32 %v2749, %v2750
    %v2752 = vsub.f32 1.0, %v2751
    %v2753 = vmul.f32 %v2750, %v2752
    %v2754 = vadd.f32 %v2750, %v2753
    %vm2755 = vweird.f32 %v2749
    %vm2756 = vweird.f32 %v2750
    %vm2757 = vmor %vm2755, %vm2756
    %v2758 = vsel %vm2757, %v2750, %v2754
    %v2759 = vand.u32 2147483647, %v2749
    %vm2760 = vcmp.eq.f32.partialorder %v2759, 8.507059e+37
    %v2761 = vand.u32 %v2749, 2147483648
    %v2762 = vor.u32 1.1754944e-38, %v2761
    %v2763 = vsel %vm2760, %v2762, %v2758
    %v2764 = vmul.f32 1.0, %v2763
    %v2765 = vtanh.pop %v2698
    %v2766 = vxor.u32 %v2724, 2147483648
    %v2767 = vmul.f32 %v2766, 1.442695
    %v2768 = vpow.pop %v2767
    %v2769 = vadd.f32 %v2768, 1.0
    %v2770 = vrcp.pop %v2769
    %v2771 = vmul.f32 %v2769, %v2770
    %v2772 = vsub.f32 1.0, %v2771
    %v2773 = vmul.f32 %v2770, %v2772
    %v2774 = vadd.f32 %v2770, %v2773
    %vm2775 = vweird.f32 %v2769
    %vm2776 = vweird.f32 %v2770
    %vm2777 = vmor %vm2775, %vm2776
    %v2778 = vsel %vm2777, %v2770, %v2774
    %v2779 = vand.u32 2147483647, %v2769
    %vm2780 = vcmp.eq.f32.partialorder %v2779, 8.507059e+37
    %v2781 = vand.u32 %v2769, 2147483648
    %v2782 = vor.u32 1.1754944e-38, %v2781
    %v2783 = vsel %vm2780, %v2782, %v2778
    %v2784 = vmul.f32 1.0, %v2783
    %v2785 = vmul.f32 %v2764, %v2423
    %v2786 = vmul.f32 %v2745, %v2765
    %v2787 = vadd.f32 %v2785, %v2786
    %v2788 = vtanh.pop %v2787
    %v2789 = vmul.f32 %v2784, %v2788
    %v2790 = vpack.c.bf16 %v2789, %v2789
    %2791 = vmatpush.bf16.msra.mxu0 %v1328
    %2792 = vmatpush.bf16.msra.mxu0 %v1327
    %2793 = vmatpush.bf16.msra.mxu0 %v1326
    %2794 = vmatpush.bf16.msra.mxu0 %v1325
    %2795 = vmatpush.bf16.msra.mxu0 %v1324
    %2796 = vmatpush.bf16.msra.mxu0 %v1323
    %2797 = vmatpush.bf16.msra.mxu0 %v1322
    %2798 = vmatpush.bf16.msra.mxu0 %v1321
    %2799 = vmatmul.bf16.gmra.mxu0 %v2790
    %v2800 = vpop.f32.mrf.mxu0
    %v2801 = vadd.f32 %v1287, %v2800
    %v2802 = vpop.f32.mrf.mxu0
    %2803 = vdwg.mxu0
    %2804 = vmax.xlane.f32.xlu0 %v2801
    %v2805 = vpop.xlane.xlu0 %2804
    %v2806 = vsub.f32 %v2801, %v2805
    %v2807 = vmul.f32 %v2806, 1.442695
    %v2808 = vpow.pop %v2807
    %2809 = vadd.xlane.f32.xlu0 %v2808
    %v2810 = vpop.xlane.xlu0 %2809
    %v2811 = vrcp.pop %v2810
    %v2812 = vmul.f32 %v2808, %v2811
    %s2813 = scalar_lea.vmem [#allocation14], 32
    %2814 = vst [vmem:[%s2813] sm:$0xff] %v2812
    %s2815 = scalar_lea.vmem [#allocation2], 16
    %v2816 = vld [vmem:[%s2815] sm:$0xf]
    %v2817 = vunpack.c.l.bf16 %v2816
    %v2818 = vpack.c.bf16 %v2817, %v2817
    %2819 = vmatpush.bf16.msra.mxu0 %v520
    %2820 = vmatpush.bf16.msra.mxu0 %v516
    %2821 = vmatpush.bf16.msra.mxu0 %v512
    %2822 = vmatpush.bf16.msra.mxu0 %v508
    %2823 = vmatpush.bf16.msra.mxu0 %v504
    %2824 = vmatpush.bf16.msra.mxu0 %v500
    %2825 = vmatpush.bf16.msra.mxu0 %v496
    %2826 = vmatpush.bf16.msra.mxu0 %v492
    %2827 = vmatmul.bf16.gmra.mxu0 %v2818
    %v2828 = vpop.f32.mrf.mxu0
    %v2829 = vadd.f32 %v292, %v2828
    %v2830 = vpop.f32.mrf.mxu0
    %2831 = vdwg.mxu0
    %2832 = vmatpush.bf16.msra.mxu0 %v552
    %2833 = vmatpush.bf16.msra.mxu0 %v548
    %2834 = vmatpush.bf16.msra.mxu0 %v544
    %2835 = vmatpush.bf16.msra.mxu0 %v540
    %2836 = vmatpush.bf16.msra.mxu0 %v536
    %2837 = vmatpush.bf16.msra.mxu0 %v532
    %2838 = vmatpush.bf16.msra.mxu0 %v528
    %2839 = vmatpush.bf16.msra.mxu0 %v524
    %2840 = vmatmul.bf16.gmra.mxu0 %v2622
    %v2841 = vpop.f32.mrf.mxu0
    %v2842 = vadd.f32 %v2829, %v2841
    %v2843 = vpop.f32.mrf.mxu0
    %2844 = vdwg.mxu0
    %2845 = vmatpush.bf16.msra.mxu0 %v521
    %2846 = vmatpush.bf16.msra.mxu0 %v517
    %2847 = vmatpush.bf16.msra.mxu0 %v513
    %2848 = vmatpush.bf16.msra.mxu0 %v509
    %2849 = vmatpush.bf16.msra.mxu0 %v505
    %2850 = vmatpush.bf16.msra.mxu0 %v501
    %2851 = vmatpush.bf16.msra.mxu0 %v497
    %2852 = vmatpush.bf16.msra.mxu0 %v493
    %2853 = vmatmul.bf16.gmra.mxu0 %v2818
    %v2854 = vpop.f32.mrf.mxu0
    %v2855 = vadd.f32 %v293, %v2854
    %v2856 = vpop.f32.mrf.mxu0
    %2857 = vdwg.mxu0
    %2858 = vmatpush.bf16.msra.mxu0 %v553
    %2859 = vmatpush.bf16.msra.mxu0 %v549
    %2860 = vmatpush.bf16.msra.mxu0 %v545
    %2861 = vmatpush.bf16.msra.mxu0 %v541
    %2862 = vmatpush.bf16.msra.mxu0 %v537
    %2863 = vmatpush.bf16.msra.mxu0 %v533
    %2864 = vmatpush.bf16.msra.mxu0 %v529
    %2865 = vmatpush.bf16.msra.mxu0 %v525
    %2866 = vmatmul.bf16.gmra.mxu0 %v2622
    %v2867 = vpop.f32.mrf.mxu0
    %v2868 = vadd.f32 %v2855, %v2867
    %v2869 = vpop.f32.mrf.mxu0
    %2870 = vdwg.mxu0
    %2871 = vmatpush.bf16.msra.mxu0 %v522
    %2872 = vmatpush.bf16.msra.mxu0 %v518
    %2873 = vmatpush.bf16.msra.mxu0 %v514
    %2874 = vmatpush.bf16.msra.mxu0 %v510
    %2875 = vmatpush.bf16.msra.mxu0 %v506
    %2876 = vmatpush.bf16.msra.mxu0 %v502
    %2877 = vmatpush.bf16.msra.mxu0 %v498
    %2878 = vmatpush.bf16.msra.mxu0 %v494
    %2879 = vmatmul.bf16.gmra.mxu0 %v2818
    %v2880 = vpop.f32.mrf.mxu0
    %v2881 = vadd.f32 %v294, %v2880
    %v2882 = vpop.f32.mrf.mxu0
    %2883 = vdwg.mxu0
    %2884 = vmatpush.bf16.msra.mxu0 %v554
    %2885 = vmatpush.bf16.msra.mxu0 %v550
    %2886 = vmatpush.bf16.msra.mxu0 %v546
    %2887 = vmatpush.bf16.msra.mxu0 %v542
    %2888 = vmatpush.bf16.msra.mxu0 %v538
    %2889 = vmatpush.bf16.msra.mxu0 %v534
    %2890 = vmatpush.bf16.msra.mxu0 %v530
    %2891 = vmatpush.bf16.msra.mxu0 %v526
    %2892 = vmatmul.bf16.gmra.mxu0 %v2622
    %v2893 = vpop.f32.mrf.mxu0
    %v2894 = vadd.f32 %v2881, %v2893
    %v2895 = vpop.f32.mrf.mxu0
    %2896 = vdwg.mxu0
    %2897 = vmatpush.bf16.msra.mxu0 %v523
    %2898 = vmatpush.bf16.msra.mxu0 %v519
    %2899 = vmatpush.bf16.msra.mxu0 %v515
    %2900 = vmatpush.bf16.msra.mxu0 %v511
    %2901 = vmatpush.bf16.msra.mxu0 %v507
    %2902 = vmatpush.bf16.msra.mxu0 %v503
    %2903 = vmatpush.bf16.msra.mxu0 %v499
    %2904 = vmatpush.bf16.msra.mxu0 %v495
    %2905 = vmatmul.bf16.gmra.mxu0 %v2818
    %v2906 = vpop.f32.mrf.mxu0
    %v2907 = vadd.f32 %v295, %v2906
    %v2908 = vpop.f32.mrf.mxu0
    %2909 = vdwg.mxu0
    %2910 = vmatpush.bf16.msra.mxu0 %v555
    %2911 = vmatpush.bf16.msra.mxu0 %v551
    %2912 = vmatpush.bf16.msra.mxu0 %v547
    %2913 = vmatpush.bf16.msra.mxu0 %v543
    %2914 = vmatpush.bf16.msra.mxu0 %v539
    %2915 = vmatpush.bf16.msra.mxu0 %v535
    %2916 = vmatpush.bf16.msra.mxu0 %v531
    %2917 = vmatpush.bf16.msra.mxu0 %v527
    %2918 = vmatmul.bf16.gmra.mxu0 %v2622
    %v2919 = vpop.f32.mrf.mxu0
    %v2920 = vadd.f32 %v2907, %v2919
    %v2921 = vpop.f32.mrf.mxu0
    %2922 = vdwg.mxu0
    %v2923 = vxor.u32 %v2842, 2147483648
    %v2924 = vmul.f32 %v2923, 1.442695
    %v2925 = vpow.pop %v2924
    %v2926 = vadd.f32 %v2925, 1.0
    %v2927 = vrcp.pop %v2926
    %v2928 = vmul.f32 %v2926, %v2927
    %v2929 = vsub.f32 1.0, %v2928
    %v2930 = vmul.f32 %v2927, %v2929
    %v2931 = vadd.f32 %v2927, %v2930
    %vm2932 = vweird.f32 %v2926
    %vm2933 = vweird.f32 %v2927
    %vm2934 = vmor %vm2932, %vm2933
    %v2935 = vsel %vm2934, %v2927, %v2931
    %v2936 = vand.u32 2147483647, %v2926
    %vm2937 = vcmp.eq.f32.partialorder %v2936, 8.507059e+37
    %v2938 = vand.u32 %v2926, 2147483648
    %v2939 = vor.u32 1.1754944e-38, %v2938
    %v2940 = vsel %vm2937, %v2939, %v2935
    %v2941 = vmul.f32 1.0, %v2940
    %v2942 = vxor.u32 %v2868, 2147483648
    %v2943 = vmul.f32 %v2942, 1.442695
    %v2944 = vpow.pop %v2943
    %v2945 = vadd.f32 %v2944, 1.0
    %v2946 = vrcp.pop %v2945
    %v2947 = vmul.f32 %v2945, %v2946
    %v2948 = vsub.f32 1.0, %v2947
    %v2949 = vmul.f32 %v2946, %v2948
    %v2950 = vadd.f32 %v2946, %v2949
    %vm2951 = vweird.f32 %v2945
    %vm2952 = vweird.f32 %v2946
    %vm2953 = vmor %vm2951, %vm2952
    %v2954 = vsel %vm2953, %v2946, %v2950
    %v2955 = vand.u32 2147483647, %v2945
    %vm2956 = vcmp.eq.f32.partialorder %v2955, 8.507059e+37
    %v2957 = vand.u32 %v2945, 2147483648
    %v2958 = vor.u32 1.1754944e-38, %v2957
    %v2959 = vsel %vm2956, %v2958, %v2954
    %v2960 = vmul.f32 1.0, %v2959
    %v2961 = vtanh.pop %v2894
    %v2962 = vxor.u32 %v2920, 2147483648
    %v2963 = vmul.f32 %v2962, 1.442695
    %v2964 = vpow.pop %v2963
    %v2965 = vadd.f32 %v2964, 1.0
    %v2966 = vrcp.pop %v2965
    %v2967 = vmul.f32 %v2965, %v2966
    %v2968 = vsub.f32 1.0, %v2967
    %v2969 = vmul.f32 %v2966, %v2968
    %v2970 = vadd.f32 %v2966, %v2969
    %vm2971 = vweird.f32 %v2965
    %vm2972 = vweird.f32 %v2966
    %vm2973 = vmor %vm2971, %vm2972
    %v2974 = vsel %vm2973, %v2966, %v2970
    %v2975 = vand.u32 2147483647, %v2965
    %vm2976 = vcmp.eq.f32.partialorder %v2975, 8.507059e+37
    %v2977 = vand.u32 %v2965, 2147483648
    %v2978 = vor.u32 1.1754944e-38, %v2977
    %v2979 = vsel %vm2976, %v2978, %v2974
    %v2980 = vmul.f32 1.0, %v2979
    %v2981 = vmul.f32 %v2960, %v2619
    %v2982 = vmul.f32 %v2941, %v2961
    %v2983 = vadd.f32 %v2981, %v2982
    %v2984 = vtanh.pop %v2983
    %v2985 = vmul.f32 %v2980, %v2984
    %v2986 = vpack.c.bf16 %v2985, %v2985
    %2987 = vmatpush.bf16.msra.mxu0 %v1018
    %2988 = vmatpush.bf16.msra.mxu0 %v1014
    %2989 = vmatpush.bf16.msra.mxu0 %v1010
    %2990 = vmatpush.bf16.msra.mxu0 %v1006
    %2991 = vmatpush.bf16.msra.mxu0 %v1002
    %2992 = vmatpush.bf16.msra.mxu0 %v998
    %2993 = vmatpush.bf16.msra.mxu0 %v994
    %2994 = vmatpush.bf16.msra.mxu0 %v990
    %2995 = vmatmul.bf16.gmra.mxu0 %v2986
    %v2996 = vpop.f32.mrf.mxu0
    %v2997 = vadd.f32 %v790, %v2996
    %v2998 = vpop.f32.mrf.mxu0
    %2999 = vdwg.mxu0
    %3000 = vmatpush.bf16.msra.mxu0 %v1050
    %3001 = vmatpush.bf16.msra.mxu0 %v1046
    %3002 = vmatpush.bf16.msra.mxu0 %v1042
    %3003 = vmatpush.bf16.msra.mxu0 %v1038
    %3004 = vmatpush.bf16.msra.mxu0 %v1034
    %3005 = vmatpush.bf16.msra.mxu0 %v1030
    %3006 = vmatpush.bf16.msra.mxu0 %v1026
    %3007 = vmatpush.bf16.msra.mxu0 %v1022
    %3008 = vmatmul.bf16.gmra.mxu0 %v2790
    %v3009 = vpop.f32.mrf.mxu0
    %v3010 = vadd.f32 %v2997, %v3009
    %v3011 = vpop.f32.mrf.mxu0
    %3012 = vdwg.mxu0
    %3013 = vmatpush.bf16.msra.mxu0 %v1019
    %3014 = vmatpush.bf16.msra.mxu0 %v1015
    %3015 = vmatpush.bf16.msra.mxu0 %v1011
    %3016 = vmatpush.bf16.msra.mxu0 %v1007
    %3017 = vmatpush.bf16.msra.mxu0 %v1003
    %3018 = vmatpush.bf16.msra.mxu0 %v999
    %3019 = vmatpush.bf16.msra.mxu0 %v995
    %3020 = vmatpush.bf16.msra.mxu0 %v991
    %3021 = vmatmul.bf16.gmra.mxu0 %v2986
    %v3022 = vpop.f32.mrf.mxu0
    %v3023 = vadd.f32 %v791, %v3022
    %v3024 = vpop.f32.mrf.mxu0
    %3025 = vdwg.mxu0
    %3026 = vmatpush.bf16.msra.mxu0 %v1051
    %3027 = vmatpush.bf16.msra.mxu0 %v1047
    %3028 = vmatpush.bf16.msra.mxu0 %v1043
    %3029 = vmatpush.bf16.msra.mxu0 %v1039
    %3030 = vmatpush.bf16.msra.mxu0 %v1035
    %3031 = vmatpush.bf16.msra.mxu0 %v1031
    %3032 = vmatpush.bf16.msra.mxu0 %v1027
    %3033 = vmatpush.bf16.msra.mxu0 %v1023
    %3034 = vmatmul.bf16.gmra.mxu0 %v2790
    %v3035 = vpop.f32.mrf.mxu0
    %v3036 = vadd.f32 %v3023, %v3035
    %v3037 = vpop.f32.mrf.mxu0
    %3038 = vdwg.mxu0
    %3039 = vmatpush.bf16.msra.mxu0 %v1020
    %3040 = vmatpush.bf16.msra.mxu0 %v1016
    %3041 = vmatpush.bf16.msra.mxu0 %v1012
    %3042 = vmatpush.bf16.msra.mxu0 %v1008
    %3043 = vmatpush.bf16.msra.mxu0 %v1004
    %3044 = vmatpush.bf16.msra.mxu0 %v1000
    %3045 = vmatpush.bf16.msra.mxu0 %v996
    %3046 = vmatpush.bf16.msra.mxu0 %v992
    %3047 = vmatmul.bf16.gmra.mxu0 %v2986
    %v3048 = vpop.f32.mrf.mxu0
    %v3049 = vadd.f32 %v792, %v3048
    %v3050 = vpop.f32.mrf.mxu0
    %3051 = vdwg.mxu0
    %3052 = vmatpush.bf16.msra.mxu0 %v1052
    %3053 = vmatpush.bf16.msra.mxu0 %v1048
    %3054 = vmatpush.bf16.msra.mxu0 %v1044
    %3055 = vmatpush.bf16.msra.mxu0 %v1040
    %3056 = vmatpush.bf16.msra.mxu0 %v1036
    %3057 = vmatpush.bf16.msra.mxu0 %v1032
    %3058 = vmatpush.bf16.msra.mxu0 %v1028
    %3059 = vmatpush.bf16.msra.mxu0 %v1024
    %3060 = vmatmul.bf16.gmra.mxu0 %v2790
    %v3061 = vpop.f32.mrf.mxu0
    %v3062 = vadd.f32 %v3049, %v3061
    %v3063 = vpop.f32.mrf.mxu0
    %3064 = vdwg.mxu0
    %3065 = vmatpush.bf16.msra.mxu0 %v1021
    %3066 = vmatpush.bf16.msra.mxu0 %v1017
    %3067 = vmatpush.bf16.msra.mxu0 %v1013
    %3068 = vmatpush.bf16.msra.mxu0 %v1009
    %3069 = vmatpush.bf16.msra.mxu0 %v1005
    %3070 = vmatpush.bf16.msra.mxu0 %v1001
    %3071 = vmatpush.bf16.msra.mxu0 %v997
    %3072 = vmatpush.bf16.msra.mxu0 %v993
    %3073 = vmatmul.bf16.gmra.mxu0 %v2986
    %v3074 = vpop.f32.mrf.mxu0
    %v3075 = vadd.f32 %v793, %v3074
    %v3076 = vpop.f32.mrf.mxu0
    %3077 = vdwg.mxu0
    %3078 = vmatpush.bf16.msra.mxu0 %v1053
    %3079 = vmatpush.bf16.msra.mxu0 %v1049
    %3080 = vmatpush.bf16.msra.mxu0 %v1045
    %3081 = vmatpush.bf16.msra.mxu0 %v1041
    %3082 = vmatpush.bf16.msra.mxu0 %v1037
    %3083 = vmatpush.bf16.msra.mxu0 %v1033
    %3084 = vmatpush.bf16.msra.mxu0 %v1029
    %3085 = vmatpush.bf16.msra.mxu0 %v1025
    %3086 = vmatmul.bf16.gmra.mxu0 %v2790
    %v3087 = vpop.f32.mrf.mxu0
    %v3088 = vadd.f32 %v3075, %v3087
    %v3089 = vpop.f32.mrf.mxu0
    %3090 = vdwg.mxu0
    %v3091 = vxor.u32 %v3010, 2147483648
    %v3092 = vmul.f32 %v3091, 1.442695
    %v3093 = vpow.pop %v3092
    %v3094 = vadd.f32 %v3093, 1.0
    %v3095 = vrcp.pop %v3094
    %v3096 = vmul.f32 %v3094, %v3095
    %v3097 = vsub.f32 1.0, %v3096
    %v3098 = vmul.f32 %v3095, %v3097
    %v3099 = vadd.f32 %v3095, %v3098
    %vm3100 = vweird.f32 %v3094
    %vm3101 = vweird.f32 %v3095
    %vm3102 = vmor %vm3100, %vm3101
    %v3103 = vsel %vm3102, %v3095, %v3099
    %v3104 = vand.u32 2147483647, %v3094
    %vm3105 = vcmp.eq.f32.partialorder %v3104, 8.507059e+37
    %v3106 = vand.u32 %v3094, 2147483648
    %v3107 = vor.u32 1.1754944e-38, %v3106
    %v3108 = vsel %vm3105, %v3107, %v3103
    %v3109 = vmul.f32 1.0, %v3108
    %v3110 = vxor.u32 %v3036, 2147483648
    %v3111 = vmul.f32 %v3110, 1.442695
    %v3112 = vpow.pop %v3111
    %v3113 = vadd.f32 %v3112, 1.0
    %v3114 = vrcp.pop %v3113
    %v3115 = vmul.f32 %v3113, %v3114
    %v3116 = vsub.f32 1.0, %v3115
    %v3117 = vmul.f32 %v3114, %v3116
    %v3118 = vadd.f32 %v3114, %v3117
    %vm3119 = vweird.f32 %v3113
    %vm3120 = vweird.f32 %v3114
    %vm3121 = vmor %vm3119, %vm3120
    %v3122 = vsel %vm3121, %v3114, %v3118
    %v3123 = vand.u32 2147483647, %v3113
    %vm3124 = vcmp.eq.f32.partialorder %v3123, 8.507059e+37
    %v3125 = vand.u32 %v3113, 2147483648
    %v3126 = vor.u32 1.1754944e-38, %v3125
    %v3127 = vsel %vm3124, %v3126, %v3122
    %v3128 = vmul.f32 1.0, %v3127
    %v3129 = vtanh.pop %v3062
    %v3130 = vxor.u32 %v3088, 2147483648
    %v3131 = vmul.f32 %v3130, 1.442695
    %v3132 = vpow.pop %v3131
    %v3133 = vadd.f32 %v3132, 1.0
    %v3134 = vrcp.pop %v3133
    %v3135 = vmul.f32 %v3133, %v3134
    %v3136 = vsub.f32 1.0, %v3135
    %v3137 = vmul.f32 %v3134, %v3136
    %v3138 = vadd.f32 %v3134, %v3137
    %vm3139 = vweird.f32 %v3133
    %vm3140 = vweird.f32 %v3134
    %vm3141 = vmor %vm3139, %vm3140
    %v3142 = vsel %vm3141, %v3134, %v3138
    %v3143 = vand.u32 2147483647, %v3133
    %vm3144 = vcmp.eq.f32.partialorder %v3143, 8.507059e+37
    %v3145 = vand.u32 %v3133, 2147483648
    %v3146 = vor.u32 1.1754944e-38, %v3145
    %v3147 = vsel %vm3144, %v3146, %v3142
    %v3148 = vmul.f32 1.0, %v3147
    %v3149 = vmul.f32 %v3128, %v2787
    %v3150 = vmul.f32 %v3109, %v3129
    %v3151 = vadd.f32 %v3149, %v3150
    %v3152 = vtanh.pop %v3151
    %v3153 = vmul.f32 %v3148, %v3152
    %v3154 = vpack.c.bf16 %v3153, %v3153
    %3155 = vmatpush.bf16.msra.mxu0 %v1328
    %3156 = vmatpush.bf16.msra.mxu0 %v1327
    %3157 = vmatpush.bf16.msra.mxu0 %v1326
    %3158 = vmatpush.bf16.msra.mxu0 %v1325
    %3159 = vmatpush.bf16.msra.mxu0 %v1324
    %3160 = vmatpush.bf16.msra.mxu0 %v1323
    %3161 = vmatpush.bf16.msra.mxu0 %v1322
    %3162 = vmatpush.bf16.msra.mxu0 %v1321
    %3163 = vmatmul.bf16.gmra.mxu0 %v3154
    %v3164 = vpop.f32.mrf.mxu0
    %v3165 = vadd.f32 %v1287, %v3164
    %v3166 = vpop.f32.mrf.mxu0
    %3167 = vdwg.mxu0
    %3168 = vmax.xlane.f32.xlu0 %v3165
    %v3169 = vpop.xlane.xlu0 %3168
    %v3170 = vsub.f32 %v3165, %v3169
    %v3171 = vmul.f32 %v3170, 1.442695
    %v3172 = vpow.pop %v3171
    %3173 = vadd.xlane.f32.xlu0 %v3172
    %v3174 = vpop.xlane.xlu0 %3173
    %v3175 = vrcp.pop %v3174
    %v3176 = vmul.f32 %v3172, %v3175
    %s3177 = scalar_lea.vmem [#allocation14], 40
    %3178 = vst [vmem:[%s3177] sm:$0xff] %v3176
    %3179 = vst [vmem:[#allocation15] sm:$0xff] %v2985
    // Predicated region
    $region66: #{tpu_custom_call.1} parent=1 // pred_check
      _
    $region67: #{tpu_custom_call.1} parent=1 // pred_check_branch
      %3181 = sbr.rel (0) target = $region69
    $region68: #{tpu_custom_call.1} parent=1 // pred_region
      %3183 = vsyncadd [#allocation4], 0
      %s3184 = sshll.u32 [#allocation14], 4
      %s3185 = int_to_ptr.vmem [resolvable:$true] %s3184
      %s3186 = sshll.u32 %s9, 4
      %s3187 = int_to_ptr.hbm [resolvable:$true] %s3186
      %3192 = dma.vmem_to_hbm [thread:$0]  %s3185, 768, %s3187, [#allocation4], 128, 128, 8
    $region69: #{tpu_custom_call.1} parent=1 // pred_fallthru
      _
    // Predicated region
    $region70: #{tpu_custom_call.1} parent=1 // pred_check
      _
    $region71: #{tpu_custom_call.1} parent=1 // pred_check_branch
      %3194 = sbr.rel (0) target = $region73
    $region72: #{tpu_custom_call.1} parent=1 // pred_region
      %3196 = vsyncadd [#allocation16], 0
      %s3198 = sshll.u32 [#allocation15], 4
      %s3199 = int_to_ptr.vmem [resolvable:$true] %s3198
      %s3200 = sshll.u32 %s10, 4
      %s3201 = int_to_ptr.hbm [resolvable:$true] %s3200
      %3203 = dma.vmem_to_hbm [thread:$0]  %s3199, 128, %s3201, [#allocation16]
    $region73: #{tpu_custom_call.1} parent=1 // pred_fallthru
      _
    // Predicated region
    $region74: #{tpu_custom_call.1} parent=1 // pred_check
      _
    $region75: #{tpu_custom_call.1} parent=1 // pred_check_branch
      %3205 = sbr.rel (0) target = $region77
    $region76: #{tpu_custom_call.1} parent=1 // pred_region
      %3207 = dma.done [#allocation4], 768
    $region77: #{tpu_custom_call.1} parent=1 // pred_fallthru
      _
    // Predicated region
    $region78: #{tpu_custom_call.1} parent=1 // pred_check
      _
    $region79: #{tpu_custom_call.1} parent=1 // pred_check_branch
      %3209 = sbr.rel (0) target = $region81
    $region80: #{tpu_custom_call.1} parent=1 // pred_region
      %3211 = dma.done [#allocation16], 128
    $region81: #{tpu_custom_call.1} parent=1 // pred_fallthru
      _
    %3212 = vsyncpa [#allocation3], 1
    %3213 = vsyncpa [#allocation6], 1
    %3214 = vsyncpa [#allocation9], 1
    %3215 = vsyncpa [#allocation12], 1
    %3216 = vsyncpa [#allocation4], 1
    %3217 = vsyncpa [#allocation16], 1

</llo_original>
